<compile_context>
chip_gen: v7x
topology: tpu7x:2x2x1
jax: 0.10.0
libtpu: 0.0.40
codegen_flags: <defaults>
</compile_context>

<pallas_src>
import jax
import jax.numpy as jnp
from jax.experimental import pallas as pl
from jax.experimental.pallas import tpu as pltpu


# ----------------------------- Pallas kernels ------------------------------

def _conv_pool_kernel(cols_ref, w_ref, b_ref, out_ref):
    # cols_ref: (4, TM, KKC) bf16 -- patch matrices for the 4 positions of each
    #           2x2 pool window; rows ordered (image, pooled-y, pooled-x).
    # w_ref: (KKC, Cout) bf16   b_ref: (1, Cout) f32   out_ref: (TM, Cout) bf16
    nq, tm, kkc = cols_ref.shape
    cols = cols_ref[...].reshape(nq * tm, kkc)          # free view (lane dim unchanged)
    res = jnp.dot(cols, w_ref[...], preferred_element_type=jnp.float32)  # (4*TM, Cout)
    m01 = jnp.maximum(res[0 * tm:1 * tm], res[1 * tm:2 * tm])
    m23 = jnp.maximum(res[2 * tm:3 * tm], res[3 * tm:4 * tm])
    # max(conv + b) == max(conv) + b since the bias is constant per channel.
    out_ref[...] = (jnp.maximum(m01, m23) + b_ref[...]).astype(out_ref.dtype)


def _mlp_kernel(x_ref, w1_ref, b1_ref, w2_ref, b2_ref, out_ref):
    # x: (TM, 1024) bf16  w1: (1024, 64) bf16  b1: (1, 64) f32
    # w2: (64, 10) bf16   b2: (1, 10) f32      out: (TM, 10) f32
    h = jnp.dot(x_ref[...], w1_ref[...], preferred_element_type=jnp.float32) + b1_ref[...]
    out_ref[...] = (jnp.dot(h.astype(jnp.bfloat16), w2_ref[...],
                            preferred_element_type=jnp.float32) + b2_ref[...])


# ------------------------------ JAX glue ----------------------------------

def _pick_tile(m_total, target):
    """Largest divisor of m_total that is a multiple of 16 (bf16 sublane packing),
    <= target, preferring choices that leave >= 2 grid steps (v7x megacore)."""
    for align in (16, 8):
        divs = [t for t in range(align, min(m_total, target) + 1, align)
                if m_total % t == 0]
        if divs:
            multi = [t for t in divs if m_total // t >= 2]
            return max(multi) if multi else max(divs)
    return m_total


def _im2col_pooled_quads(x_nhwc, k=5, pad=2):
    # Builds the patch matrices for the 4 (di,dj) conv positions of each 2x2 pool
    # window directly with strided slices (single fused XLA gather pass, bf16 in/out).
    # TODO(synk): in-kernel halo'd im2col would avoid materializing this at all.
    n, h, w, c = x_nhwc.shape
    ho, wo = h // 2, w // 2
    xp = jnp.pad(x_nhwc, ((0, 0), (pad, pad), (pad, pad), (0, 0)))
    quads = []
    for di in (0, 1):
        for dj in (0, 1):
            taps = [xp[:, di + ky: di + ky + h: 2, dj + kx: dj + kx + w: 2, :]
                    for ky in range(k) for kx in range(k)]       # (ky, kx, cin) order
            quads.append(jnp.concatenate(taps, axis=-1).reshape(n * ho * wo, k * k * c))
    return jnp.stack(quads, axis=0)                              # (4, M, KKC)


def conv_pool_layer(x_nhwc, wmat, bmat, *, k=5):
    n, h, w, cin = x_nhwc.shape
    cout = wmat.shape[1]
    ho, wo = h // 2, w // 2
    kkc = k * k * cin
    m_total = n * ho * wo

    cols = _im2col_pooled_quads(x_nhwc, k=k)                     # (4, M, KKC) bf16
    tm = _pick_tile(m_total, target=512)

    out = pl.pallas_call(
        _conv_pool_kernel,
        out_shape=jax.ShapeDtypeStruct((m_total, cout), jnp.bfloat16),
        grid_spec=pltpu.PrefetchScalarGridSpec(
            num_scalar_prefetch=0,
            grid=(m_total // tm,),
            in_specs=[
                pl.BlockSpec((4, tm, kkc), lambda i: (0, i, 0)),
                pl.BlockSpec((kkc, cout), lambda i: (0, 0)),
                pl.BlockSpec((1, cout), lambda i: (0, 0)),
            ],
            out_specs=pl.BlockSpec((tm, cout), lambda i: (i, 0)),
        ),
        compiler_params=pltpu.CompilerParams(
            dimension_semantics=("parallel",),
            vmem_limit_bytes=32 * 1024 * 1024),
    )(cols, wmat, bmat)
    return out.reshape(n, ho, wo, cout)                          # NHWC, bf16


def mlp_head(x_flat, fw1, fb1, fw2, fb2):
    n, d_in = x_flat.shape
    d_h = fw1.shape[1]
    d_o = fw2.shape[1]

    # Pad batch to a multiple of 16 so tiling never degenerates to one huge block.
    n_pad = -(-n // 16) * 16
    x_flat = x_flat.astype(jnp.bfloat16)
    if n_pad != n:
        x_flat = jnp.pad(x_flat, ((0, n_pad - n), (0, 0)))
    tm = _pick_tile(n_pad, target=256)

    out = pl.pallas_call(
        _mlp_kernel,
        out_shape=jax.ShapeDtypeStruct((n_pad, d_o), jnp.float32),
        grid_spec=pltpu.PrefetchScalarGridSpec(
            num_scalar_prefetch=0,
            grid=(n_pad // tm,),
            in_specs=[
                pl.BlockSpec((tm, d_in), lambda i: (i, 0)),
                pl.BlockSpec((d_in, d_h), lambda i: (0, 0)),
                pl.BlockSpec((1, d_h), lambda i: (0, 0)),
                pl.BlockSpec((d_h, d_o), lambda i: (0, 0)),
                pl.BlockSpec((1, d_o), lambda i: (0, 0)),
            ],
            out_specs=pl.BlockSpec((tm, d_o), lambda i: (i, 0)),
        ),
        compiler_params=pltpu.CompilerParams(dimension_semantics=("parallel",)),
    )(x_flat, fw1, fb1, fw2, fb2)
    return out[:n]


def init_params(key):
    # Deterministic synthetic init (PyTorch-like uniform(-1/sqrt(fan_in), +)).
    def uniform(k, shape, fan_in):
        bound = 1.0 / jnp.sqrt(float(fan_in))
        return jax.random.uniform(k, shape, jnp.float32, -bound, bound)

    ks = jax.random.split(key, 10)
    return {
        "w1": uniform(ks[0], (5, 5, 3, 32), 5 * 5 * 3),    # HWIO
        "b1": uniform(ks[1], (32,), 5 * 5 * 3),
        "w2": uniform(ks[2], (5, 5, 32, 32), 5 * 5 * 32),
        "b2": uniform(ks[3], (32,), 5 * 5 * 32),
        "w3": uniform(ks[4], (5, 5, 32, 64), 5 * 5 * 32),
        "b3": uniform(ks[5], (64,), 5 * 5 * 32),
        "fw1": uniform(ks[6], (1024, 64), 1024),           # rows in PyTorch (C,H,W) order
        "fb1": uniform(ks[7], (64,), 1024),
        "fw2": uniform(ks[8], (64, 10), 64),
        "fb2": uniform(ks[9], (10,), 64),
    }


def prepare_params(params):
    """One-time weight prep, hoisted out of the per-call jitted forward."""
    def conv_w(w_hwio):
        kh, kw, cin, cout = w_hwio.shape
        return w_hwio.reshape(kh * kw * cin, cout).astype(jnp.bfloat16)

    # Absorb nn.Flatten's (C,H,W) ordering by permuting fc1's rows once so the
    # NHWC-flattened activations can feed it directly (no per-forward transpose).
    cc, hh, ww = 64, 4, 4
    fw1 = (params["fw1"].reshape(cc, hh, ww, -1)
           .transpose(1, 2, 0, 3).reshape(hh * ww * cc, -1))

    def bias(b):
        return b.reshape(1, -1).astype(jnp.float32)

    return {
        "c1w": conv_w(params["w1"]), "c1b": bias(params["b1"]),
        "c2w": conv_w(params["w2"]), "c2b": bias(params["b2"]),
        "c3w": conv_w(params["w3"]), "c3b": bias(params["b3"]),
        "fw1": fw1.astype(jnp.bfloat16), "fb1": bias(params["fb1"]),
        "fw2": params["fw2"].astype(jnp.bfloat16), "fb2": bias(params["fb2"]),
    }


@jax.jit
def model_forward(x_nchw, prep):
    # NCHW (PyTorch) -> NHWC, cast to bf16 BEFORE im2col so all expanded-patch
    # traffic (the dominant HBM cost) is half-width.
    x = jnp.transpose(x_nchw, (0, 2, 3, 1)).astype(jnp.bfloat16)   # (N, 32, 32, 3)
    x = conv_pool_layer(x, prep["c1w"], prep["c1b"])               # (N, 16, 16, 32)
    x = conv_pool_layer(x, prep["c2w"], prep["c2b"])               # (N,  8,  8, 32)
    x = conv_pool_layer(x, prep["c3w"], prep["c3b"])               # (N,  4,  4, 64)
    n = x.shape[0]
    x_flat = x.reshape(n, -1)                                      # NHWC flatten order
    return mlp_head(x_flat, prep["fw1"], prep["fb1"], prep["fw2"], prep["fb2"])


def _reference_forward(x_nchw, params):
    # Pure-JAX f32 reference for validation (no Pallas).
    x = x_nchw.astype(jnp.float32)

    def conv(x, w_hwio, b):
        y = jax.lax.conv_general_dilated(
            x, w_hwio, window_strides=(1, 1), padding=((2, 2), (2, 2)),
            dimension_numbers=("NCHW", "HWIO", "NCHW"))
        return y + b.reshape(1, -1, 1, 1)

    def pool(x):
        return jax.lax.reduce_window(
            x, -jnp.inf, jax.lax.max, (1, 1, 2, 2), (1, 1, 2, 2), "VALID")

    x = pool(conv(x, params["w1"], params["b1"]))
    x = pool(conv(x, params["w2"], params["b2"]))
    x = pool(conv(x, params["w3"], params["b3"]))
    x = x.reshape(x.shape[0], -1)                                  # (C,H,W) order
    x = x @ params["fw1"] + params["fb1"]
    return x @ params["fw2"] + params["fb2"]


if __name__ == "__main__":
    key = jax.random.PRNGKey(0)
    kx, kp = jax.random.split(key)
    x = jax.random.normal(kx, (2, 3, 32, 32), jnp.float32)         # NCHW, CIFAR-sized
    params = init_params(kp)
    prep = prepare_params(params)                                  # hoisted, runs once

    out = model_forward(x, prep)
    out = jax.block_until_ready(out)
    assert out.shape == (2, 10), out.shape

    ref = _reference_forward(x, params)
    err = float(jnp.max(jnp.abs(out - ref)))
    assert err < 8e-2, f"mismatch vs reference: max|diff|={err}"

    print("KERNEL_OK")
</pallas_src>

<mosaic_0001>
module attributes {stable_mosaic.version = 11 : i64} {
  func.func @_conv_pool_kernel(%arg0: i32, %arg1: memref<4x256x75xbf16, #tpu.memory_space<vmem>>, %arg2: memref<75x32xbf16, #tpu.memory_space<vmem>>, %arg3: memref<1x32xf32, #tpu.memory_space<vmem>>, %arg4: memref<256x32xbf16, #tpu.memory_space<vmem>>) attributes {dimension_semantics = [#tpu.dimension_semantics<parallel>], iteration_bounds = array<i64: 2>, scalar_prefetch = 0 : i64, scratch_operands = 0 : i64, tpu.core_type = #tpu.core_type<tc>, window_params = [{transform_indices = @transform_0, window_bounds = array<i64: 4, 256, 75>}, {pipeline_mode = #tpu.pipeline_mode<synchronous>, transform_indices = @transform_1, window_bounds = array<i64: 75, 32>}, {pipeline_mode = #tpu.pipeline_mode<synchronous>, transform_indices = @transform_2, window_bounds = array<i64: 1, 32>}, {transform_indices = @transform_3, window_bounds = array<i64: 256, 32>}]} {
    %c0 = arith.constant 0 : index
    %c0_0 = arith.constant 0 : index
    %c0_1 = arith.constant 0 : index
    %0 = vector.load %arg1[%c0, %c0_0, %c0_1] : memref<4x256x75xbf16, #tpu.memory_space<vmem>>, vector<4x256x75xbf16>
    %1 = vector.shape_cast %0 : vector<4x256x75xbf16> to vector<1024x75xbf16>
    %c0_2 = arith.constant 0 : index
    %c0_3 = arith.constant 0 : index
    %2 = vector.load %arg2[%c0_2, %c0_3] : memref<75x32xbf16, #tpu.memory_space<vmem>>, vector<75x32xbf16>
    %cst = arith.constant dense<0.000000e+00> : vector<1024x32xf32>
    %3 = tpu.matmul %1, %2, %cst {dimension_numbers = #tpu.dot_dimension_numbers<[1], [0], [0], [1], [0, 0, 1, 1], [], []>} : vector<1024x75xbf16>, vector<75x32xbf16>, vector<1024x32xf32> -> vector<1024x32xf32>
    %4 = vector.extract_strided_slice %3 {offsets = [0, 0], sizes = [256, 32], strides = [1, 1]} : vector<1024x32xf32> to vector<256x32xf32>
    %5 = vector.extract_strided_slice %3 {offsets = [256, 0], sizes = [256, 32], strides = [1, 1]} : vector<1024x32xf32> to vector<256x32xf32>
    %6 = arith.maximumf %4, %5 : vector<256x32xf32>
    %7 = vector.extract_strided_slice %3 {offsets = [512, 0], sizes = [256, 32], strides = [1, 1]} : vector<1024x32xf32> to vector<256x32xf32>
    %8 = vector.extract_strided_slice %3 {offsets = [768, 0], sizes = [256, 32], strides = [1, 1]} : vector<1024x32xf32> to vector<256x32xf32>
    %9 = arith.maximumf %7, %8 : vector<256x32xf32>
    %10 = arith.maximumf %6, %9 : vector<256x32xf32>
    %c0_4 = arith.constant 0 : index
    %c0_5 = arith.constant 0 : index
    %11 = vector.load %arg3[%c0_4, %c0_5] : memref<1x32xf32, #tpu.memory_space<vmem>>, vector<1x32xf32>
    %12 = vector.broadcast %11 : vector<1x32xf32> to vector<256x32xf32>
    %13 = arith.addf %10, %12 : vector<256x32xf32>
    %14 = arith.truncf %13 : vector<256x32xf32> to vector<256x32xbf16>
    %c0_6 = arith.constant 0 : index
    %c0_7 = arith.constant 0 : index
    %15 = vector.load %arg4[%c0_6, %c0_7] : memref<256x32xbf16, #tpu.memory_space<vmem>>, vector<256x32xbf16>
    tpu.vector_store %arg4[%c0_6, %c0_7], %14 {strides = array<i32>} : memref<256x32xbf16, #tpu.memory_space<vmem>>, vector<256x32xbf16>,
    return
  }
  func.func @transform_0(%arg0: i32) -> (i32, i32, i32) {
    %c0_i32 = arith.constant 0 : i32
    %c0_i32_0 = arith.constant 0 : i32
    %c0_i32_1 = arith.constant 0 : i32
    return %c0_i32, %arg0, %c0_i32_0 : i32, i32, i32
  }
  func.func @transform_1(%arg0: i32) -> (i32, i32) {
    %c0_i32 = arith.constant 0 : i32
    %c0_i32_0 = arith.constant 0 : i32
    %c0_i32_1 = arith.constant 0 : i32
    return %c0_i32, %c0_i32_0 : i32, i32
  }
  func.func @transform_2(%arg0: i32) -> (i32, i32) {
    %c0_i32 = arith.constant 0 : i32
    %c0_i32_0 = arith.constant 0 : i32
    %c0_i32_1 = arith.constant 0 : i32
    return %c0_i32, %c0_i32_0 : i32, i32
  }
  func.func @transform_3(%arg0: i32) -> (i32, i32) {
    %c0_i32 = arith.constant 0 : i32
    %c0_i32_0 = arith.constant 0 : i32
    return %arg0, %c0_i32 : i32, i32
  }
}

module attributes {stable_mosaic.version = 11 : i64} {
  func.func @_conv_pool_kernel(%arg0: i32, %arg1: memref<4x64x800xbf16, #tpu.memory_space<vmem>>, %arg2: memref<800x32xbf16, #tpu.memory_space<vmem>>, %arg3: memref<1x32xf32, #tpu.memory_space<vmem>>, %arg4: memref<64x32xbf16, #tpu.memory_space<vmem>>) attributes {dimension_semantics = [#tpu.dimension_semantics<parallel>], iteration_bounds = array<i64: 2>, scalar_prefetch = 0 : i64, scratch_operands = 0 : i64, tpu.core_type = #tpu.core_type<tc>, window_params = [{transform_indices = @transform_0, window_bounds = array<i64: 4, 64, 800>}, {pipeline_mode = #tpu.pipeline_mode<synchronous>, transform_indices = @transform_1, window_bounds = array<i64: 800, 32>}, {pipeline_mode = #tpu.pipeline_mode<synchronous>, transform_indices = @transform_2, window_bounds = array<i64: 1, 32>}, {transform_indices = @transform_3, window_bounds = array<i64: 64, 32>}]} {
    %c0 = arith.constant 0 : index
    %c0_0 = arith.constant 0 : index
    %c0_1 = arith.constant 0 : index
    %0 = vector.load %arg1[%c0, %c0_0, %c0_1] : memref<4x64x800xbf16, #tpu.memory_space<vmem>>, vector<4x64x800xbf16>
    %1 = vector.shape_cast %0 : vector<4x64x800xbf16> to vector<256x800xbf16>
    %c0_2 = arith.constant 0 : index
    %c0_3 = arith.constant 0 : index
    %2 = vector.load %arg2[%c0_2, %c0_3] : memref<800x32xbf16, #tpu.memory_space<vmem>>, vector<800x32xbf16>
    %cst = arith.constant dense<0.000000e+00> : vector<256x32xf32>
    %3 = tpu.matmul %1, %2, %cst {dimension_numbers = #tpu.dot_dimension_numbers<[1], [0], [0], [1], [0, 0, 1, 1], [], []>} : vector<256x800xbf16>, vector<800x32xbf16>, vector<256x32xf32> -> vector<256x32xf32>
    %4 = vector.extract_strided_slice %3 {offsets = [0, 0], sizes = [64, 32], strides = [1, 1]} : vector<256x32xf32> to vector<64x32xf32>
    %5 = vector.extract_strided_slice %3 {offsets = [64, 0], sizes = [64, 32], strides = [1, 1]} : vector<256x32xf32> to vector<64x32xf32>
    %6 = arith.maximumf %4, %5 : vector<64x32xf32>
    %7 = vector.extract_strided_slice %3 {offsets = [128, 0], sizes = [64, 32], strides = [1, 1]} : vector<256x32xf32> to vector<64x32xf32>
    %8 = vector.extract_strided_slice %3 {offsets = [192, 0], sizes = [64, 32], strides = [1, 1]} : vector<256x32xf32> to vector<64x32xf32>
    %9 = arith.maximumf %7, %8 : vector<64x32xf32>
    %10 = arith.maximumf %6, %9 : vector<64x32xf32>
    %c0_4 = arith.constant 0 : index
    %c0_5 = arith.constant 0 : index
    %11 = vector.load %arg3[%c0_4, %c0_5] : memref<1x32xf32, #tpu.memory_space<vmem>>, vector<1x32xf32>
    %12 = vector.broadcast %11 : vector<1x32xf32> to vector<64x32xf32>
    %13 = arith.addf %10, %12 : vector<64x32xf32>
    %14 = arith.truncf %13 : vector<64x32xf32> to vector<64x32xbf16>
    %c0_6 = arith.constant 0 : index
    %c0_7 = arith.constant 0 : index
    %15 = vector.load %arg4[%c0_6, %c0_7] : memref<64x32xbf16, #tpu.memory_space<vmem>>, vector<64x32xbf16>
    tpu.vector_store %arg4[%c0_6, %c0_7], %14 {strides = array<i32>} : memref<64x32xbf16, #tpu.memory_space<vmem>>, vector<64x32xbf16>,
    return
  }
  func.func @transform_0(%arg0: i32) -> (i32, i32, i32) {
    %c0_i32 = arith.constant 0 : i32
    %c0_i32_0 = arith.constant 0 : i32
    %c0_i32_1 = arith.constant 0 : i32
    return %c0_i32, %arg0, %c0_i32_0 : i32, i32, i32
  }
  func.func @transform_1(%arg0: i32) -> (i32, i32) {
    %c0_i32 = arith.constant 0 : i32
    %c0_i32_0 = arith.constant 0 : i32
    %c0_i32_1 = arith.constant 0 : i32
    return %c0_i32, %c0_i32_0 : i32, i32
  }
  func.func @transform_2(%arg0: i32) -> (i32, i32) {
    %c0_i32 = arith.constant 0 : i32
    %c0_i32_0 = arith.constant 0 : i32
    %c0_i32_1 = arith.constant 0 : i32
    return %c0_i32, %c0_i32_0 : i32, i32
  }
  func.func @transform_3(%arg0: i32) -> (i32, i32) {
    %c0_i32 = arith.constant 0 : i32
    %c0_i32_0 = arith.constant 0 : i32
    return %arg0, %c0_i32 : i32, i32
  }
}

module attributes {stable_mosaic.version = 11 : i64} {
  func.func @_conv_pool_kernel(%arg0: i32, %arg1: memref<4x16x800xbf16, #tpu.memory_space<vmem>>, %arg2: memref<800x64xbf16, #tpu.memory_space<vmem>>, %arg3: memref<1x64xf32, #tpu.memory_space<vmem>>, %arg4: memref<16x64xbf16, #tpu.memory_space<vmem>>) attributes {dimension_semantics = [#tpu.dimension_semantics<parallel>], iteration_bounds = array<i64: 2>, scalar_prefetch = 0 : i64, scratch_operands = 0 : i64, tpu.core_type = #tpu.core_type<tc>, window_params = [{transform_indices = @transform_0, window_bounds = array<i64: 4, 16, 800>}, {pipeline_mode = #tpu.pipeline_mode<synchronous>, transform_indices = @transform_1, window_bounds = array<i64: 800, 64>}, {pipeline_mode = #tpu.pipeline_mode<synchronous>, transform_indices = @transform_2, window_bounds = array<i64: 1, 64>}, {transform_indices = @transform_3, window_bounds = array<i64: 16, 64>}]} {
    %c0 = arith.constant 0 : index
    %c0_0 = arith.constant 0 : index
    %c0_1 = arith.constant 0 : index
    %0 = vector.load %arg1[%c0, %c0_0, %c0_1] : memref<4x16x800xbf16, #tpu.memory_space<vmem>>, vector<4x16x800xbf16>
    %1 = vector.shape_cast %0 : vector<4x16x800xbf16> to vector<64x800xbf16>
    %c0_2 = arith.constant 0 : index
    %c0_3 = arith.constant 0 : index
    %2 = vector.load %arg2[%c0_2, %c0_3] : memref<800x64xbf16, #tpu.memory_space<vmem>>, vector<800x64xbf16>
    %cst = arith.constant dense<0.000000e+00> : vector<64x64xf32>
    %3 = tpu.matmul %1, %2, %cst {dimension_numbers = #tpu.dot_dimension_numbers<[1], [0], [0], [1], [0, 0, 1, 1], [], []>} : vector<64x800xbf16>, vector<800x64xbf16>, vector<64x64xf32> -> vector<64x64xf32>
    %4 = vector.extract_strided_slice %3 {offsets = [0, 0], sizes = [16, 64], strides = [1, 1]} : vector<64x64xf32> to vector<16x64xf32>
    %5 = vector.extract_strided_slice %3 {offsets = [16, 0], sizes = [16, 64], strides = [1, 1]} : vector<64x64xf32> to vector<16x64xf32>
    %6 = arith.maximumf %4, %5 : vector<16x64xf32>
    %7 = vector.extract_strided_slice %3 {offsets = [32, 0], sizes = [16, 64], strides = [1, 1]} : vector<64x64xf32> to vector<16x64xf32>
    %8 = vector.extract_strided_slice %3 {offsets = [48, 0], sizes = [16, 64], strides = [1, 1]} : vector<64x64xf32> to vector<16x64xf32>
    %9 = arith.maximumf %7, %8 : vector<16x64xf32>
    %10 = arith.maximumf %6, %9 : vector<16x64xf32>
    %c0_4 = arith.constant 0 : index
    %c0_5 = arith.constant 0 : index
    %11 = vector.load %arg3[%c0_4, %c0_5] : memref<1x64xf32, #tpu.memory_space<vmem>>, vector<1x64xf32>
    %12 = vector.broadcast %11 : vector<1x64xf32> to vector<16x64xf32>
    %13 = arith.addf %10, %12 : vector<16x64xf32>
    %14 = arith.truncf %13 : vector<16x64xf32> to vector<16x64xbf16>
    %c0_6 = arith.constant 0 : index
    %c0_7 = arith.constant 0 : index
    %15 = vector.load %arg4[%c0_6, %c0_7] : memref<16x64xbf16, #tpu.memory_space<vmem>>, vector<16x64xbf16>
    tpu.vector_store %arg4[%c0_6, %c0_7], %14 {strides = array<i32>} : memref<16x64xbf16, #tpu.memory_space<vmem>>, vector<16x64xbf16>,
    return
  }
  func.func @transform_0(%arg0: i32) -> (i32, i32, i32) {
    %c0_i32 = arith.constant 0 : i32
    %c0_i32_0 = arith.constant 0 : i32
    %c0_i32_1 = arith.constant 0 : i32
    return %c0_i32, %arg0, %c0_i32_0 : i32, i32, i32
  }
  func.func @transform_1(%arg0: i32) -> (i32, i32) {
    %c0_i32 = arith.constant 0 : i32
    %c0_i32_0 = arith.constant 0 : i32
    %c0_i32_1 = arith.constant 0 : i32
    return %c0_i32, %c0_i32_0 : i32, i32
  }
  func.func @transform_2(%arg0: i32) -> (i32, i32) {
    %c0_i32 = arith.constant 0 : i32
    %c0_i32_0 = arith.constant 0 : i32
    %c0_i32_1 = arith.constant 0 : i32
    return %c0_i32, %c0_i32_0 : i32, i32
  }
  func.func @transform_3(%arg0: i32) -> (i32, i32) {
    %c0_i32 = arith.constant 0 : i32
    %c0_i32_0 = arith.constant 0 : i32
    return %arg0, %c0_i32 : i32, i32
  }
}

module attributes {stable_mosaic.version = 11 : i64} {
  func.func @_mlp_kernel(%arg0: i32, %arg1: memref<16x1024xbf16, #tpu.memory_space<vmem>>, %arg2: memref<1024x64xbf16, #tpu.memory_space<vmem>>, %arg3: memref<1x64xf32, #tpu.memory_space<vmem>>, %arg4: memref<64x10xbf16, #tpu.memory_space<vmem>>, %arg5: memref<1x10xf32, #tpu.memory_space<vmem>>, %arg6: memref<16x10xf32, #tpu.memory_space<vmem>>) attributes {dimension_semantics = [#tpu.dimension_semantics<parallel>], iteration_bounds = array<i64: 1>, scalar_prefetch = 0 : i64, scratch_operands = 0 : i64, tpu.core_type = #tpu.core_type<tc>, window_params = [{transform_indices = @transform_0, window_bounds = array<i64: 16, 1024>}, {pipeline_mode = #tpu.pipeline_mode<synchronous>, transform_indices = @transform_1, window_bounds = array<i64: 1024, 64>}, {pipeline_mode = #tpu.pipeline_mode<synchronous>, transform_indices = @transform_2, window_bounds = array<i64: 1, 64>}, {pipeline_mode = #tpu.pipeline_mode<synchronous>, transform_indices = @transform_3, window_bounds = array<i64: 64, 10>}, {pipeline_mode = #tpu.pipeline_mode<synchronous>, transform_indices = @transform_4, window_bounds = array<i64: 1, 10>}, {transform_indices = @transform_5, window_bounds = array<i64: 16, 10>}]} {
    %c0 = arith.constant 0 : index
    %c0_0 = arith.constant 0 : index
    %0 = vector.load %arg1[%c0, %c0_0] : memref<16x1024xbf16, #tpu.memory_space<vmem>>, vector<16x1024xbf16>
    %c0_1 = arith.constant 0 : index
    %c0_2 = arith.constant 0 : index
    %1 = vector.load %arg2[%c0_1, %c0_2] : memref<1024x64xbf16, #tpu.memory_space<vmem>>, vector<1024x64xbf16>
    %cst = arith.constant dense<0.000000e+00> : vector<16x64xf32>
    %2 = tpu.matmul %0, %1, %cst {dimension_numbers = #tpu.dot_dimension_numbers<[1], [0], [0], [1], [0, 0, 1, 1], [], []>} : vector<16x1024xbf16>, vector<1024x64xbf16>, vector<16x64xf32> -> vector<16x64xf32>
    %c0_3 = arith.constant 0 : index
    %c0_4 = arith.constant 0 : index
    %3 = vector.load %arg3[%c0_3, %c0_4] : memref<1x64xf32, #tpu.memory_space<vmem>>, vector<1x64xf32>
    %4 = vector.broadcast %3 : vector<1x64xf32> to vector<16x64xf32>
    %5 = arith.addf %2, %4 : vector<16x64xf32>
    %6 = arith.truncf %5 : vector<16x64xf32> to vector<16x64xbf16>
    %c0_5 = arith.constant 0 : index
    %c0_6 = arith.constant 0 : index
    %7 = vector.load %arg4[%c0_5, %c0_6] : memref<64x10xbf16, #tpu.memory_space<vmem>>, vector<64x10xbf16>
    %cst_7 = arith.constant dense<0.000000e+00> : vector<16x10xf32>
    %8 = tpu.matmul %6, %7, %cst_7 {dimension_numbers = #tpu.dot_dimension_numbers<[1], [0], [0], [1], [0, 0, 1, 1], [], []>} : vector<16x64xbf16>, vector<64x10xbf16>, vector<16x10xf32> -> vector<16x10xf32>
    %c0_8 = arith.constant 0 : index
    %c0_9 = arith.constant 0 : index
    %9 = vector.load %arg5[%c0_8, %c0_9] : memref<1x10xf32, #tpu.memory_space<vmem>>, vector<1x10xf32>
    %10 = vector.broadcast %9 : vector<1x10xf32> to vector<16x10xf32>
    %11 = arith.addf %8, %10 : vector<16x10xf32>
    %c0_10 = arith.constant 0 : index
    %c0_11 = arith.constant 0 : index
    %12 = vector.load %arg6[%c0_10, %c0_11] : memref<16x10xf32, #tpu.memory_space<vmem>>, vector<16x10xf32>
    tpu.vector_store %arg6[%c0_10, %c0_11], %11 {strides = array<i32>} : memref<16x10xf32, #tpu.memory_space<vmem>>, vector<16x10xf32>,
    return
  }
  func.func @transform_0(%arg0: i32) -> (i32, i32) {
    %c0_i32 = arith.constant 0 : i32
    %c0_i32_0 = arith.constant 0 : i32
    return %arg0, %c0_i32 : i32, i32
  }
  func.func @transform_1(%arg0: i32) -> (i32, i32) {
    %c0_i32 = arith.constant 0 : i32
    %c0_i32_0 = arith.constant 0 : i32
    %c0_i32_1 = arith.constant 0 : i32
    return %c0_i32, %c0_i32_0 : i32, i32
  }
  func.func @transform_2(%arg0: i32) -> (i32, i32) {
    %c0_i32 = arith.constant 0 : i32
    %c0_i32_0 = arith.constant 0 : i32
    %c0_i32_1 = arith.constant 0 : i32
    return %c0_i32, %c0_i32_0 : i32, i32
  }
  func.func @transform_3(%arg0: i32) -> (i32, i32) {
    %c0_i32 = arith.constant 0 : i32
    %c0_i32_0 = arith.constant 0 : i32
    %c0_i32_1 = arith.constant 0 : i32
    return %c0_i32, %c0_i32_0 : i32, i32
  }
  func.func @transform_4(%arg0: i32) -> (i32, i32) {
    %c0_i32 = arith.constant 0 : i32
    %c0_i32_0 = arith.constant 0 : i32
    %c0_i32_1 = arith.constant 0 : i32
    return %c0_i32, %c0_i32_0 : i32, i32
  }
  func.func @transform_5(%arg0: i32) -> (i32, i32) {
    %c0_i32 = arith.constant 0 : i32
    %c0_i32_0 = arith.constant 0 : i32
    return %arg0, %c0_i32 : i32, i32
  }
}

</mosaic_0001>

<llo_original>
// kernel: model_forward.4
$region0: #{model_forward.4}
  #allocation0 [shape = 'u32[]', space=smem, size = 0x4, offset = 0x4, fixed_abs, tag = 'smem constant byte address 0x4 - core index']
  #allocation1 [shape = 'u32[144,128]{1,0:T(1,128)}', space=vmem, size = 0x12000, scoped, tag = 'internal scratch']
  %s0 = inlined_call_operand.vmem [shape: bf16[4,512,75], index: 0, kind: input, shape index: {}]
  %s1 = inlined_call_operand.vmem [shape: bf16[75,32], index: 1, kind: input, shape index: {}]
  %s2 = inlined_call_operand.vmem [shape: f32[1,32], index: 2, kind: input, shape index: {}]
  %s3 = inlined_call_operand.vmem [shape: bf16[512,32], index: 3, kind: output, shape index: {}]
  %s4 = sld [smem:[#allocation0]]
  $region86: #{model_forward.4} parent=0
    _
  %s6 = ssub.s32 1, %s4
  %s7 = scalar_select 0, %s6, %s4
  $region1: #{model_forward.4} parent=0
    #allocation2 [shape = 'u8[524288]{0}', space=vmem, size = 0x80000, scoped, tag = 'input window, operand 0']
    loop: start=0, step=1, limit=4
    $region2: #{model_forward.4} parent=1 // loop_pre_header
      _
    $region3: #{model_forward.4} parent=1 // loop_header
      %s9 = sphi 0, %s13
      %p10 = scmp.ge.s32.totalorder %s9, 4
      %s19 = sphi 0, %s21
      %s22 = sphi 0, %s19
      %s23 = sphi 0, %s22
      %s39 = sphi 0, %s23
      %s43 = sphi 0, %s43
      %s45 = sphi 0, %s43
      %s46 = sphi 0, %s45
      %s60 = sphi 0, %s46
      %s64 = sphi 0, %s64
      %s66 = sphi 0, %s64
      %s67 = sphi 0, %s66
      %s81 = sphi 0, %s67
      %s87 = sphi 0, %s89
      %s90 = sphi 0, %s87
      %s91 = sphi 0, %s90
      %s107 = sphi 0, %s91
    $region4: #{model_forward.4} parent=1 // loop_header_branch
      %12 = sbr.rel (%p10) target = $region8
    $region5: #{model_forward.4} parent=1 // loop_body
      %s14 = ssub.s32 %s9, 1
      %s15 = ssub.s32 %s9, 2
      %s16 = sadd.s32 %s9, 1
      %s17 = ssub.s32 %s9, %s16
      %p18 = scmp.eq.s32.totalorder %s17, 0
      %s20 = sadd.s32 %s19, 1
      %s21 = scalar_select %p18, %s19, %s20
      %p24 = pneg %p18
      %p25 = scmp.eq.s32.totalorder %s9, 1
      %p26 = por %p24, %p25
      %p27 = scmp.ne.s32.totalorder %s19, %s22
      %p28 = scmp.eq.s32.totalorder %s9, 0
      %p29 = por %p27, %p28
      %p30 = scmp.ne.s32.totalorder %s19, %s22
      %p31 = scmp.eq.s32.totalorder %s14, 1
      %p32 = por %p30, %p31
      %p33 = scmp.ne.s32.totalorder %s22, %s23
      %p34 = scmp.eq.s32.totalorder %s14, 0
      %p35 = por %p33, %p34
      %p36 = scmp.ne.s32.totalorder %s22, %s23
      %p37 = scmp.eq.s32.totalorder %s15, 1
      %p38 = por %p36, %p37
      %p40 = scmp.ne.s32.totalorder %s23, %s39
      %p41 = scmp.eq.s32.totalorder %s15, 0
      %p42 = por %p40, %p41
      %s44 = sadd.s32 %s43, 1
      %p47 = scmp.eq.s32.totalorder %s9, 1
      %p48 = scmp.ne.s32.totalorder %s43, %s45
      %p49 = scmp.eq.s32.totalorder %s9, 0
      %p50 = por %p48, %p49
      %p51 = scmp.ne.s32.totalorder %s43, %s45
      %p52 = scmp.eq.s32.totalorder %s14, 1
      %p53 = por %p51, %p52
      %p54 = scmp.ne.s32.totalorder %s45, %s46
      %p55 = scmp.eq.s32.totalorder %s14, 0
      %p56 = por %p54, %p55
      %p57 = scmp.ne.s32.totalorder %s45, %s46
      %p58 = scmp.eq.s32.totalorder %s15, 1
      %p59 = por %p57, %p58
      %p61 = scmp.ne.s32.totalorder %s46, %s60
      %p62 = scmp.eq.s32.totalorder %s15, 0
      %p63 = por %p61, %p62
      %s65 = sadd.s32 %s64, 1
      %p68 = scmp.eq.s32.totalorder %s9, 1
      %p69 = scmp.ne.s32.totalorder %s64, %s66
      %p70 = scmp.eq.s32.totalorder %s9, 0
      %p71 = por %p69, %p70
      %p72 = scmp.ne.s32.totalorder %s64, %s66
      %p73 = scmp.eq.s32.totalorder %s14, 1
      %p74 = por %p72, %p73
      %p75 = scmp.ne.s32.totalorder %s66, %s67
      %p76 = scmp.eq.s32.totalorder %s14, 0
      %p77 = por %p75, %p76
      %p78 = scmp.ne.s32.totalorder %s66, %s67
      %p79 = scmp.eq.s32.totalorder %s15, 1
      %p80 = por %p78, %p79
      %p82 = scmp.ne.s32.totalorder %s67, %s81
      %p83 = scmp.eq.s32.totalorder %s15, 0
      %p84 = por %p82, %p83
      %s85 = ssub.s32 %s9, %s16
      %p86 = scmp.eq.s32.totalorder %s85, 0
      %s88 = sadd.s32 %s87, 1
      %s89 = scalar_select %p86, %s87, %s88
      %p92 = pneg %p86
      %p93 = scmp.eq.s32.totalorder %s9, 1
      %p94 = por %p92, %p93
      %p95 = scmp.ne.s32.totalorder %s87, %s90
      %p96 = scmp.eq.s32.totalorder %s9, 0
      %p97 = por %p95, %p96
      %p98 = scmp.ne.s32.totalorder %s87, %s90
      %p99 = scmp.eq.s32.totalorder %s14, 1
      %p100 = por %p98, %p99
      %p101 = scmp.ne.s32.totalorder %s90, %s91
      %p102 = scmp.eq.s32.totalorder %s14, 0
      %p103 = por %p101, %p102
      %p104 = scmp.ne.s32.totalorder %s90, %s91
      %p105 = scmp.eq.s32.totalorder %s15, 1
      %p106 = por %p104, %p105
      %p108 = scmp.ne.s32.totalorder %s91, %s107
      %p109 = scmp.eq.s32.totalorder %s15, 0
      %p110 = por %p108, %p109
      %p111 = scmp.le.s32.totalorder 1, %s9
      %p112 = scmp.lt.s32.totalorder %s9, 3
      %p113 = pnand %p111, %p112
      %p114 = pneg %p113
      // Predicated region
      $region9: #{model_forward.4} parent=5 // pred_check
        _
      $region10: #{model_forward.4} parent=5 // pred_check_branch
        %116 = sbr.rel (%p113) target = $region12
      $region11: #{model_forward.4} parent=5 // pred_region
        %s117 = ssub.s32 %s9, 1
        // Predicated region
        $region13: #{model_forward.4} parent=11 // pred_check
          %p118 = pneg %p56
        $region14: #{model_forward.4} parent=11 // pred_check_branch
          %120 = sbr.rel (%p118) target = $region16
        $region15: #{model_forward.4} parent=11 // pred_region
          _
        $region16: #{model_forward.4} parent=11 // pred_fallthru
          _
        // Predicated region
        $region17: #{model_forward.4} parent=11 // pred_check
          %p121 = pneg %p77
        $region18: #{model_forward.4} parent=11 // pred_check_branch
          %123 = sbr.rel (%p121) target = $region20
        $region19: #{model_forward.4} parent=11 // pred_region
          _
        $region20: #{model_forward.4} parent=11 // pred_fallthru
          _
      $region12: #{model_forward.4} parent=5 // pred_fallthru
        _
      %p124 = scmp.lt.s32.totalorder %s9, 2
      // Predicated region
      $region21: #{model_forward.4} parent=5 // pred_check
        %p125 = pneg %p124
      $region22: #{model_forward.4} parent=5 // pred_check_branch
        %127 = sbr.rel (%p125) target = $region24
      $region23: #{model_forward.4} parent=5 // pred_region
        // Predicated region
        $region25: #{model_forward.4} parent=23 // pred_check
          %p128 = pneg %p29
        $region26: #{model_forward.4} parent=23 // pred_check_branch
          %130 = sbr.rel (%p128) target = $region28
        $region27: #{model_forward.4} parent=23 // pred_region
          %s131 = sand.u32 %s19, 1
          %s132 = sand.u32 %s19, 1
          %s133 = smul.addr %s132, 512
          %s134 = scalar_lea.vmem [#allocation2], %s133
          %s135 = smul.u32 32, %s9
          %s136 = smul.addr %s135, 4
          %s137 = scalar_lea.vmem %s0, %s136
          // Predicated region
          $region29: #{model_forward.4} parent=27 // pred_check
            _
          $region30: #{model_forward.4} parent=27 // pred_check_branch
            %139 = sbr.rel (0) target = $region32
          $region31: #{model_forward.4} parent=27 // pred_region
            // Predicated region
            $region33: #{model_forward.4} parent=31 // pred_check
              _
            $region34: #{model_forward.4} parent=31 // pred_check_branch
              %141 = sbr.rel target = $region36
            $region35: #{model_forward.4} parent=31 // pred_region
              // Predicated region
              $region48: #{model_forward.4} parent=35 // pred_check
                _
              $region49: #{model_forward.4} parent=35 // pred_check_branch
                %410 = sbr.rel (0) target = $region51
              $region50: #{model_forward.4} parent=35 // pred_region
                loop: start=0, step=1, limit=1
                $region52: #{model_forward.4} parent=50 // loop_pre_header
                  _
                $region53: #{model_forward.4} parent=50 // loop_header
                  %s412 = sphi 0, %s416
                  %p413 = scmp.ge.s32.totalorder %s412, 1
                  %s417 = sphi %s137, %s137
                  %s418 = sphi %s134, %s134
                $region54: #{model_forward.4} parent=50 // loop_header_branch
                  %415 = sbr.rel (%p413) target = $region58
                $region55: #{model_forward.4} parent=50 // loop_body
                  _
                $region56: #{model_forward.4} parent=50 // loop_footer
                  %s416 = sadd.s32 1, %s412
                $region57: #{model_forward.4} parent=50 // loop_footer_branch
                  %411 = sbr.rel target = $region53
                $region58: #{model_forward.4} parent=50 // loop_exit
                  _
                loop: start=0, step=1, limit=1
                $region59: #{model_forward.4} parent=50 // loop_pre_header
                  _
                $region60: #{model_forward.4} parent=50 // loop_header
                  %s421 = sphi 0, %s425
                  %p422 = scmp.ge.s32.totalorder %s421, 1
                  %s426 = sphi %s137, %s137
                  %s427 = sphi %s134, %s134
                $region61: #{model_forward.4} parent=50 // loop_header_branch
                  %424 = sbr.rel (%p422) target = $region65
                $region62: #{model_forward.4} parent=50 // loop_body
                  %v428 = vld [vmem:[%s426] sm:$0xf]
                  %429 = vst [vmem:[%s427] sm:$0xf] %v428
                  %v430 = vld [vmem:[%s426 + $0x4] sm:$0xf]
                  %431 = vst [vmem:[%s427 + $0x4] sm:$0xf] %v430
                  %v432 = vld [vmem:[%s426 + $0x8] sm:$0xf]
                  %433 = vst [vmem:[%s427 + $0x8] sm:$0xf] %v432
                  %v434 = vld [vmem:[%s426 + $0xc] sm:$0xf]
                  %435 = vst [vmem:[%s427 + $0xc] sm:$0xf] %v434
                  %v436 = vld [vmem:[%s426 + $0x10] sm:$0xf]
                  %437 = vst [vmem:[%s427 + $0x10] sm:$0xf] %v436
                  %v438 = vld [vmem:[%s426 + $0x14] sm:$0xf]
                  %439 = vst [vmem:[%s427 + $0x14] sm:$0xf] %v438
                  %v440 = vld [vmem:[%s426 + $0x18] sm:$0xf]
                  %441 = vst [vmem:[%s427 + $0x18] sm:$0xf] %v440
                  %v442 = vld [vmem:[%s426 + $0x1c] sm:$0xf]
                  %443 = vst [vmem:[%s427 + $0x1c] sm:$0xf] %v442
                  %v444 = vld [vmem:[%s426 + $0x20] sm:$0xf]
                  %445 = vst [vmem:[%s427 + $0x20] sm:$0xf] %v444
                  %v446 = vld [vmem:[%s426 + $0x24] sm:$0xf]
                  %447 = vst [vmem:[%s427 + $0x24] sm:$0xf] %v446
                  %v448 = vld [vmem:[%s426 + $0x28] sm:$0xf]
                  %449 = vst [vmem:[%s427 + $0x28] sm:$0xf] %v448
                  %v450 = vld [vmem:[%s426 + $0x2c] sm:$0xf]
                  %451 = vst [vmem:[%s427 + $0x2c] sm:$0xf] %v450
                  %v452 = vld [vmem:[%s426 + $0x30] sm:$0xf]
                  %453 = vst [vmem:[%s427 + $0x30] sm:$0xf] %v452
                  %v454 = vld [vmem:[%s426 + $0x34] sm:$0xf]
                  %455 = vst [vmem:[%s427 + $0x34] sm:$0xf] %v454
                  %v456 = vld [vmem:[%s426 + $0x38] sm:$0xf]
                  %457 = vst [vmem:[%s427 + $0x38] sm:$0xf] %v456
                  %v458 = vld [vmem:[%s426 + $0x3c] sm:$0xf]
                  %459 = vst [vmem:[%s427 + $0x3c] sm:$0xf] %v458
                  %v460 = vld [vmem:[%s426 + $0x40] sm:$0xf]
                  %461 = vst [vmem:[%s427 + $0x40] sm:$0xf] %v460
                  %v462 = vld [vmem:[%s426 + $0x44] sm:$0xf]
                  %463 = vst [vmem:[%s427 + $0x44] sm:$0xf] %v462
                  %v464 = vld [vmem:[%s426 + $0x48] sm:$0xf]
                  %465 = vst [vmem:[%s427 + $0x48] sm:$0xf] %v464
                  %v466 = vld [vmem:[%s426 + $0x4c] sm:$0xf]
                  %467 = vst [vmem:[%s427 + $0x4c] sm:$0xf] %v466
                  %v468 = vld [vmem:[%s426 + $0x50] sm:$0xf]
                  %469 = vst [vmem:[%s427 + $0x50] sm:$0xf] %v468
                  %v470 = vld [vmem:[%s426 + $0x54] sm:$0xf]
                  %471 = vst [vmem:[%s427 + $0x54] sm:$0xf] %v470
                  %v472 = vld [vmem:[%s426 + $0x58] sm:$0xf]
                  %473 = vst [vmem:[%s427 + $0x58] sm:$0xf] %v472
                  %v474 = vld [vmem:[%s426 + $0x5c] sm:$0xf]
                  %475 = vst [vmem:[%s427 + $0x5c] sm:$0xf] %v474
                  %v476 = vld [vmem:[%s426 + $0x60] sm:$0xf]
                  %477 = vst [vmem:[%s427 + $0x60] sm:$0xf] %v476
                  %v478 = vld [vmem:[%s426 + $0x64] sm:$0xf]
                  %479 = vst [vmem:[%s427 + $0x64] sm:$0xf] %v478
                  %v480 = vld [vmem:[%s426 + $0x68] sm:$0xf]
                  %481 = vst [vmem:[%s427 + $0x68] sm:$0xf] %v480
                  %v482 = vld [vmem:[%s426 + $0x6c] sm:$0xf]
                  %483 = vst [vmem:[%s427 + $0x6c] sm:$0xf] %v482
                  %v484 = vld [vmem:[%s426 + $0x70] sm:$0xf]
                  %485 = vst [vmem:[%s427 + $0x70] sm:$0xf] %v484
                  %v486 = vld [vmem:[%s426 + $0x74] sm:$0xf]
                  %487 = vst [vmem:[%s427 + $0x74] sm:$0xf] %v486
                  %v488 = vld [vmem:[%s426 + $0x78] sm:$0xf]
                  %489 = vst [vmem:[%s427 + $0x78] sm:$0xf] %v488
                  %v490 = vld [vmem:[%s426 + $0x7c] sm:$0xf]
                  %491 = vst [vmem:[%s427 + $0x7c] sm:$0xf] %v490
                  %v492 = vld [vmem:[%s426 + $0x100] sm:$0xf]
                  %493 = vst [vmem:[%s427 + $0x80] sm:$0xf] %v492
                  %v494 = vld [vmem:[%s426 + $0x104] sm:$0xf]
                  %495 = vst [vmem:[%s427 + $0x84] sm:$0xf] %v494
                  %v496 = vld [vmem:[%s426 + $0x108] sm:$0xf]
                  %497 = vst [vmem:[%s427 + $0x88] sm:$0xf] %v496
                  %v498 = vld [vmem:[%s426 + $0x10c] sm:$0xf]
                  %499 = vst [vmem:[%s427 + $0x8c] sm:$0xf] %v498
                  %v500 = vld [vmem:[%s426 + $0x110] sm:$0xf]
                  %501 = vst [vmem:[%s427 + $0x90] sm:$0xf] %v500
                  %v502 = vld [vmem:[%s426 + $0x114] sm:$0xf]
                  %503 = vst [vmem:[%s427 + $0x94] sm:$0xf] %v502
                  %v504 = vld [vmem:[%s426 + $0x118] sm:$0xf]
                  %505 = vst [vmem:[%s427 + $0x98] sm:$0xf] %v504
                  %v506 = vld [vmem:[%s426 + $0x11c] sm:$0xf]
                  %507 = vst [vmem:[%s427 + $0x9c] sm:$0xf] %v506
                  %v508 = vld [vmem:[%s426 + $0x120] sm:$0xf]
                  %509 = vst [vmem:[%s427 + $0xa0] sm:$0xf] %v508
                  %v510 = vld [vmem:[%s426 + $0x124] sm:$0xf]
                  %511 = vst [vmem:[%s427 + $0xa4] sm:$0xf] %v510
                  %v512 = vld [vmem:[%s426 + $0x128] sm:$0xf]
                  %513 = vst [vmem:[%s427 + $0xa8] sm:$0xf] %v512
                  %v514 = vld [vmem:[%s426 + $0x12c] sm:$0xf]
                  %515 = vst [vmem:[%s427 + $0xac] sm:$0xf] %v514
                  %v516 = vld [vmem:[%s426 + $0x130] sm:$0xf]
                  %517 = vst [vmem:[%s427 + $0xb0] sm:$0xf] %v516
                  %v518 = vld [vmem:[%s426 + $0x134] sm:$0xf]
                  %519 = vst [vmem:[%s427 + $0xb4] sm:$0xf] %v518
                  %v520 = vld [vmem:[%s426 + $0x138] sm:$0xf]
                  %521 = vst [vmem:[%s427 + $0xb8] sm:$0xf] %v520
                  %v522 = vld [vmem:[%s426 + $0x13c] sm:$0xf]
                  %523 = vst [vmem:[%s427 + $0xbc] sm:$0xf] %v522
                  %v524 = vld [vmem:[%s426 + $0x140] sm:$0xf]
                  %525 = vst [vmem:[%s427 + $0xc0] sm:$0xf] %v524
                  %v526 = vld [vmem:[%s426 + $0x144] sm:$0xf]
                  %527 = vst [vmem:[%s427 + $0xc4] sm:$0xf] %v526
                  %v528 = vld [vmem:[%s426 + $0x148] sm:$0xf]
                  %529 = vst [vmem:[%s427 + $0xc8] sm:$0xf] %v528
                  %v530 = vld [vmem:[%s426 + $0x14c] sm:$0xf]
                  %531 = vst [vmem:[%s427 + $0xcc] sm:$0xf] %v530
                  %v532 = vld [vmem:[%s426 + $0x150] sm:$0xf]
                  %533 = vst [vmem:[%s427 + $0xd0] sm:$0xf] %v532
                  %v534 = vld [vmem:[%s426 + $0x154] sm:$0xf]
                  %535 = vst [vmem:[%s427 + $0xd4] sm:$0xf] %v534
                  %v536 = vld [vmem:[%s426 + $0x158] sm:$0xf]
                  %537 = vst [vmem:[%s427 + $0xd8] sm:$0xf] %v536
                  %v538 = vld [vmem:[%s426 + $0x15c] sm:$0xf]
                  %539 = vst [vmem:[%s427 + $0xdc] sm:$0xf] %v538
                  %v540 = vld [vmem:[%s426 + $0x160] sm:$0xf]
                  %541 = vst [vmem:[%s427 + $0xe0] sm:$0xf] %v540
                  %v542 = vld [vmem:[%s426 + $0x164] sm:$0xf]
                  %543 = vst [vmem:[%s427 + $0xe4] sm:$0xf] %v542
                  %v544 = vld [vmem:[%s426 + $0x168] sm:$0xf]
                  %545 = vst [vmem:[%s427 + $0xe8] sm:$0xf] %v544
                  %v546 = vld [vmem:[%s426 + $0x16c] sm:$0xf]
                  %547 = vst [vmem:[%s427 + $0xec] sm:$0xf] %v546
                  %v548 = vld [vmem:[%s426 + $0x170] sm:$0xf]
                  %549 = vst [vmem:[%s427 + $0xf0] sm:$0xf] %v548
                  %v550 = vld [vmem:[%s426 + $0x174] sm:$0xf]
                  %551 = vst [vmem:[%s427 + $0xf4] sm:$0xf] %v550
                  %v552 = vld [vmem:[%s426 + $0x178] sm:$0xf]
                  %553 = vst [vmem:[%s427 + $0xf8] sm:$0xf] %v552
                  %v554 = vld [vmem:[%s426 + $0x17c] sm:$0xf]
                  %555 = vst [vmem:[%s427 + $0xfc] sm:$0xf] %v554
                  %v556 = vld [vmem:[%s426 + $0x200] sm:$0xf]
                  %557 = vst [vmem:[%s427 + $0x100] sm:$0xf] %v556
                  %v558 = vld [vmem:[%s426 + $0x204] sm:$0xf]
                  %559 = vst [vmem:[%s427 + $0x104] sm:$0xf] %v558
                  %v560 = vld [vmem:[%s426 + $0x208] sm:$0xf]
                  %561 = vst [vmem:[%s427 + $0x108] sm:$0xf] %v560
                  %v562 = vld [vmem:[%s426 + $0x20c] sm:$0xf]
                  %563 = vst [vmem:[%s427 + $0x10c] sm:$0xf] %v562
                  %v564 = vld [vmem:[%s426 + $0x210] sm:$0xf]
                  %565 = vst [vmem:[%s427 + $0x110] sm:$0xf] %v564
                  %v566 = vld [vmem:[%s426 + $0x214] sm:$0xf]
                  %567 = vst [vmem:[%s427 + $0x114] sm:$0xf] %v566
                  %v568 = vld [vmem:[%s426 + $0x218] sm:$0xf]
                  %569 = vst [vmem:[%s427 + $0x118] sm:$0xf] %v568
                  %v570 = vld [vmem:[%s426 + $0x21c] sm:$0xf]
                  %571 = vst [vmem:[%s427 + $0x11c] sm:$0xf] %v570
                  %v572 = vld [vmem:[%s426 + $0x220] sm:$0xf]
                  %573 = vst [vmem:[%s427 + $0x120] sm:$0xf] %v572
                  %v574 = vld [vmem:[%s426 + $0x224] sm:$0xf]
                  %575 = vst [vmem:[%s427 + $0x124] sm:$0xf] %v574
                  %v576 = vld [vmem:[%s426 + $0x228] sm:$0xf]
                  %577 = vst [vmem:[%s427 + $0x128] sm:$0xf] %v576
                  %v578 = vld [vmem:[%s426 + $0x22c] sm:$0xf]
                  %579 = vst [vmem:[%s427 + $0x12c] sm:$0xf] %v578
                  %v580 = vld [vmem:[%s426 + $0x230] sm:$0xf]
                  %581 = vst [vmem:[%s427 + $0x130] sm:$0xf] %v580
                  %v582 = vld [vmem:[%s426 + $0x234] sm:$0xf]
                  %583 = vst [vmem:[%s427 + $0x134] sm:$0xf] %v582
                  %v584 = vld [vmem:[%s426 + $0x238] sm:$0xf]
                  %585 = vst [vmem:[%s427 + $0x138] sm:$0xf] %v584
                  %v586 = vld [vmem:[%s426 + $0x23c] sm:$0xf]
                  %587 = vst [vmem:[%s427 + $0x13c] sm:$0xf] %v586
                  %v588 = vld [vmem:[%s426 + $0x240] sm:$0xf]
                  %589 = vst [vmem:[%s427 + $0x140] sm:$0xf] %v588
                  %v590 = vld [vmem:[%s426 + $0x244] sm:$0xf]
                  %591 = vst [vmem:[%s427 + $0x144] sm:$0xf] %v590
                  %v592 = vld [vmem:[%s426 + $0x248] sm:$0xf]
                  %593 = vst [vmem:[%s427 + $0x148] sm:$0xf] %v592
                  %v594 = vld [vmem:[%s426 + $0x24c] sm:$0xf]
                  %595 = vst [vmem:[%s427 + $0x14c] sm:$0xf] %v594
                  %v596 = vld [vmem:[%s426 + $0x250] sm:$0xf]
                  %597 = vst [vmem:[%s427 + $0x150] sm:$0xf] %v596
                  %v598 = vld [vmem:[%s426 + $0x254] sm:$0xf]
                  %599 = vst [vmem:[%s427 + $0x154] sm:$0xf] %v598
                  %v600 = vld [vmem:[%s426 + $0x258] sm:$0xf]
                  %601 = vst [vmem:[%s427 + $0x158] sm:$0xf] %v600
                  %v602 = vld [vmem:[%s426 + $0x25c] sm:$0xf]
                  %603 = vst [vmem:[%s427 + $0x15c] sm:$0xf] %v602
                  %v604 = vld [vmem:[%s426 + $0x260] sm:$0xf]
                  %605 = vst [vmem:[%s427 + $0x160] sm:$0xf] %v604
                  %v606 = vld [vmem:[%s426 + $0x264] sm:$0xf]
                  %607 = vst [vmem:[%s427 + $0x164] sm:$0xf] %v606
                  %v608 = vld [vmem:[%s426 + $0x268] sm:$0xf]
                  %609 = vst [vmem:[%s427 + $0x168] sm:$0xf] %v608
                  %v610 = vld [vmem:[%s426 + $0x26c] sm:$0xf]
                  %611 = vst [vmem:[%s427 + $0x16c] sm:$0xf] %v610
                  %v612 = vld [vmem:[%s426 + $0x270] sm:$0xf]
                  %613 = vst [vmem:[%s427 + $0x170] sm:$0xf] %v612
                  %v614 = vld [vmem:[%s426 + $0x274] sm:$0xf]
                  %615 = vst [vmem:[%s427 + $0x174] sm:$0xf] %v614
                  %v616 = vld [vmem:[%s426 + $0x278] sm:$0xf]
                  %617 = vst [vmem:[%s427 + $0x178] sm:$0xf] %v616
                  %v618 = vld [vmem:[%s426 + $0x27c] sm:$0xf]
                  %619 = vst [vmem:[%s427 + $0x17c] sm:$0xf] %v618
                  %v620 = vld [vmem:[%s426 + $0x300] sm:$0xf]
                  %621 = vst [vmem:[%s427 + $0x180] sm:$0xf] %v620
                  %v622 = vld [vmem:[%s426 + $0x304] sm:$0xf]
                  %623 = vst [vmem:[%s427 + $0x184] sm:$0xf] %v622
                  %v624 = vld [vmem:[%s426 + $0x308] sm:$0xf]
                  %625 = vst [vmem:[%s427 + $0x188] sm:$0xf] %v624
                  %v626 = vld [vmem:[%s426 + $0x30c] sm:$0xf]
                  %627 = vst [vmem:[%s427 + $0x18c] sm:$0xf] %v626
                  %v628 = vld [vmem:[%s426 + $0x310] sm:$0xf]
                  %629 = vst [vmem:[%s427 + $0x190] sm:$0xf] %v628
                  %v630 = vld [vmem:[%s426 + $0x314] sm:$0xf]
                  %631 = vst [vmem:[%s427 + $0x194] sm:$0xf] %v630
                  %v632 = vld [vmem:[%s426 + $0x318] sm:$0xf]
                  %633 = vst [vmem:[%s427 + $0x198] sm:$0xf] %v632
                  %v634 = vld [vmem:[%s426 + $0x31c] sm:$0xf]
                  %635 = vst [vmem:[%s427 + $0x19c] sm:$0xf] %v634
                  %v636 = vld [vmem:[%s426 + $0x320] sm:$0xf]
                  %637 = vst [vmem:[%s427 + $0x1a0] sm:$0xf] %v636
                  %v638 = vld [vmem:[%s426 + $0x324] sm:$0xf]
                  %639 = vst [vmem:[%s427 + $0x1a4] sm:$0xf] %v638
                  %v640 = vld [vmem:[%s426 + $0x328] sm:$0xf]
                  %641 = vst [vmem:[%s427 + $0x1a8] sm:$0xf] %v640
                  %v642 = vld [vmem:[%s426 + $0x32c] sm:$0xf]
                  %643 = vst [vmem:[%s427 + $0x1ac] sm:$0xf] %v642
                  %v644 = vld [vmem:[%s426 + $0x330] sm:$0xf]
                  %645 = vst [vmem:[%s427 + $0x1b0] sm:$0xf] %v644
                  %v646 = vld [vmem:[%s426 + $0x334] sm:$0xf]
                  %647 = vst [vmem:[%s427 + $0x1b4] sm:$0xf] %v646
                  %v648 = vld [vmem:[%s426 + $0x338] sm:$0xf]
                  %649 = vst [vmem:[%s427 + $0x1b8] sm:$0xf] %v648
                  %v650 = vld [vmem:[%s426 + $0x33c] sm:$0xf]
                  %651 = vst [vmem:[%s427 + $0x1bc] sm:$0xf] %v650
                  %v652 = vld [vmem:[%s426 + $0x340] sm:$0xf]
                  %653 = vst [vmem:[%s427 + $0x1c0] sm:$0xf] %v652
                  %v654 = vld [vmem:[%s426 + $0x344] sm:$0xf]
                  %655 = vst [vmem:[%s427 + $0x1c4] sm:$0xf] %v654
                  %v656 = vld [vmem:[%s426 + $0x348] sm:$0xf]
                  %657 = vst [vmem:[%s427 + $0x1c8] sm:$0xf] %v656
                  %v658 = vld [vmem:[%s426 + $0x34c] sm:$0xf]
                  %659 = vst [vmem:[%s427 + $0x1cc] sm:$0xf] %v658
                  %v660 = vld [vmem:[%s426 + $0x350] sm:$0xf]
                  %661 = vst [vmem:[%s427 + $0x1d0] sm:$0xf] %v660
                  %v662 = vld [vmem:[%s426 + $0x354] sm:$0xf]
                  %663 = vst [vmem:[%s427 + $0x1d4] sm:$0xf] %v662
                  %v664 = vld [vmem:[%s426 + $0x358] sm:$0xf]
                  %665 = vst [vmem:[%s427 + $0x1d8] sm:$0xf] %v664
                  %v666 = vld [vmem:[%s426 + $0x35c] sm:$0xf]
                  %667 = vst [vmem:[%s427 + $0x1dc] sm:$0xf] %v666
                  %v668 = vld [vmem:[%s426 + $0x360] sm:$0xf]
                  %669 = vst [vmem:[%s427 + $0x1e0] sm:$0xf] %v668
                  %v670 = vld [vmem:[%s426 + $0x364] sm:$0xf]
                  %671 = vst [vmem:[%s427 + $0x1e4] sm:$0xf] %v670
                  %v672 = vld [vmem:[%s426 + $0x368] sm:$0xf]
                  %673 = vst [vmem:[%s427 + $0x1e8] sm:$0xf] %v672
                  %v674 = vld [vmem:[%s426 + $0x36c] sm:$0xf]
                  %675 = vst [vmem:[%s427 + $0x1ec] sm:$0xf] %v674
                  %v676 = vld [vmem:[%s426 + $0x370] sm:$0xf]
                  %677 = vst [vmem:[%s427 + $0x1f0] sm:$0xf] %v676
                  %v678 = vld [vmem:[%s426 + $0x374] sm:$0xf]
                  %679 = vst [vmem:[%s427 + $0x1f4] sm:$0xf] %v678
                  %v680 = vld [vmem:[%s426 + $0x378] sm:$0xf]
                  %681 = vst [vmem:[%s427 + $0x1f8] sm:$0xf] %v680
                  %v682 = vld [vmem:[%s426 + $0x37c] sm:$0xf]
                  %683 = vst [vmem:[%s427 + $0x1fc] sm:$0xf] %v682
                $region63: #{model_forward.4} parent=50 // loop_footer
                  %s425 = sadd.s32 1, %s421
                $region64: #{model_forward.4} parent=50 // loop_footer_branch
                  %420 = sbr.rel target = $region60
                $region65: #{model_forward.4} parent=50 // loop_exit
                  _
              $region51: #{model_forward.4} parent=35 // pred_fallthru
                _
            $region36: #{model_forward.4} parent=31 // pred_fallthru
              _
            // Predicated region
            $region37: #{model_forward.4} parent=31 // pred_check
              _
            $region38: #{model_forward.4} parent=31 // pred_check_branch
              %143 = sbr.rel (0) target = $region40
            $region39: #{model_forward.4} parent=31 // pred_region
              loop: start=0, step=1, limit=1
              $region41: #{model_forward.4} parent=39 // loop_pre_header
                _
              $region42: #{model_forward.4} parent=39 // loop_header
                %s146 = sphi 0, %s150
                %p147 = scmp.ge.s32.totalorder %s146, 1
                %s151 = sphi %s137, %s137
                %s152 = sphi %s134, %s134
              $region43: #{model_forward.4} parent=39 // loop_header_branch
                %149 = sbr.rel (%p147) target = $region47
              $region44: #{model_forward.4} parent=39 // loop_body
                %v153 = vld [vmem:[%s151] sm:$0xf]
                %154 = vst [vmem:[%s152] sm:$0xf] %v153
                %v155 = vld [vmem:[%s151 + $0x4] sm:$0xf]
                %156 = vst [vmem:[%s152 + $0x4] sm:$0xf] %v155
                %v157 = vld [vmem:[%s151 + $0x8] sm:$0xf]
                %158 = vst [vmem:[%s152 + $0x8] sm:$0xf] %v157
                %v159 = vld [vmem:[%s151 + $0xc] sm:$0xf]
                %160 = vst [vmem:[%s152 + $0xc] sm:$0xf] %v159
                %v161 = vld [vmem:[%s151 + $0x10] sm:$0xf]
                %162 = vst [vmem:[%s152 + $0x10] sm:$0xf] %v161
                %v163 = vld [vmem:[%s151 + $0x14] sm:$0xf]
                %164 = vst [vmem:[%s152 + $0x14] sm:$0xf] %v163
                %v165 = vld [vmem:[%s151 + $0x18] sm:$0xf]
                %166 = vst [vmem:[%s152 + $0x18] sm:$0xf] %v165
                %v167 = vld [vmem:[%s151 + $0x1c] sm:$0xf]
                %168 = vst [vmem:[%s152 + $0x1c] sm:$0xf] %v167
                %v169 = vld [vmem:[%s151 + $0x20] sm:$0xf]
                %170 = vst [vmem:[%s152 + $0x20] sm:$0xf] %v169
                %v171 = vld [vmem:[%s151 + $0x24] sm:$0xf]
                %172 = vst [vmem:[%s152 + $0x24] sm:$0xf] %v171
                %v173 = vld [vmem:[%s151 + $0x28] sm:$0xf]
                %174 = vst [vmem:[%s152 + $0x28] sm:$0xf] %v173
                %v175 = vld [vmem:[%s151 + $0x2c] sm:$0xf]
                %176 = vst [vmem:[%s152 + $0x2c] sm:$0xf] %v175
                %v177 = vld [vmem:[%s151 + $0x30] sm:$0xf]
                %178 = vst [vmem:[%s152 + $0x30] sm:$0xf] %v177
                %v179 = vld [vmem:[%s151 + $0x34] sm:$0xf]
                %180 = vst [vmem:[%s152 + $0x34] sm:$0xf] %v179
                %v181 = vld [vmem:[%s151 + $0x38] sm:$0xf]
                %182 = vst [vmem:[%s152 + $0x38] sm:$0xf] %v181
                %v183 = vld [vmem:[%s151 + $0x3c] sm:$0xf]
                %184 = vst [vmem:[%s152 + $0x3c] sm:$0xf] %v183
                %v185 = vld [vmem:[%s151 + $0x40] sm:$0xf]
                %186 = vst [vmem:[%s152 + $0x40] sm:$0xf] %v185
                %v187 = vld [vmem:[%s151 + $0x44] sm:$0xf]
                %188 = vst [vmem:[%s152 + $0x44] sm:$0xf] %v187
                %v189 = vld [vmem:[%s151 + $0x48] sm:$0xf]
                %190 = vst [vmem:[%s152 + $0x48] sm:$0xf] %v189
                %v191 = vld [vmem:[%s151 + $0x4c] sm:$0xf]
                %192 = vst [vmem:[%s152 + $0x4c] sm:$0xf] %v191
                %v193 = vld [vmem:[%s151 + $0x50] sm:$0xf]
                %194 = vst [vmem:[%s152 + $0x50] sm:$0xf] %v193
                %v195 = vld [vmem:[%s151 + $0x54] sm:$0xf]
                %196 = vst [vmem:[%s152 + $0x54] sm:$0xf] %v195
                %v197 = vld [vmem:[%s151 + $0x58] sm:$0xf]
                %198 = vst [vmem:[%s152 + $0x58] sm:$0xf] %v197
                %v199 = vld [vmem:[%s151 + $0x5c] sm:$0xf]
                %200 = vst [vmem:[%s152 + $0x5c] sm:$0xf] %v199
                %v201 = vld [vmem:[%s151 + $0x60] sm:$0xf]
                %202 = vst [vmem:[%s152 + $0x60] sm:$0xf] %v201
                %v203 = vld [vmem:[%s151 + $0x64] sm:$0xf]
                %204 = vst [vmem:[%s152 + $0x64] sm:$0xf] %v203
                %v205 = vld [vmem:[%s151 + $0x68] sm:$0xf]
                %206 = vst [vmem:[%s152 + $0x68] sm:$0xf] %v205
                %v207 = vld [vmem:[%s151 + $0x6c] sm:$0xf]
                %208 = vst [vmem:[%s152 + $0x6c] sm:$0xf] %v207
                %v209 = vld [vmem:[%s151 + $0x70] sm:$0xf]
                %210 = vst [vmem:[%s152 + $0x70] sm:$0xf] %v209
                %v211 = vld [vmem:[%s151 + $0x74] sm:$0xf]
                %212 = vst [vmem:[%s152 + $0x74] sm:$0xf] %v211
                %v213 = vld [vmem:[%s151 + $0x78] sm:$0xf]
                %214 = vst [vmem:[%s152 + $0x78] sm:$0xf] %v213
                %v215 = vld [vmem:[%s151 + $0x7c] sm:$0xf]
                %216 = vst [vmem:[%s152 + $0x7c] sm:$0xf] %v215
                %v217 = vld [vmem:[%s151 + $0x100] sm:$0xf]
                %218 = vst [vmem:[%s152 + $0x80] sm:$0xf] %v217
                %v219 = vld [vmem:[%s151 + $0x104] sm:$0xf]
                %220 = vst [vmem:[%s152 + $0x84] sm:$0xf] %v219
                %v221 = vld [vmem:[%s151 + $0x108] sm:$0xf]
                %222 = vst [vmem:[%s152 + $0x88] sm:$0xf] %v221
                %v223 = vld [vmem:[%s151 + $0x10c] sm:$0xf]
                %224 = vst [vmem:[%s152 + $0x8c] sm:$0xf] %v223
                %v225 = vld [vmem:[%s151 + $0x110] sm:$0xf]
                %226 = vst [vmem:[%s152 + $0x90] sm:$0xf] %v225
                %v227 = vld [vmem:[%s151 + $0x114] sm:$0xf]
                %228 = vst [vmem:[%s152 + $0x94] sm:$0xf] %v227
                %v229 = vld [vmem:[%s151 + $0x118] sm:$0xf]
                %230 = vst [vmem:[%s152 + $0x98] sm:$0xf] %v229
                %v231 = vld [vmem:[%s151 + $0x11c] sm:$0xf]
                %232 = vst [vmem:[%s152 + $0x9c] sm:$0xf] %v231
                %v233 = vld [vmem:[%s151 + $0x120] sm:$0xf]
                %234 = vst [vmem:[%s152 + $0xa0] sm:$0xf] %v233
                %v235 = vld [vmem:[%s151 + $0x124] sm:$0xf]
                %236 = vst [vmem:[%s152 + $0xa4] sm:$0xf] %v235
                %v237 = vld [vmem:[%s151 + $0x128] sm:$0xf]
                %238 = vst [vmem:[%s152 + $0xa8] sm:$0xf] %v237
                %v239 = vld [vmem:[%s151 + $0x12c] sm:$0xf]
                %240 = vst [vmem:[%s152 + $0xac] sm:$0xf] %v239
                %v241 = vld [vmem:[%s151 + $0x130] sm:$0xf]
                %242 = vst [vmem:[%s152 + $0xb0] sm:$0xf] %v241
                %v243 = vld [vmem:[%s151 + $0x134] sm:$0xf]
                %244 = vst [vmem:[%s152 + $0xb4] sm:$0xf] %v243
                %v245 = vld [vmem:[%s151 + $0x138] sm:$0xf]
                %246 = vst [vmem:[%s152 + $0xb8] sm:$0xf] %v245
                %v247 = vld [vmem:[%s151 + $0x13c] sm:$0xf]
                %248 = vst [vmem:[%s152 + $0xbc] sm:$0xf] %v247
                %v249 = vld [vmem:[%s151 + $0x140] sm:$0xf]
                %250 = vst [vmem:[%s152 + $0xc0] sm:$0xf] %v249
                %v251 = vld [vmem:[%s151 + $0x144] sm:$0xf]
                %252 = vst [vmem:[%s152 + $0xc4] sm:$0xf] %v251
                %v253 = vld [vmem:[%s151 + $0x148] sm:$0xf]
                %254 = vst [vmem:[%s152 + $0xc8] sm:$0xf] %v253
                %v255 = vld [vmem:[%s151 + $0x14c] sm:$0xf]
                %256 = vst [vmem:[%s152 + $0xcc] sm:$0xf] %v255
                %v257 = vld [vmem:[%s151 + $0x150] sm:$0xf]
                %258 = vst [vmem:[%s152 + $0xd0] sm:$0xf] %v257
                %v259 = vld [vmem:[%s151 + $0x154] sm:$0xf]
                %260 = vst [vmem:[%s152 + $0xd4] sm:$0xf] %v259
                %v261 = vld [vmem:[%s151 + $0x158] sm:$0xf]
                %262 = vst [vmem:[%s152 + $0xd8] sm:$0xf] %v261
                %v263 = vld [vmem:[%s151 + $0x15c] sm:$0xf]
                %264 = vst [vmem:[%s152 + $0xdc] sm:$0xf] %v263
                %v265 = vld [vmem:[%s151 + $0x160] sm:$0xf]
                %266 = vst [vmem:[%s152 + $0xe0] sm:$0xf] %v265
                %v267 = vld [vmem:[%s151 + $0x164] sm:$0xf]
                %268 = vst [vmem:[%s152 + $0xe4] sm:$0xf] %v267
                %v269 = vld [vmem:[%s151 + $0x168] sm:$0xf]
                %270 = vst [vmem:[%s152 + $0xe8] sm:$0xf] %v269
                %v271 = vld [vmem:[%s151 + $0x16c] sm:$0xf]
                %272 = vst [vmem:[%s152 + $0xec] sm:$0xf] %v271
                %v273 = vld [vmem:[%s151 + $0x170] sm:$0xf]
                %274 = vst [vmem:[%s152 + $0xf0] sm:$0xf] %v273
                %v275 = vld [vmem:[%s151 + $0x174] sm:$0xf]
                %276 = vst [vmem:[%s152 + $0xf4] sm:$0xf] %v275
                %v277 = vld [vmem:[%s151 + $0x178] sm:$0xf]
                %278 = vst [vmem:[%s152 + $0xf8] sm:$0xf] %v277
                %v279 = vld [vmem:[%s151 + $0x17c] sm:$0xf]
                %280 = vst [vmem:[%s152 + $0xfc] sm:$0xf] %v279
                %v281 = vld [vmem:[%s151 + $0x200] sm:$0xf]
                %282 = vst [vmem:[%s152 + $0x100] sm:$0xf] %v281
                %v283 = vld [vmem:[%s151 + $0x204] sm:$0xf]
                %284 = vst [vmem:[%s152 + $0x104] sm:$0xf] %v283
                %v285 = vld [vmem:[%s151 + $0x208] sm:$0xf]
                %286 = vst [vmem:[%s152 + $0x108] sm:$0xf] %v285
                %v287 = vld [vmem:[%s151 + $0x20c] sm:$0xf]
                %288 = vst [vmem:[%s152 + $0x10c] sm:$0xf] %v287
                %v289 = vld [vmem:[%s151 + $0x210] sm:$0xf]
                %290 = vst [vmem:[%s152 + $0x110] sm:$0xf] %v289
                %v291 = vld [vmem:[%s151 + $0x214] sm:$0xf]
                %292 = vst [vmem:[%s152 + $0x114] sm:$0xf] %v291
                %v293 = vld [vmem:[%s151 + $0x218] sm:$0xf]
                %294 = vst [vmem:[%s152 + $0x118] sm:$0xf] %v293
                %v295 = vld [vmem:[%s151 + $0x21c] sm:$0xf]
                %296 = vst [vmem:[%s152 + $0x11c] sm:$0xf] %v295
                %v297 = vld [vmem:[%s151 + $0x220] sm:$0xf]
                %298 = vst [vmem:[%s152 + $0x120] sm:$0xf] %v297
                %v299 = vld [vmem:[%s151 + $0x224] sm:$0xf]
                %300 = vst [vmem:[%s152 + $0x124] sm:$0xf] %v299
                %v301 = vld [vmem:[%s151 + $0x228] sm:$0xf]
                %302 = vst [vmem:[%s152 + $0x128] sm:$0xf] %v301
                %v303 = vld [vmem:[%s151 + $0x22c] sm:$0xf]
                %304 = vst [vmem:[%s152 + $0x12c] sm:$0xf] %v303
                %v305 = vld [vmem:[%s151 + $0x230] sm:$0xf]
                %306 = vst [vmem:[%s152 + $0x130] sm:$0xf] %v305
                %v307 = vld [vmem:[%s151 + $0x234] sm:$0xf]
                %308 = vst [vmem:[%s152 + $0x134] sm:$0xf] %v307
                %v309 = vld [vmem:[%s151 + $0x238] sm:$0xf]
                %310 = vst [vmem:[%s152 + $0x138] sm:$0xf] %v309
                %v311 = vld [vmem:[%s151 + $0x23c] sm:$0xf]
                %312 = vst [vmem:[%s152 + $0x13c] sm:$0xf] %v311
                %v313 = vld [vmem:[%s151 + $0x240] sm:$0xf]
                %314 = vst [vmem:[%s152 + $0x140] sm:$0xf] %v313
                %v315 = vld [vmem:[%s151 + $0x244] sm:$0xf]
                %316 = vst [vmem:[%s152 + $0x144] sm:$0xf] %v315
                %v317 = vld [vmem:[%s151 + $0x248] sm:$0xf]
                %318 = vst [vmem:[%s152 + $0x148] sm:$0xf] %v317
                %v319 = vld [vmem:[%s151 + $0x24c] sm:$0xf]
                %320 = vst [vmem:[%s152 + $0x14c] sm:$0xf] %v319
                %v321 = vld [vmem:[%s151 + $0x250] sm:$0xf]
                %322 = vst [vmem:[%s152 + $0x150] sm:$0xf] %v321
                %v323 = vld [vmem:[%s151 + $0x254] sm:$0xf]
                %324 = vst [vmem:[%s152 + $0x154] sm:$0xf] %v323
                %v325 = vld [vmem:[%s151 + $0x258] sm:$0xf]
                %326 = vst [vmem:[%s152 + $0x158] sm:$0xf] %v325
                %v327 = vld [vmem:[%s151 + $0x25c] sm:$0xf]
                %328 = vst [vmem:[%s152 + $0x15c] sm:$0xf] %v327
                %v329 = vld [vmem:[%s151 + $0x260] sm:$0xf]
                %330 = vst [vmem:[%s152 + $0x160] sm:$0xf] %v329
                %v331 = vld [vmem:[%s151 + $0x264] sm:$0xf]
                %332 = vst [vmem:[%s152 + $0x164] sm:$0xf] %v331
                %v333 = vld [vmem:[%s151 + $0x268] sm:$0xf]
                %334 = vst [vmem:[%s152 + $0x168] sm:$0xf] %v333
                %v335 = vld [vmem:[%s151 + $0x26c] sm:$0xf]
                %336 = vst [vmem:[%s152 + $0x16c] sm:$0xf] %v335
                %v337 = vld [vmem:[%s151 + $0x270] sm:$0xf]
                %338 = vst [vmem:[%s152 + $0x170] sm:$0xf] %v337
                %v339 = vld [vmem:[%s151 + $0x274] sm:$0xf]
                %340 = vst [vmem:[%s152 + $0x174] sm:$0xf] %v339
                %v341 = vld [vmem:[%s151 + $0x278] sm:$0xf]
                %342 = vst [vmem:[%s152 + $0x178] sm:$0xf] %v341
                %v343 = vld [vmem:[%s151 + $0x27c] sm:$0xf]
                %344 = vst [vmem:[%s152 + $0x17c] sm:$0xf] %v343
                %v345 = vld [vmem:[%s151 + $0x300] sm:$0xf]
                %346 = vst [vmem:[%s152 + $0x180] sm:$0xf] %v345
                %v347 = vld [vmem:[%s151 + $0x304] sm:$0xf]
                %348 = vst [vmem:[%s152 + $0x184] sm:$0xf] %v347
                %v349 = vld [vmem:[%s151 + $0x308] sm:$0xf]
                %350 = vst [vmem:[%s152 + $0x188] sm:$0xf] %v349
                %v351 = vld [vmem:[%s151 + $0x30c] sm:$0xf]
                %352 = vst [vmem:[%s152 + $0x18c] sm:$0xf] %v351
                %v353 = vld [vmem:[%s151 + $0x310] sm:$0xf]
                %354 = vst [vmem:[%s152 + $0x190] sm:$0xf] %v353
                %v355 = vld [vmem:[%s151 + $0x314] sm:$0xf]
                %356 = vst [vmem:[%s152 + $0x194] sm:$0xf] %v355
                %v357 = vld [vmem:[%s151 + $0x318] sm:$0xf]
                %358 = vst [vmem:[%s152 + $0x198] sm:$0xf] %v357
                %v359 = vld [vmem:[%s151 + $0x31c] sm:$0xf]
                %360 = vst [vmem:[%s152 + $0x19c] sm:$0xf] %v359
                %v361 = vld [vmem:[%s151 + $0x320] sm:$0xf]
                %362 = vst [vmem:[%s152 + $0x1a0] sm:$0xf] %v361
                %v363 = vld [vmem:[%s151 + $0x324] sm:$0xf]
                %364 = vst [vmem:[%s152 + $0x1a4] sm:$0xf] %v363
                %v365 = vld [vmem:[%s151 + $0x328] sm:$0xf]
                %366 = vst [vmem:[%s152 + $0x1a8] sm:$0xf] %v365
                %v367 = vld [vmem:[%s151 + $0x32c] sm:$0xf]
                %368 = vst [vmem:[%s152 + $0x1ac] sm:$0xf] %v367
                %v369 = vld [vmem:[%s151 + $0x330] sm:$0xf]
                %370 = vst [vmem:[%s152 + $0x1b0] sm:$0xf] %v369
                %v371 = vld [vmem:[%s151 + $0x334] sm:$0xf]
                %372 = vst [vmem:[%s152 + $0x1b4] sm:$0xf] %v371
                %v373 = vld [vmem:[%s151 + $0x338] sm:$0xf]
                %374 = vst [vmem:[%s152 + $0x1b8] sm:$0xf] %v373
                %v375 = vld [vmem:[%s151 + $0x33c] sm:$0xf]
                %376 = vst [vmem:[%s152 + $0x1bc] sm:$0xf] %v375
                %v377 = vld [vmem:[%s151 + $0x340] sm:$0xf]
                %378 = vst [vmem:[%s152 + $0x1c0] sm:$0xf] %v377
                %v379 = vld [vmem:[%s151 + $0x344] sm:$0xf]
                %380 = vst [vmem:[%s152 + $0x1c4] sm:$0xf] %v379
                %v381 = vld [vmem:[%s151 + $0x348] sm:$0xf]
                %382 = vst [vmem:[%s152 + $0x1c8] sm:$0xf] %v381
                %v383 = vld [vmem:[%s151 + $0x34c] sm:$0xf]
                %384 = vst [vmem:[%s152 + $0x1cc] sm:$0xf] %v383
                %v385 = vld [vmem:[%s151 + $0x350] sm:$0xf]
                %386 = vst [vmem:[%s152 + $0x1d0] sm:$0xf] %v385
                %v387 = vld [vmem:[%s151 + $0x354] sm:$0xf]
                %388 = vst [vmem:[%s152 + $0x1d4] sm:$0xf] %v387
                %v389 = vld [vmem:[%s151 + $0x358] sm:$0xf]
                %390 = vst [vmem:[%s152 + $0x1d8] sm:$0xf] %v389
                %v391 = vld [vmem:[%s151 + $0x35c] sm:$0xf]
                %392 = vst [vmem:[%s152 + $0x1dc] sm:$0xf] %v391
                %v393 = vld [vmem:[%s151 + $0x360] sm:$0xf]
                %394 = vst [vmem:[%s152 + $0x1e0] sm:$0xf] %v393
                %v395 = vld [vmem:[%s151 + $0x364] sm:$0xf]
                %396 = vst [vmem:[%s152 + $0x1e4] sm:$0xf] %v395
                %v397 = vld [vmem:[%s151 + $0x368] sm:$0xf]
                %398 = vst [vmem:[%s152 + $0x1e8] sm:$0xf] %v397
                %v399 = vld [vmem:[%s151 + $0x36c] sm:$0xf]
                %400 = vst [vmem:[%s152 + $0x1ec] sm:$0xf] %v399
                %v401 = vld [vmem:[%s151 + $0x370] sm:$0xf]
                %402 = vst [vmem:[%s152 + $0x1f0] sm:$0xf] %v401
                %v403 = vld [vmem:[%s151 + $0x374] sm:$0xf]
                %404 = vst [vmem:[%s152 + $0x1f4] sm:$0xf] %v403
                %v405 = vld [vmem:[%s151 + $0x378] sm:$0xf]
                %406 = vst [vmem:[%s152 + $0x1f8] sm:$0xf] %v405
                %v407 = vld [vmem:[%s151 + $0x37c] sm:$0xf]
                %408 = vst [vmem:[%s152 + $0x1fc] sm:$0xf] %v407
              $region45: #{model_forward.4} parent=39 // loop_footer
                %s150 = sadd.s32 1, %s146
              $region46: #{model_forward.4} parent=39 // loop_footer_branch
                %145 = sbr.rel target = $region42
              $region47: #{model_forward.4} parent=39 // loop_exit
                _
            $region40: #{model_forward.4} parent=31 // pred_fallthru
              _
          $region32: #{model_forward.4} parent=27 // pred_fallthru
            _
          %684 = vnop
        $region28: #{model_forward.4} parent=23 // pred_fallthru
          _
      $region24: #{model_forward.4} parent=5 // pred_fallthru
        _
      %p685 = scmp.le.s32.totalorder 1, %s9
      %p686 = scmp.lt.s32.totalorder %s9, 3
      %p687 = pnand %p685, %p686
      %p688 = pneg %p687
      // Predicated region
      $region66: #{model_forward.4} parent=5 // pred_check
        _
      $region67: #{model_forward.4} parent=5 // pred_check_branch
        %690 = sbr.rel (%p687) target = $region69
      $region68: #{model_forward.4} parent=5 // pred_region
        %s691 = ssub.s32 %s9, 1
        %s692 = sand.u32 %s22, 1
        %s693 = sand.u32 %s22, 1
        %s694 = smul.addr %s693, 512
        %s695 = scalar_lea.vmem [#allocation2], %s694
        // Predicated region
        $region70: #{model_forward.4} parent=68 // pred_check
          %p696 = pneg %p35
        $region71: #{model_forward.4} parent=68 // pred_check_branch
          %698 = sbr.rel (%p696) target = $region73
        $region72: #{model_forward.4} parent=68 // pred_region
          _
        $region73: #{model_forward.4} parent=68 // pred_fallthru
          _
        %s699 = sand.u32 %s22, 1
        %s700 = sand.u32 %s22, 1
        %s701 = smul.addr %s700, 512
        %s702 = scalar_lea.vmem [#allocation2], %s701
        %p703 = pneg %p35
        %p704 = pneg %p32
        %p705 = pneg %p56
        %p706 = pneg %p53
        %p707 = pneg %p77
        %p708 = pneg %p74
        %p709 = pneg %p103
        %p710 = pneg %p100
        %s711 = smul.u32 32, %s14
        %p712 = scmp.lt.s32.totalorder %s711, 63
        %s713 = scalar_select %p712, %s711, 63
        %s714 = smul.addr %s713, 4
        %s715 = scalar_lea.vmem %s3, %s714
        %s716 = smul.u32 32, %s14
        %s717 = smul.u32 32, %s14
        %p718 = scmp.lt.s32.totalorder %s717, 63
        %s719 = scalar_select %p718, %s717, 63
        %s720 = smul.addr %s719, 4
        %s721 = scalar_lea.vmem %s3, %s720
        %s722 = smul.u32 32, %s14
        %v724 = vld [vmem:[%s695] sm:$0xf]
        %v725 = vld [vmem:[%s695 + $0x4] sm:$0xf]
        %v726 = vld [vmem:[%s695 + $0x8] sm:$0xf]
        %v727 = vld [vmem:[%s695 + $0xc] sm:$0xf]
        %v728 = vld [vmem:[%s695 + $0x10] sm:$0xf]
        %v729 = vld [vmem:[%s695 + $0x14] sm:$0xf]
        %v730 = vld [vmem:[%s695 + $0x18] sm:$0xf]
        %v731 = vld [vmem:[%s695 + $0x1c] sm:$0xf]
        %v732 = vld [vmem:[%s695 + $0x20] sm:$0xf]
        %v733 = vld [vmem:[%s695 + $0x24] sm:$0xf]
        %v734 = vld [vmem:[%s695 + $0x28] sm:$0xf]
        %v735 = vld [vmem:[%s695 + $0x2c] sm:$0xf]
        %v736 = vld [vmem:[%s695 + $0x30] sm:$0xf]
        %v737 = vld [vmem:[%s695 + $0x34] sm:$0xf]
        %v738 = vld [vmem:[%s695 + $0x38] sm:$0xf]
        %v739 = vld [vmem:[%s695 + $0x3c] sm:$0xf]
        %v740 = vld [vmem:[%s695 + $0x40] sm:$0xf]
        %v741 = vld [vmem:[%s695 + $0x44] sm:$0xf]
        %v742 = vld [vmem:[%s695 + $0x48] sm:$0xf]
        %v743 = vld [vmem:[%s695 + $0x4c] sm:$0xf]
        %v744 = vld [vmem:[%s695 + $0x50] sm:$0xf]
        %v745 = vld [vmem:[%s695 + $0x54] sm:$0xf]
        %v746 = vld [vmem:[%s695 + $0x58] sm:$0xf]
        %v747 = vld [vmem:[%s695 + $0x5c] sm:$0xf]
        %v748 = vld [vmem:[%s695 + $0x60] sm:$0xf]
        %v749 = vld [vmem:[%s695 + $0x64] sm:$0xf]
        %v750 = vld [vmem:[%s695 + $0x68] sm:$0xf]
        %v751 = vld [vmem:[%s695 + $0x6c] sm:$0xf]
        %v752 = vld [vmem:[%s695 + $0x70] sm:$0xf]
        %v753 = vld [vmem:[%s695 + $0x74] sm:$0xf]
        %v754 = vld [vmem:[%s695 + $0x78] sm:$0xf]
        %v755 = vld [vmem:[%s695 + $0x7c] sm:$0xf]
        %v756 = vld [vmem:[%s695 + $0x80] sm:$0xf]
        %v757 = vld [vmem:[%s695 + $0x84] sm:$0xf]
        %v758 = vld [vmem:[%s695 + $0x88] sm:$0xf]
        %v759 = vld [vmem:[%s695 + $0x8c] sm:$0xf]
        %v760 = vld [vmem:[%s695 + $0x90] sm:$0xf]
        %v761 = vld [vmem:[%s695 + $0x94] sm:$0xf]
        %v762 = vld [vmem:[%s695 + $0x98] sm:$0xf]
        %v763 = vld [vmem:[%s695 + $0x9c] sm:$0xf]
        %v764 = vld [vmem:[%s695 + $0xa0] sm:$0xf]
        %v765 = vld [vmem:[%s695 + $0xa4] sm:$0xf]
        %v766 = vld [vmem:[%s695 + $0xa8] sm:$0xf]
        %v767 = vld [vmem:[%s695 + $0xac] sm:$0xf]
        %v768 = vld [vmem:[%s695 + $0xb0] sm:$0xf]
        %v769 = vld [vmem:[%s695 + $0xb4] sm:$0xf]
        %v770 = vld [vmem:[%s695 + $0xb8] sm:$0xf]
        %v771 = vld [vmem:[%s695 + $0xbc] sm:$0xf]
        %v772 = vld [vmem:[%s695 + $0xc0] sm:$0xf]
        %v773 = vld [vmem:[%s695 + $0xc4] sm:$0xf]
        %v774 = vld [vmem:[%s695 + $0xc8] sm:$0xf]
        %v775 = vld [vmem:[%s695 + $0xcc] sm:$0xf]
        %v776 = vld [vmem:[%s695 + $0xd0] sm:$0xf]
        %v777 = vld [vmem:[%s695 + $0xd4] sm:$0xf]
        %v778 = vld [vmem:[%s695 + $0xd8] sm:$0xf]
        %v779 = vld [vmem:[%s695 + $0xdc] sm:$0xf]
        %v780 = vld [vmem:[%s695 + $0xe0] sm:$0xf]
        %v781 = vld [vmem:[%s695 + $0xe4] sm:$0xf]
        %v782 = vld [vmem:[%s695 + $0xe8] sm:$0xf]
        %v783 = vld [vmem:[%s695 + $0xec] sm:$0xf]
        %v784 = vld [vmem:[%s695 + $0xf0] sm:$0xf]
        %v785 = vld [vmem:[%s695 + $0xf4] sm:$0xf]
        %v786 = vld [vmem:[%s695 + $0xf8] sm:$0xf]
        %v787 = vld [vmem:[%s695 + $0xfc] sm:$0xf]
        %v788 = vld [vmem:[%s695 + $0x100] sm:$0xf]
        %v789 = vld [vmem:[%s695 + $0x104] sm:$0xf]
        %v790 = vld [vmem:[%s695 + $0x108] sm:$0xf]
        %v791 = vld [vmem:[%s695 + $0x10c] sm:$0xf]
        %v792 = vld [vmem:[%s695 + $0x110] sm:$0xf]
        %v793 = vld [vmem:[%s695 + $0x114] sm:$0xf]
        %v794 = vld [vmem:[%s695 + $0x118] sm:$0xf]
        %v795 = vld [vmem:[%s695 + $0x11c] sm:$0xf]
        %v796 = vld [vmem:[%s695 + $0x120] sm:$0xf]
        %v797 = vld [vmem:[%s695 + $0x124] sm:$0xf]
        %v798 = vld [vmem:[%s695 + $0x128] sm:$0xf]
        %v799 = vld [vmem:[%s695 + $0x12c] sm:$0xf]
        %v800 = vld [vmem:[%s695 + $0x130] sm:$0xf]
        %v801 = vld [vmem:[%s695 + $0x134] sm:$0xf]
        %v802 = vld [vmem:[%s695 + $0x138] sm:$0xf]
        %v803 = vld [vmem:[%s695 + $0x13c] sm:$0xf]
        %v804 = vld [vmem:[%s695 + $0x140] sm:$0xf]
        %v805 = vld [vmem:[%s695 + $0x144] sm:$0xf]
        %v806 = vld [vmem:[%s695 + $0x148] sm:$0xf]
        %v807 = vld [vmem:[%s695 + $0x14c] sm:$0xf]
        %v808 = vld [vmem:[%s695 + $0x150] sm:$0xf]
        %v809 = vld [vmem:[%s695 + $0x154] sm:$0xf]
        %v810 = vld [vmem:[%s695 + $0x158] sm:$0xf]
        %v811 = vld [vmem:[%s695 + $0x15c] sm:$0xf]
        %v812 = vld [vmem:[%s695 + $0x160] sm:$0xf]
        %v813 = vld [vmem:[%s695 + $0x164] sm:$0xf]
        %v814 = vld [vmem:[%s695 + $0x168] sm:$0xf]
        %v815 = vld [vmem:[%s695 + $0x16c] sm:$0xf]
        %v816 = vld [vmem:[%s695 + $0x170] sm:$0xf]
        %v817 = vld [vmem:[%s695 + $0x174] sm:$0xf]
        %v818 = vld [vmem:[%s695 + $0x178] sm:$0xf]
        %v819 = vld [vmem:[%s695 + $0x17c] sm:$0xf]
        %v820 = vld [vmem:[%s695 + $0x180] sm:$0xf]
        %v821 = vld [vmem:[%s695 + $0x184] sm:$0xf]
        %v822 = vld [vmem:[%s695 + $0x188] sm:$0xf]
        %v823 = vld [vmem:[%s695 + $0x18c] sm:$0xf]
        %v824 = vld [vmem:[%s695 + $0x190] sm:$0xf]
        %v825 = vld [vmem:[%s695 + $0x194] sm:$0xf]
        %v826 = vld [vmem:[%s695 + $0x198] sm:$0xf]
        %v827 = vld [vmem:[%s695 + $0x19c] sm:$0xf]
        %v828 = vld [vmem:[%s695 + $0x1a0] sm:$0xf]
        %v829 = vld [vmem:[%s695 + $0x1a4] sm:$0xf]
        %v830 = vld [vmem:[%s695 + $0x1a8] sm:$0xf]
        %v831 = vld [vmem:[%s695 + $0x1ac] sm:$0xf]
        %v832 = vld [vmem:[%s695 + $0x1b0] sm:$0xf]
        %v833 = vld [vmem:[%s695 + $0x1b4] sm:$0xf]
        %v834 = vld [vmem:[%s695 + $0x1b8] sm:$0xf]
        %v835 = vld [vmem:[%s695 + $0x1bc] sm:$0xf]
        %v836 = vld [vmem:[%s695 + $0x1c0] sm:$0xf]
        %v837 = vld [vmem:[%s695 + $0x1c4] sm:$0xf]
        %v838 = vld [vmem:[%s695 + $0x1c8] sm:$0xf]
        %v839 = vld [vmem:[%s695 + $0x1cc] sm:$0xf]
        %v840 = vld [vmem:[%s695 + $0x1d0] sm:$0xf]
        %v841 = vld [vmem:[%s695 + $0x1d4] sm:$0xf]
        %v842 = vld [vmem:[%s695 + $0x1d8] sm:$0xf]
        %v843 = vld [vmem:[%s695 + $0x1dc] sm:$0xf]
        %v844 = vld [vmem:[%s695 + $0x1e0] sm:$0xf]
        %v845 = vld [vmem:[%s695 + $0x1e4] sm:$0xf]
        %v846 = vld [vmem:[%s695 + $0x1e8] sm:$0xf]
        %v847 = vld [vmem:[%s695 + $0x1ec] sm:$0xf]
        %v848 = vld [vmem:[%s695 + $0x1f0] sm:$0xf]
        %v849 = vld [vmem:[%s695 + $0x1f4] sm:$0xf]
        %v850 = vld [vmem:[%s695 + $0x1f8] sm:$0xf]
        %v851 = vld [vmem:[%s695 + $0x1fc] sm:$0xf]
        %v852 = vld [vmem:[%s1] sm:$0xf]
        %v853 = vld [vmem:[%s1 + $0x4] sm:$0xf]
        %v854 = vld [vmem:[%s1 + $0x8] sm:$0xf]
        %v855 = vld [vmem:[%s1 + $0xc] sm:$0xf]
        %v856 = vld [vmem:[%s1 + $0x10] sm:$0xf]
        %v857 = vld [vmem:[%s1 + $0x14] sm:$0xf]
        %v858 = vld [vmem:[%s1 + $0x18] sm:$0xf]
        %v859 = vld [vmem:[%s1 + $0x1c] sm:$0xf]
        %v860 = vld [vmem:[%s1 + $0x20] sm:$0xf]
        %v861 = vld [vmem:[%s1 + $0x24] sm:$0x3]
        %v990 = vunpack.c.l.b16 %v724
        %v991 = vunpack.c.l.b16 %v725
        %v992 = vunpack.c.l.b16 %v726
        %v993 = vunpack.c.l.b16 %v727
        %v994 = vunpack.c.l.b16 %v728
        %v995 = vunpack.c.l.b16 %v729
        %v996 = vunpack.c.l.b16 %v730
        %v997 = vunpack.c.l.b16 %v731
        %v998 = vunpack.c.l.b16 %v732
        %v999 = vunpack.c.l.b16 %v733
        %v1000 = vunpack.c.l.b16 %v734
        %v1001 = vunpack.c.l.b16 %v735
        %v1002 = vunpack.c.l.b16 %v736
        %v1003 = vunpack.c.l.b16 %v737
        %v1004 = vunpack.c.l.b16 %v738
        %v1005 = vunpack.c.l.b16 %v739
        %v1006 = vunpack.c.l.b16 %v740
        %v1007 = vunpack.c.l.b16 %v741
        %v1008 = vunpack.c.l.b16 %v742
        %v1009 = vunpack.c.l.b16 %v743
        %v1010 = vunpack.c.l.b16 %v744
        %v1011 = vunpack.c.l.b16 %v745
        %v1012 = vunpack.c.l.b16 %v746
        %v1013 = vunpack.c.l.b16 %v747
        %v1014 = vunpack.c.l.b16 %v748
        %v1015 = vunpack.c.l.b16 %v749
        %v1016 = vunpack.c.l.b16 %v750
        %v1017 = vunpack.c.l.b16 %v751
        %v1018 = vunpack.c.l.b16 %v752
        %v1019 = vunpack.c.l.b16 %v753
        %v1020 = vunpack.c.l.b16 %v754
        %v1021 = vunpack.c.l.b16 %v755
        %v1022 = vunpack.c.l.b16 %v756
        %v1023 = vunpack.c.l.b16 %v757
        %v1024 = vunpack.c.l.b16 %v758
        %v1025 = vunpack.c.l.b16 %v759
        %v1026 = vunpack.c.l.b16 %v760
        %v1027 = vunpack.c.l.b16 %v761
        %v1028 = vunpack.c.l.b16 %v762
        %v1029 = vunpack.c.l.b16 %v763
        %v1030 = vunpack.c.l.b16 %v764
        %v1031 = vunpack.c.l.b16 %v765
        %v1032 = vunpack.c.l.b16 %v766
        %v1033 = vunpack.c.l.b16 %v767
        %v1034 = vunpack.c.l.b16 %v768
        %v1035 = vunpack.c.l.b16 %v769
        %v1036 = vunpack.c.l.b16 %v770
        %v1037 = vunpack.c.l.b16 %v771
        %v1038 = vunpack.c.l.b16 %v772
        %v1039 = vunpack.c.l.b16 %v773
        %v1040 = vunpack.c.l.b16 %v774
        %v1041 = vunpack.c.l.b16 %v775
        %v1042 = vunpack.c.l.b16 %v776
        %v1043 = vunpack.c.l.b16 %v777
        %v1044 = vunpack.c.l.b16 %v778
        %v1045 = vunpack.c.l.b16 %v779
        %v1046 = vunpack.c.l.b16 %v780
        %v1047 = vunpack.c.l.b16 %v781
        %v1048 = vunpack.c.l.b16 %v782
        %v1049 = vunpack.c.l.b16 %v783
        %v1050 = vunpack.c.l.b16 %v784
        %v1051 = vunpack.c.l.b16 %v785
        %v1052 = vunpack.c.l.b16 %v786
        %v1053 = vunpack.c.l.b16 %v787
        %v1054 = vunpack.c.l.b16 %v788
        %v1055 = vunpack.c.l.b16 %v789
        %v1056 = vunpack.c.l.b16 %v790
        %v1057 = vunpack.c.l.b16 %v791
        %v1058 = vunpack.c.l.b16 %v792
        %v1059 = vunpack.c.l.b16 %v793
        %v1060 = vunpack.c.l.b16 %v794
        %v1061 = vunpack.c.l.b16 %v795
        %v1062 = vunpack.c.l.b16 %v796
        %v1063 = vunpack.c.l.b16 %v797
        %v1064 = vunpack.c.l.b16 %v798
        %v1065 = vunpack.c.l.b16 %v799
        %v1066 = vunpack.c.l.b16 %v800
        %v1067 = vunpack.c.l.b16 %v801
        %v1068 = vunpack.c.l.b16 %v802
        %v1069 = vunpack.c.l.b16 %v803
        %v1070 = vunpack.c.l.b16 %v804
        %v1071 = vunpack.c.l.b16 %v805
        %v1072 = vunpack.c.l.b16 %v806
        %v1073 = vunpack.c.l.b16 %v807
        %v1074 = vunpack.c.l.b16 %v808
        %v1075 = vunpack.c.l.b16 %v809
        %v1076 = vunpack.c.l.b16 %v810
        %v1077 = vunpack.c.l.b16 %v811
        %v1078 = vunpack.c.l.b16 %v812
        %v1079 = vunpack.c.l.b16 %v813
        %v1080 = vunpack.c.l.b16 %v814
        %v1081 = vunpack.c.l.b16 %v815
        %v1082 = vunpack.c.l.b16 %v816
        %v1083 = vunpack.c.l.b16 %v817
        %v1084 = vunpack.c.l.b16 %v818
        %v1085 = vunpack.c.l.b16 %v819
        %v1086 = vunpack.c.l.b16 %v820
        %v1087 = vunpack.c.l.b16 %v821
        %v1088 = vunpack.c.l.b16 %v822
        %v1089 = vunpack.c.l.b16 %v823
        %v1090 = vunpack.c.l.b16 %v824
        %v1091 = vunpack.c.l.b16 %v825
        %v1092 = vunpack.c.l.b16 %v826
        %v1093 = vunpack.c.l.b16 %v827
        %v1094 = vunpack.c.l.b16 %v828
        %v1095 = vunpack.c.l.b16 %v829
        %v1096 = vunpack.c.l.b16 %v830
        %v1097 = vunpack.c.l.b16 %v831
        %v1098 = vunpack.c.l.b16 %v832
        %v1099 = vunpack.c.l.b16 %v833
        %v1100 = vunpack.c.l.b16 %v834
        %v1101 = vunpack.c.l.b16 %v835
        %v1102 = vunpack.c.l.b16 %v836
        %v1103 = vunpack.c.l.b16 %v837
        %v1104 = vunpack.c.l.b16 %v838
        %v1105 = vunpack.c.l.b16 %v839
        %v1106 = vunpack.c.l.b16 %v840
        %v1107 = vunpack.c.l.b16 %v841
        %v1108 = vunpack.c.l.b16 %v842
        %v1109 = vunpack.c.l.b16 %v843
        %v1110 = vunpack.c.l.b16 %v844
        %v1111 = vunpack.c.l.b16 %v845
        %v1112 = vunpack.c.l.b16 %v846
        %v1113 = vunpack.c.l.b16 %v847
        %v1114 = vunpack.c.l.b16 %v848
        %v1115 = vunpack.c.l.b16 %v849
        %v1116 = vunpack.c.l.b16 %v850
        %v1117 = vunpack.c.l.b16 %v851
        %v1118 = vpack.c.b16 %v991, %v990
        %v1119 = vpack.c.b16 %v993, %v992
        %v1120 = vpack.c.b16 %v995, %v994
        %v1121 = vpack.c.b16 %v997, %v996
        %v1122 = vpack.c.b16 %v999, %v998
        %v1123 = vpack.c.b16 %v1001, %v1000
        %v1124 = vpack.c.b16 %v1003, %v1002
        %v1125 = vpack.c.b16 %v1005, %v1004
        %v1126 = vpack.c.b16 %v1007, %v1006
        %v1127 = vpack.c.b16 %v1009, %v1008
        %v1128 = vpack.c.b16 %v1011, %v1010
        %v1129 = vpack.c.b16 %v1013, %v1012
        %v1130 = vpack.c.b16 %v1015, %v1014
        %v1131 = vpack.c.b16 %v1017, %v1016
        %v1132 = vpack.c.b16 %v1019, %v1018
        %v1133 = vpack.c.b16 %v1021, %v1020
        %v1134 = vpack.c.b16 %v1023, %v1022
        %v1135 = vpack.c.b16 %v1025, %v1024
        %v1136 = vpack.c.b16 %v1027, %v1026
        %v1137 = vpack.c.b16 %v1029, %v1028
        %v1138 = vpack.c.b16 %v1031, %v1030
        %v1139 = vpack.c.b16 %v1033, %v1032
        %v1140 = vpack.c.b16 %v1035, %v1034
        %v1141 = vpack.c.b16 %v1037, %v1036
        %v1142 = vpack.c.b16 %v1039, %v1038
        %v1143 = vpack.c.b16 %v1041, %v1040
        %v1144 = vpack.c.b16 %v1043, %v1042
        %v1145 = vpack.c.b16 %v1045, %v1044
        %v1146 = vpack.c.b16 %v1047, %v1046
        %v1147 = vpack.c.b16 %v1049, %v1048
        %v1148 = vpack.c.b16 %v1051, %v1050
        %v1149 = vpack.c.b16 %v1053, %v1052
        %v1150 = vpack.c.b16 %v1055, %v1054
        %v1151 = vpack.c.b16 %v1057, %v1056
        %v1152 = vpack.c.b16 %v1059, %v1058
        %v1153 = vpack.c.b16 %v1061, %v1060
        %v1154 = vpack.c.b16 %v1063, %v1062
        %v1155 = vpack.c.b16 %v1065, %v1064
        %v1156 = vpack.c.b16 %v1067, %v1066
        %v1157 = vpack.c.b16 %v1069, %v1068
        %v1158 = vpack.c.b16 %v1071, %v1070
        %v1159 = vpack.c.b16 %v1073, %v1072
        %v1160 = vpack.c.b16 %v1075, %v1074
        %v1161 = vpack.c.b16 %v1077, %v1076
        %v1162 = vpack.c.b16 %v1079, %v1078
        %v1163 = vpack.c.b16 %v1081, %v1080
        %v1164 = vpack.c.b16 %v1083, %v1082
        %v1165 = vpack.c.b16 %v1085, %v1084
        %v1166 = vpack.c.b16 %v1087, %v1086
        %v1167 = vpack.c.b16 %v1089, %v1088
        %v1168 = vpack.c.b16 %v1091, %v1090
        %v1169 = vpack.c.b16 %v1093, %v1092
        %v1170 = vpack.c.b16 %v1095, %v1094
        %v1171 = vpack.c.b16 %v1097, %v1096
        %v1172 = vpack.c.b16 %v1099, %v1098
        %v1173 = vpack.c.b16 %v1101, %v1100
        %v1174 = vpack.c.b16 %v1103, %v1102
        %v1175 = vpack.c.b16 %v1105, %v1104
        %v1176 = vpack.c.b16 %v1107, %v1106
        %v1177 = vpack.c.b16 %v1109, %v1108
        %v1178 = vpack.c.b16 %v1111, %v1110
        %v1179 = vpack.c.b16 %v1113, %v1112
        %v1180 = vpack.c.b16 %v1115, %v1114
        %v1181 = vpack.c.b16 %v1117, %v1116
        %v1192 = vunpack.c.l.b16 %v852
        %v1193 = vunpack.c.l.b16 %v853
        %v1194 = vunpack.c.l.b16 %v854
        %v1195 = vunpack.c.l.b16 %v855
        %v1196 = vunpack.c.l.b16 %v856
        %v1197 = vunpack.c.l.b16 %v857
        %v1198 = vunpack.c.l.b16 %v858
        %v1199 = vunpack.c.l.b16 %v859
        %v1200 = vunpack.c.l.b16 %v860
        %v1201 = vunpack.c.l.b16 %v861
        %v1202 = vpack.c.b16 %v1193, %v1192
        %v1203 = vpack.c.b16 %v1195, %v1194
        %v1204 = vpack.c.b16 %v1197, %v1196
        %v1205 = vpack.c.b16 %v1199, %v1198
        %v1206 = vpack.c.b16 %v1201, %v1200
        %vm1211 = vcmask 613376
        %v1213 = vsel %vm1211, %v1118, 0
        %v1216 = vsel %vm1211, %v1119, 0
        %v1219 = vsel %vm1211, %v1120, 0
        %v1222 = vsel %vm1211, %v1121, 0
        %v1225 = vsel %vm1211, %v1122, 0
        %v1228 = vsel %vm1211, %v1123, 0
        %v1231 = vsel %vm1211, %v1124, 0
        %v1234 = vsel %vm1211, %v1125, 0
        %v1237 = vsel %vm1211, %v1126, 0
        %v1240 = vsel %vm1211, %v1127, 0
        %v1243 = vsel %vm1211, %v1128, 0
        %v1246 = vsel %vm1211, %v1129, 0
        %v1249 = vsel %vm1211, %v1130, 0
        %v1252 = vsel %vm1211, %v1131, 0
        %v1255 = vsel %vm1211, %v1132, 0
        %v1258 = vsel %vm1211, %v1133, 0
        %v1261 = vsel %vm1211, %v1134, 0
        %v1264 = vsel %vm1211, %v1135, 0
        %v1267 = vsel %vm1211, %v1136, 0
        %v1270 = vsel %vm1211, %v1137, 0
        %v1273 = vsel %vm1211, %v1138, 0
        %v1276 = vsel %vm1211, %v1139, 0
        %v1279 = vsel %vm1211, %v1140, 0
        %v1282 = vsel %vm1211, %v1141, 0
        %v1285 = vsel %vm1211, %v1142, 0
        %v1288 = vsel %vm1211, %v1143, 0
        %v1291 = vsel %vm1211, %v1144, 0
        %v1294 = vsel %vm1211, %v1145, 0
        %v1297 = vsel %vm1211, %v1146, 0
        %v1300 = vsel %vm1211, %v1147, 0
        %v1303 = vsel %vm1211, %v1148, 0
        %v1306 = vsel %vm1211, %v1149, 0
        %v1309 = vsel %vm1211, %v1150, 0
        %v1312 = vsel %vm1211, %v1151, 0
        %v1315 = vsel %vm1211, %v1152, 0
        %v1318 = vsel %vm1211, %v1153, 0
        %v1321 = vsel %vm1211, %v1154, 0
        %v1324 = vsel %vm1211, %v1155, 0
        %v1327 = vsel %vm1211, %v1156, 0
        %v1330 = vsel %vm1211, %v1157, 0
        %v1333 = vsel %vm1211, %v1158, 0
        %v1336 = vsel %vm1211, %v1159, 0
        %v1339 = vsel %vm1211, %v1160, 0
        %v1342 = vsel %vm1211, %v1161, 0
        %v1345 = vsel %vm1211, %v1162, 0
        %v1348 = vsel %vm1211, %v1163, 0
        %v1351 = vsel %vm1211, %v1164, 0
        %v1354 = vsel %vm1211, %v1165, 0
        %v1357 = vsel %vm1211, %v1166, 0
        %v1360 = vsel %vm1211, %v1167, 0
        %v1363 = vsel %vm1211, %v1168, 0
        %v1366 = vsel %vm1211, %v1169, 0
        %v1369 = vsel %vm1211, %v1170, 0
        %v1372 = vsel %vm1211, %v1171, 0
        %v1375 = vsel %vm1211, %v1172, 0
        %v1378 = vsel %vm1211, %v1173, 0
        %v1381 = vsel %vm1211, %v1174, 0
        %v1384 = vsel %vm1211, %v1175, 0
        %v1387 = vsel %vm1211, %v1176, 0
        %v1390 = vsel %vm1211, %v1177, 0
        %v1393 = vsel %vm1211, %v1178, 0
        %v1396 = vsel %vm1211, %v1179, 0
        %v1399 = vsel %vm1211, %v1180, 0
        %v1402 = vsel %vm1211, %v1181, 0
        %vm1404 = vcmask 1044480
        %vm1405 = vcmask 1045504
        %v1406 = vsel %vm1404, 4294967295, 65535
        %v1407 = vsel %vm1405, %v1406, 0
        %v1409 = vand.u32 %v1206, %v1407
        %1411 = vmatprep.subr.bf16.mxu0 0
        %1412 = vmatpush1.bf16.msra.mxu0 %v1202
        %1413 = vmatprep.subr.bf16.mxu0 0
        %1414 = vmatpush1.bf16.msra.mxu0 %v1203
        %1415 = vmatprep.subr.bf16.mxu0 0
        %1416 = vmatpush1.bf16.msra.mxu0 %v1204
        %1417 = vmatprep.subr.bf16.mxu0 0
        %1418 = vmatpush1.bf16.msra.mxu0 %v1205
        %1419 = vmatprep.subr.bf16.mxu0 0
        %1420 = vmatpush1.bf16.msra.mxu0 %v1409
        %1421 = vmatprep.subr.bf16.mxu0 0
        %1422 = vmatpush1.bf16.msra.mxu0 0
        %1423 = vmatprep.subr.bf16.mxu0 0
        %1424 = vmatpush1.bf16.msra.mxu0 0
        %1425 = vmatprep.subr.bf16.mxu0 0
        %1426 = vmatpush1.bf16.msra.mxu0 0
        %1427 = vmatprep.subr.bf16.mxu0 0
        %1428 = vmatpush1.bf16.msra.mxu0 0
        %1429 = vmatprep.subr.bf16.mxu0 0
        %1430 = vmatpush1.bf16.msra.mxu0 0
        %1431 = vmatprep.subr.bf16.mxu0 0
        %1432 = vmatpush1.bf16.msra.mxu0 0
        %1433 = vmatprep.subr.bf16.mxu0 0
        %1434 = vmatpush1.bf16.msra.mxu0 0
        %1435 = vmatprep.subr.bf16.mxu0 0
        %1436 = vmatpush1.bf16.msra.mxu0 0
        %1437 = vmatprep.subr.bf16.mxu0 0
        %1438 = vmatpush1.bf16.msra.mxu0 0
        %1439 = vmatprep.subr.bf16.mxu0 0
        %1440 = vmatpush1.bf16.msra.mxu0 0
        %1441 = vmatprep.subr.bf16.mxu0 0
        %1442 = vmatpush1.bf16.msra.mxu0 0
        %1443 = vmatprep.mubr.bf16.mxu0 0
        %1444 = vmatmul.mubr.bf16.gmra.mrb[0].mxu0 %v1213
        %v1445 = vpop.f32.mrb[0].mxu0
        %v1446 = vadd.f32 0.0, %v1445
        %v1447 = vpop.f32.mrb[0].mxu0
        %v1448 = vpop.f32.mrb[0].mxu0
        %v1449 = vadd.f32 0.0, %v1448
        %v1450 = vpop.f32.mrb[0].mxu0
        %1451 = vmatprep.mubr.bf16.mxu0 0
        %1452 = vmatmul.mubr.bf16.gmra.mrb[0].mxu0 %v1216
        %v1453 = vpop.f32.mrb[0].mxu0
        %v1454 = vadd.f32 0.0, %v1453
        %v1455 = vpop.f32.mrb[0].mxu0
        %v1456 = vpop.f32.mrb[0].mxu0
        %v1457 = vadd.f32 0.0, %v1456
        %v1458 = vpop.f32.mrb[0].mxu0
        %1459 = vmatprep.mubr.bf16.mxu0 0
        %1460 = vmatmul.mubr.bf16.gmra.mrb[0].mxu0 %v1219
        %v1461 = vpop.f32.mrb[0].mxu0
        %v1462 = vadd.f32 0.0, %v1461
        %v1463 = vpop.f32.mrb[0].mxu0
        %v1464 = vpop.f32.mrb[0].mxu0
        %v1465 = vadd.f32 0.0, %v1464
        %v1466 = vpop.f32.mrb[0].mxu0
        %1467 = vmatprep.mubr.bf16.mxu0 0
        %1468 = vmatmul.mubr.bf16.gmra.mrb[0].mxu0 %v1222
        %v1469 = vpop.f32.mrb[0].mxu0
        %v1470 = vadd.f32 0.0, %v1469
        %v1471 = vpop.f32.mrb[0].mxu0
        %v1472 = vpop.f32.mrb[0].mxu0
        %v1473 = vadd.f32 0.0, %v1472
        %v1474 = vpop.f32.mrb[0].mxu0
        %1475 = vmatprep.mubr.bf16.mxu0 0
        %1476 = vmatmul.mubr.bf16.gmra.mrb[0].mxu0 %v1225
        %v1477 = vpop.f32.mrb[0].mxu0
        %v1478 = vadd.f32 0.0, %v1477
        %v1479 = vpop.f32.mrb[0].mxu0
        %v1480 = vpop.f32.mrb[0].mxu0
        %v1481 = vadd.f32 0.0, %v1480
        %v1482 = vpop.f32.mrb[0].mxu0
        %1483 = vmatprep.mubr.bf16.mxu0 0
        %1484 = vmatmul.mubr.bf16.gmra.mrb[0].mxu0 %v1228
        %v1485 = vpop.f32.mrb[0].mxu0
        %v1486 = vadd.f32 0.0, %v1485
        %v1487 = vpop.f32.mrb[0].mxu0
        %v1488 = vpop.f32.mrb[0].mxu0
        %v1489 = vadd.f32 0.0, %v1488
        %v1490 = vpop.f32.mrb[0].mxu0
        %1491 = vmatprep.mubr.bf16.mxu0 0
        %1492 = vmatmul.mubr.bf16.gmra.mrb[0].mxu0 %v1231
        %v1493 = vpop.f32.mrb[0].mxu0
        %v1494 = vadd.f32 0.0, %v1493
        %v1495 = vpop.f32.mrb[0].mxu0
        %v1496 = vpop.f32.mrb[0].mxu0
        %v1497 = vadd.f32 0.0, %v1496
        %v1498 = vpop.f32.mrb[0].mxu0
        %1499 = vmatprep.mubr.bf16.mxu0 0
        %1500 = vmatmul.mubr.bf16.gmra.mrb[0].mxu0 %v1234
        %v1501 = vpop.f32.mrb[0].mxu0
        %v1502 = vadd.f32 0.0, %v1501
        %v1503 = vpop.f32.mrb[0].mxu0
        %v1504 = vpop.f32.mrb[0].mxu0
        %v1505 = vadd.f32 0.0, %v1504
        %v1506 = vpop.f32.mrb[0].mxu0
        %1507 = vmatprep.mubr.bf16.mxu0 0
        %1508 = vmatmul.mubr.bf16.gmra.mrb[0].mxu0 %v1237
        %v1509 = vpop.f32.mrb[0].mxu0
        %v1510 = vadd.f32 0.0, %v1509
        %v1511 = vpop.f32.mrb[0].mxu0
        %v1512 = vpop.f32.mrb[0].mxu0
        %v1513 = vadd.f32 0.0, %v1512
        %v1514 = vpop.f32.mrb[0].mxu0
        %1515 = vmatprep.mubr.bf16.mxu0 0
        %1516 = vmatmul.mubr.bf16.gmra.mrb[0].mxu0 %v1240
        %v1517 = vpop.f32.mrb[0].mxu0
        %v1518 = vadd.f32 0.0, %v1517
        %v1519 = vpop.f32.mrb[0].mxu0
        %v1520 = vpop.f32.mrb[0].mxu0
        %v1521 = vadd.f32 0.0, %v1520
        %v1522 = vpop.f32.mrb[0].mxu0
        %1523 = vmatprep.mubr.bf16.mxu0 0
        %1524 = vmatmul.mubr.bf16.gmra.mrb[0].mxu0 %v1243
        %v1525 = vpop.f32.mrb[0].mxu0
        %v1526 = vadd.f32 0.0, %v1525
        %v1527 = vpop.f32.mrb[0].mxu0
        %v1528 = vpop.f32.mrb[0].mxu0
        %v1529 = vadd.f32 0.0, %v1528
        %v1530 = vpop.f32.mrb[0].mxu0
        %1531 = vmatprep.mubr.bf16.mxu0 0
        %1532 = vmatmul.mubr.bf16.gmra.mrb[0].mxu0 %v1246
        %v1533 = vpop.f32.mrb[0].mxu0
        %v1534 = vadd.f32 0.0, %v1533
        %v1535 = vpop.f32.mrb[0].mxu0
        %v1536 = vpop.f32.mrb[0].mxu0
        %v1537 = vadd.f32 0.0, %v1536
        %v1538 = vpop.f32.mrb[0].mxu0
        %1539 = vmatprep.mubr.bf16.mxu0 0
        %1540 = vmatmul.mubr.bf16.gmra.mrb[0].mxu0 %v1249
        %v1541 = vpop.f32.mrb[0].mxu0
        %v1542 = vadd.f32 0.0, %v1541
        %v1543 = vpop.f32.mrb[0].mxu0
        %v1544 = vpop.f32.mrb[0].mxu0
        %v1545 = vadd.f32 0.0, %v1544
        %v1546 = vpop.f32.mrb[0].mxu0
        %1547 = vmatprep.mubr.bf16.mxu0 0
        %1548 = vmatmul.mubr.bf16.gmra.mrb[0].mxu0 %v1252
        %v1549 = vpop.f32.mrb[0].mxu0
        %v1550 = vadd.f32 0.0, %v1549
        %v1551 = vpop.f32.mrb[0].mxu0
        %v1552 = vpop.f32.mrb[0].mxu0
        %v1553 = vadd.f32 0.0, %v1552
        %v1554 = vpop.f32.mrb[0].mxu0
        %1555 = vmatprep.mubr.bf16.mxu0 0
        %1556 = vmatmul.mubr.bf16.gmra.mrb[0].mxu0 %v1255
        %v1557 = vpop.f32.mrb[0].mxu0
        %v1558 = vadd.f32 0.0, %v1557
        %v1559 = vpop.f32.mrb[0].mxu0
        %v1560 = vpop.f32.mrb[0].mxu0
        %v1561 = vadd.f32 0.0, %v1560
        %v1562 = vpop.f32.mrb[0].mxu0
        %1563 = vmatprep.mubr.bf16.mxu0 0
        %1564 = vmatmul.mubr.bf16.gmra.mrb[0].mxu0 %v1258
        %v1565 = vpop.f32.mrb[0].mxu0
        %v1566 = vadd.f32 0.0, %v1565
        %v1567 = vpop.f32.mrb[0].mxu0
        %v1568 = vpop.f32.mrb[0].mxu0
        %v1569 = vadd.f32 0.0, %v1568
        %v1570 = vpop.f32.mrb[0].mxu0
        %1571 = vmatprep.mubr.bf16.mxu0 0
        %1572 = vmatmul.mubr.bf16.gmra.mrb[0].mxu0 %v1261
        %v1573 = vpop.f32.mrb[0].mxu0
        %v1574 = vadd.f32 0.0, %v1573
        %v1575 = vpop.f32.mrb[0].mxu0
        %v1576 = vpop.f32.mrb[0].mxu0
        %v1577 = vadd.f32 0.0, %v1576
        %v1578 = vpop.f32.mrb[0].mxu0
        %1579 = vmatprep.mubr.bf16.mxu0 0
        %1580 = vmatmul.mubr.bf16.gmra.mrb[0].mxu0 %v1264
        %v1581 = vpop.f32.mrb[0].mxu0
        %v1582 = vadd.f32 0.0, %v1581
        %v1583 = vpop.f32.mrb[0].mxu0
        %v1584 = vpop.f32.mrb[0].mxu0
        %v1585 = vadd.f32 0.0, %v1584
        %v1586 = vpop.f32.mrb[0].mxu0
        %1587 = vmatprep.mubr.bf16.mxu0 0
        %1588 = vmatmul.mubr.bf16.gmra.mrb[0].mxu0 %v1267
        %v1589 = vpop.f32.mrb[0].mxu0
        %v1590 = vadd.f32 0.0, %v1589
        %v1591 = vpop.f32.mrb[0].mxu0
        %v1592 = vpop.f32.mrb[0].mxu0
        %v1593 = vadd.f32 0.0, %v1592
        %v1594 = vpop.f32.mrb[0].mxu0
        %1595 = vmatprep.mubr.bf16.mxu0 0
        %1596 = vmatmul.mubr.bf16.gmra.mrb[0].mxu0 %v1270
        %v1597 = vpop.f32.mrb[0].mxu0
        %v1598 = vadd.f32 0.0, %v1597
        %v1599 = vpop.f32.mrb[0].mxu0
        %v1600 = vpop.f32.mrb[0].mxu0
        %v1601 = vadd.f32 0.0, %v1600
        %v1602 = vpop.f32.mrb[0].mxu0
        %1603 = vmatprep.mubr.bf16.mxu0 0
        %1604 = vmatmul.mubr.bf16.gmra.mrb[0].mxu0 %v1273
        %v1605 = vpop.f32.mrb[0].mxu0
        %v1606 = vadd.f32 0.0, %v1605
        %v1607 = vpop.f32.mrb[0].mxu0
        %v1608 = vpop.f32.mrb[0].mxu0
        %v1609 = vadd.f32 0.0, %v1608
        %v1610 = vpop.f32.mrb[0].mxu0
        %1611 = vmatprep.mubr.bf16.mxu0 0
        %1612 = vmatmul.mubr.bf16.gmra.mrb[0].mxu0 %v1276
        %v1613 = vpop.f32.mrb[0].mxu0
        %v1614 = vadd.f32 0.0, %v1613
        %v1615 = vpop.f32.mrb[0].mxu0
        %v1616 = vpop.f32.mrb[0].mxu0
        %v1617 = vadd.f32 0.0, %v1616
        %v1618 = vpop.f32.mrb[0].mxu0
        %1619 = vmatprep.mubr.bf16.mxu0 0
        %1620 = vmatmul.mubr.bf16.gmra.mrb[0].mxu0 %v1279
        %v1621 = vpop.f32.mrb[0].mxu0
        %v1622 = vadd.f32 0.0, %v1621
        %v1623 = vpop.f32.mrb[0].mxu0
        %v1624 = vpop.f32.mrb[0].mxu0
        %v1625 = vadd.f32 0.0, %v1624
        %v1626 = vpop.f32.mrb[0].mxu0
        %1627 = vmatprep.mubr.bf16.mxu0 0
        %1628 = vmatmul.mubr.bf16.gmra.mrb[0].mxu0 %v1282
        %v1629 = vpop.f32.mrb[0].mxu0
        %v1630 = vadd.f32 0.0, %v1629
        %v1631 = vpop.f32.mrb[0].mxu0
        %v1632 = vpop.f32.mrb[0].mxu0
        %v1633 = vadd.f32 0.0, %v1632
        %v1634 = vpop.f32.mrb[0].mxu0
        %1635 = vmatprep.mubr.bf16.mxu0 0
        %1636 = vmatmul.mubr.bf16.gmra.mrb[0].mxu0 %v1285
        %v1637 = vpop.f32.mrb[0].mxu0
        %v1638 = vadd.f32 0.0, %v1637
        %v1639 = vpop.f32.mrb[0].mxu0
        %v1640 = vpop.f32.mrb[0].mxu0
        %v1641 = vadd.f32 0.0, %v1640
        %v1642 = vpop.f32.mrb[0].mxu0
        %1643 = vmatprep.mubr.bf16.mxu0 0
        %1644 = vmatmul.mubr.bf16.gmra.mrb[0].mxu0 %v1288
        %v1645 = vpop.f32.mrb[0].mxu0
        %v1646 = vadd.f32 0.0, %v1645
        %v1647 = vpop.f32.mrb[0].mxu0
        %v1648 = vpop.f32.mrb[0].mxu0
        %v1649 = vadd.f32 0.0, %v1648
        %v1650 = vpop.f32.mrb[0].mxu0
        %1651 = vmatprep.mubr.bf16.mxu0 0
        %1652 = vmatmul.mubr.bf16.gmra.mrb[0].mxu0 %v1291
        %v1653 = vpop.f32.mrb[0].mxu0
        %v1654 = vadd.f32 0.0, %v1653
        %v1655 = vpop.f32.mrb[0].mxu0
        %v1656 = vpop.f32.mrb[0].mxu0
        %v1657 = vadd.f32 0.0, %v1656
        %v1658 = vpop.f32.mrb[0].mxu0
        %1659 = vmatprep.mubr.bf16.mxu0 0
        %1660 = vmatmul.mubr.bf16.gmra.mrb[0].mxu0 %v1294
        %v1661 = vpop.f32.mrb[0].mxu0
        %v1662 = vadd.f32 0.0, %v1661
        %v1663 = vpop.f32.mrb[0].mxu0
        %v1664 = vpop.f32.mrb[0].mxu0
        %v1665 = vadd.f32 0.0, %v1664
        %v1666 = vpop.f32.mrb[0].mxu0
        %1667 = vmatprep.mubr.bf16.mxu0 0
        %1668 = vmatmul.mubr.bf16.gmra.mrb[0].mxu0 %v1297
        %v1669 = vpop.f32.mrb[0].mxu0
        %v1670 = vadd.f32 0.0, %v1669
        %v1671 = vpop.f32.mrb[0].mxu0
        %v1672 = vpop.f32.mrb[0].mxu0
        %v1673 = vadd.f32 0.0, %v1672
        %v1674 = vpop.f32.mrb[0].mxu0
        %1675 = vmatprep.mubr.bf16.mxu0 0
        %1676 = vmatmul.mubr.bf16.gmra.mrb[0].mxu0 %v1300
        %v1677 = vpop.f32.mrb[0].mxu0
        %v1678 = vadd.f32 0.0, %v1677
        %v1679 = vpop.f32.mrb[0].mxu0
        %v1680 = vpop.f32.mrb[0].mxu0
        %v1681 = vadd.f32 0.0, %v1680
        %v1682 = vpop.f32.mrb[0].mxu0
        %1683 = vmatprep.mubr.bf16.mxu0 0
        %1684 = vmatmul.mubr.bf16.gmra.mrb[0].mxu0 %v1303
        %v1685 = vpop.f32.mrb[0].mxu0
        %v1686 = vadd.f32 0.0, %v1685
        %v1687 = vpop.f32.mrb[0].mxu0
        %v1688 = vpop.f32.mrb[0].mxu0
        %v1689 = vadd.f32 0.0, %v1688
        %v1690 = vpop.f32.mrb[0].mxu0
        %1691 = vmatprep.mubr.bf16.mxu0 0
        %1692 = vmatmul.mubr.bf16.gmra.mrb[0].mxu0 %v1306
        %v1693 = vpop.f32.mrb[0].mxu0
        %v1694 = vadd.f32 0.0, %v1693
        %v1695 = vpop.f32.mrb[0].mxu0
        %v1696 = vpop.f32.mrb[0].mxu0
        %v1697 = vadd.f32 0.0, %v1696
        %v1698 = vpop.f32.mrb[0].mxu0
        %1699 = vmatprep.mubr.bf16.mxu0 0
        %1700 = vmatmul.mubr.bf16.gmra.mrb[0].mxu0 %v1309
        %v1701 = vpop.f32.mrb[0].mxu0
        %v1702 = vadd.f32 0.0, %v1701
        %v1703 = vpop.f32.mrb[0].mxu0
        %v1704 = vpop.f32.mrb[0].mxu0
        %v1705 = vadd.f32 0.0, %v1704
        %v1706 = vpop.f32.mrb[0].mxu0
        %1707 = vmatprep.mubr.bf16.mxu0 0
        %1708 = vmatmul.mubr.bf16.gmra.mrb[0].mxu0 %v1312
        %v1709 = vpop.f32.mrb[0].mxu0
        %v1710 = vadd.f32 0.0, %v1709
        %v1711 = vpop.f32.mrb[0].mxu0
        %v1712 = vpop.f32.mrb[0].mxu0
        %v1713 = vadd.f32 0.0, %v1712
        %v1714 = vpop.f32.mrb[0].mxu0
        %1715 = vmatprep.mubr.bf16.mxu0 0
        %1716 = vmatmul.mubr.bf16.gmra.mrb[0].mxu0 %v1315
        %v1717 = vpop.f32.mrb[0].mxu0
        %v1718 = vadd.f32 0.0, %v1717
        %v1719 = vpop.f32.mrb[0].mxu0
        %v1720 = vpop.f32.mrb[0].mxu0
        %v1721 = vadd.f32 0.0, %v1720
        %v1722 = vpop.f32.mrb[0].mxu0
        %1723 = vmatprep.mubr.bf16.mxu0 0
        %1724 = vmatmul.mubr.bf16.gmra.mrb[0].mxu0 %v1318
        %v1725 = vpop.f32.mrb[0].mxu0
        %v1726 = vadd.f32 0.0, %v1725
        %v1727 = vpop.f32.mrb[0].mxu0
        %v1728 = vpop.f32.mrb[0].mxu0
        %v1729 = vadd.f32 0.0, %v1728
        %v1730 = vpop.f32.mrb[0].mxu0
        %1731 = vmatprep.mubr.bf16.mxu0 0
        %1732 = vmatmul.mubr.bf16.gmra.mrb[0].mxu0 %v1321
        %v1733 = vpop.f32.mrb[0].mxu0
        %v1734 = vadd.f32 0.0, %v1733
        %v1735 = vpop.f32.mrb[0].mxu0
        %v1736 = vpop.f32.mrb[0].mxu0
        %v1737 = vadd.f32 0.0, %v1736
        %v1738 = vpop.f32.mrb[0].mxu0
        %1739 = vmatprep.mubr.bf16.mxu0 0
        %1740 = vmatmul.mubr.bf16.gmra.mrb[0].mxu0 %v1324
        %v1741 = vpop.f32.mrb[0].mxu0
        %v1742 = vadd.f32 0.0, %v1741
        %v1743 = vpop.f32.mrb[0].mxu0
        %v1744 = vpop.f32.mrb[0].mxu0
        %v1745 = vadd.f32 0.0, %v1744
        %v1746 = vpop.f32.mrb[0].mxu0
        %1747 = vmatprep.mubr.bf16.mxu0 0
        %1748 = vmatmul.mubr.bf16.gmra.mrb[0].mxu0 %v1327
        %v1749 = vpop.f32.mrb[0].mxu0
        %v1750 = vadd.f32 0.0, %v1749
        %v1751 = vpop.f32.mrb[0].mxu0
        %v1752 = vpop.f32.mrb[0].mxu0
        %v1753 = vadd.f32 0.0, %v1752
        %v1754 = vpop.f32.mrb[0].mxu0
        %1755 = vmatprep.mubr.bf16.mxu0 0
        %1756 = vmatmul.mubr.bf16.gmra.mrb[0].mxu0 %v1330
        %v1757 = vpop.f32.mrb[0].mxu0
        %v1758 = vadd.f32 0.0, %v1757
        %v1759 = vpop.f32.mrb[0].mxu0
        %v1760 = vpop.f32.mrb[0].mxu0
        %v1761 = vadd.f32 0.0, %v1760
        %v1762 = vpop.f32.mrb[0].mxu0
        %1763 = vmatprep.mubr.bf16.mxu0 0
        %1764 = vmatmul.mubr.bf16.gmra.mrb[0].mxu0 %v1333
        %v1765 = vpop.f32.mrb[0].mxu0
        %v1766 = vadd.f32 0.0, %v1765
        %v1767 = vpop.f32.mrb[0].mxu0
        %v1768 = vpop.f32.mrb[0].mxu0
        %v1769 = vadd.f32 0.0, %v1768
        %v1770 = vpop.f32.mrb[0].mxu0
        %1771 = vmatprep.mubr.bf16.mxu0 0
        %1772 = vmatmul.mubr.bf16.gmra.mrb[0].mxu0 %v1336
        %v1773 = vpop.f32.mrb[0].mxu0
        %v1774 = vadd.f32 0.0, %v1773
        %v1775 = vpop.f32.mrb[0].mxu0
        %v1776 = vpop.f32.mrb[0].mxu0
        %v1777 = vadd.f32 0.0, %v1776
        %v1778 = vpop.f32.mrb[0].mxu0
        %1779 = vmatprep.mubr.bf16.mxu0 0
        %1780 = vmatmul.mubr.bf16.gmra.mrb[0].mxu0 %v1339
        %v1781 = vpop.f32.mrb[0].mxu0
        %v1782 = vadd.f32 0.0, %v1781
        %v1783 = vpop.f32.mrb[0].mxu0
        %v1784 = vpop.f32.mrb[0].mxu0
        %v1785 = vadd.f32 0.0, %v1784
        %v1786 = vpop.f32.mrb[0].mxu0
        %1787 = vmatprep.mubr.bf16.mxu0 0
        %1788 = vmatmul.mubr.bf16.gmra.mrb[0].mxu0 %v1342
        %v1789 = vpop.f32.mrb[0].mxu0
        %v1790 = vadd.f32 0.0, %v1789
        %v1791 = vpop.f32.mrb[0].mxu0
        %v1792 = vpop.f32.mrb[0].mxu0
        %v1793 = vadd.f32 0.0, %v1792
        %v1794 = vpop.f32.mrb[0].mxu0
        %1795 = vmatprep.mubr.bf16.mxu0 0
        %1796 = vmatmul.mubr.bf16.gmra.mrb[0].mxu0 %v1345
        %v1797 = vpop.f32.mrb[0].mxu0
        %v1798 = vadd.f32 0.0, %v1797
        %v1799 = vpop.f32.mrb[0].mxu0
        %v1800 = vpop.f32.mrb[0].mxu0
        %v1801 = vadd.f32 0.0, %v1800
        %v1802 = vpop.f32.mrb[0].mxu0
        %1803 = vmatprep.mubr.bf16.mxu0 0
        %1804 = vmatmul.mubr.bf16.gmra.mrb[0].mxu0 %v1348
        %v1805 = vpop.f32.mrb[0].mxu0
        %v1806 = vadd.f32 0.0, %v1805
        %v1807 = vpop.f32.mrb[0].mxu0
        %v1808 = vpop.f32.mrb[0].mxu0
        %v1809 = vadd.f32 0.0, %v1808
        %v1810 = vpop.f32.mrb[0].mxu0
        %1811 = vmatprep.mubr.bf16.mxu0 0
        %1812 = vmatmul.mubr.bf16.gmra.mrb[0].mxu0 %v1351
        %v1813 = vpop.f32.mrb[0].mxu0
        %v1814 = vadd.f32 0.0, %v1813
        %v1815 = vpop.f32.mrb[0].mxu0
        %v1816 = vpop.f32.mrb[0].mxu0
        %v1817 = vadd.f32 0.0, %v1816
        %v1818 = vpop.f32.mrb[0].mxu0
        %1819 = vmatprep.mubr.bf16.mxu0 0
        %1820 = vmatmul.mubr.bf16.gmra.mrb[0].mxu0 %v1354
        %v1821 = vpop.f32.mrb[0].mxu0
        %v1822 = vadd.f32 0.0, %v1821
        %v1823 = vpop.f32.mrb[0].mxu0
        %v1824 = vpop.f32.mrb[0].mxu0
        %v1825 = vadd.f32 0.0, %v1824
        %v1826 = vpop.f32.mrb[0].mxu0
        %1827 = vmatprep.mubr.bf16.mxu0 0
        %1828 = vmatmul.mubr.bf16.gmra.mrb[0].mxu0 %v1357
        %v1829 = vpop.f32.mrb[0].mxu0
        %v1830 = vadd.f32 0.0, %v1829
        %v1831 = vpop.f32.mrb[0].mxu0
        %v1832 = vpop.f32.mrb[0].mxu0
        %v1833 = vadd.f32 0.0, %v1832
        %v1834 = vpop.f32.mrb[0].mxu0
        %1835 = vmatprep.mubr.bf16.mxu0 0
        %1836 = vmatmul.mubr.bf16.gmra.mrb[0].mxu0 %v1360
        %v1837 = vpop.f32.mrb[0].mxu0
        %v1838 = vadd.f32 0.0, %v1837
        %v1839 = vpop.f32.mrb[0].mxu0
        %v1840 = vpop.f32.mrb[0].mxu0
        %v1841 = vadd.f32 0.0, %v1840
        %v1842 = vpop.f32.mrb[0].mxu0
        %1843 = vmatprep.mubr.bf16.mxu0 0
        %1844 = vmatmul.mubr.bf16.gmra.mrb[0].mxu0 %v1363
        %v1845 = vpop.f32.mrb[0].mxu0
        %v1846 = vadd.f32 0.0, %v1845
        %v1847 = vpop.f32.mrb[0].mxu0
        %v1848 = vpop.f32.mrb[0].mxu0
        %v1849 = vadd.f32 0.0, %v1848
        %v1850 = vpop.f32.mrb[0].mxu0
        %1851 = vmatprep.mubr.bf16.mxu0 0
        %1852 = vmatmul.mubr.bf16.gmra.mrb[0].mxu0 %v1366
        %v1853 = vpop.f32.mrb[0].mxu0
        %v1854 = vadd.f32 0.0, %v1853
        %v1855 = vpop.f32.mrb[0].mxu0
        %v1856 = vpop.f32.mrb[0].mxu0
        %v1857 = vadd.f32 0.0, %v1856
        %v1858 = vpop.f32.mrb[0].mxu0
        %1859 = vmatprep.mubr.bf16.mxu0 0
        %1860 = vmatmul.mubr.bf16.gmra.mrb[0].mxu0 %v1369
        %v1861 = vpop.f32.mrb[0].mxu0
        %v1862 = vadd.f32 0.0, %v1861
        %v1863 = vpop.f32.mrb[0].mxu0
        %v1864 = vpop.f32.mrb[0].mxu0
        %v1865 = vadd.f32 0.0, %v1864
        %v1866 = vpop.f32.mrb[0].mxu0
        %1867 = vmatprep.mubr.bf16.mxu0 0
        %1868 = vmatmul.mubr.bf16.gmra.mrb[0].mxu0 %v1372
        %v1869 = vpop.f32.mrb[0].mxu0
        %v1870 = vadd.f32 0.0, %v1869
        %v1871 = vpop.f32.mrb[0].mxu0
        %v1872 = vpop.f32.mrb[0].mxu0
        %v1873 = vadd.f32 0.0, %v1872
        %v1874 = vpop.f32.mrb[0].mxu0
        %1875 = vmatprep.mubr.bf16.mxu0 0
        %1876 = vmatmul.mubr.bf16.gmra.mrb[0].mxu0 %v1375
        %v1877 = vpop.f32.mrb[0].mxu0
        %v1878 = vadd.f32 0.0, %v1877
        %v1879 = vpop.f32.mrb[0].mxu0
        %v1880 = vpop.f32.mrb[0].mxu0
        %v1881 = vadd.f32 0.0, %v1880
        %v1882 = vpop.f32.mrb[0].mxu0
        %1883 = vmatprep.mubr.bf16.mxu0 0
        %1884 = vmatmul.mubr.bf16.gmra.mrb[0].mxu0 %v1378
        %v1885 = vpop.f32.mrb[0].mxu0
        %v1886 = vadd.f32 0.0, %v1885
        %v1887 = vpop.f32.mrb[0].mxu0
        %v1888 = vpop.f32.mrb[0].mxu0
        %v1889 = vadd.f32 0.0, %v1888
        %v1890 = vpop.f32.mrb[0].mxu0
        %1891 = vmatprep.mubr.bf16.mxu0 0
        %1892 = vmatmul.mubr.bf16.gmra.mrb[0].mxu0 %v1381
        %v1893 = vpop.f32.mrb[0].mxu0
        %v1894 = vadd.f32 0.0, %v1893
        %v1895 = vpop.f32.mrb[0].mxu0
        %v1896 = vpop.f32.mrb[0].mxu0
        %v1897 = vadd.f32 0.0, %v1896
        %v1898 = vpop.f32.mrb[0].mxu0
        %1899 = vmatprep.mubr.bf16.mxu0 0
        %1900 = vmatmul.mubr.bf16.gmra.mrb[0].mxu0 %v1384
        %v1901 = vpop.f32.mrb[0].mxu0
        %v1902 = vadd.f32 0.0, %v1901
        %v1903 = vpop.f32.mrb[0].mxu0
        %v1904 = vpop.f32.mrb[0].mxu0
        %v1905 = vadd.f32 0.0, %v1904
        %v1906 = vpop.f32.mrb[0].mxu0
        %1907 = vmatprep.mubr.bf16.mxu0 0
        %1908 = vmatmul.mubr.bf16.gmra.mrb[0].mxu0 %v1387
        %v1909 = vpop.f32.mrb[0].mxu0
        %v1910 = vadd.f32 0.0, %v1909
        %v1911 = vpop.f32.mrb[0].mxu0
        %v1912 = vpop.f32.mrb[0].mxu0
        %v1913 = vadd.f32 0.0, %v1912
        %v1914 = vpop.f32.mrb[0].mxu0
        %1915 = vmatprep.mubr.bf16.mxu0 0
        %1916 = vmatmul.mubr.bf16.gmra.mrb[0].mxu0 %v1390
        %v1917 = vpop.f32.mrb[0].mxu0
        %v1918 = vadd.f32 0.0, %v1917
        %v1919 = vpop.f32.mrb[0].mxu0
        %v1920 = vpop.f32.mrb[0].mxu0
        %v1921 = vadd.f32 0.0, %v1920
        %v1922 = vpop.f32.mrb[0].mxu0
        %1923 = vmatprep.mubr.bf16.mxu0 0
        %1924 = vmatmul.mubr.bf16.gmra.mrb[0].mxu0 %v1393
        %v1925 = vpop.f32.mrb[0].mxu0
        %v1926 = vadd.f32 0.0, %v1925
        %v1927 = vpop.f32.mrb[0].mxu0
        %v1928 = vpop.f32.mrb[0].mxu0
        %v1929 = vadd.f32 0.0, %v1928
        %v1930 = vpop.f32.mrb[0].mxu0
        %1931 = vmatprep.mubr.bf16.mxu0 0
        %1932 = vmatmul.mubr.bf16.gmra.mrb[0].mxu0 %v1396
        %v1933 = vpop.f32.mrb[0].mxu0
        %v1934 = vadd.f32 0.0, %v1933
        %v1935 = vpop.f32.mrb[0].mxu0
        %v1936 = vpop.f32.mrb[0].mxu0
        %v1937 = vadd.f32 0.0, %v1936
        %v1938 = vpop.f32.mrb[0].mxu0
        %1939 = vmatprep.mubr.bf16.mxu0 0
        %1940 = vmatmul.mubr.bf16.gmra.mrb[0].mxu0 %v1399
        %v1941 = vpop.f32.mrb[0].mxu0
        %v1942 = vadd.f32 0.0, %v1941
        %v1943 = vpop.f32.mrb[0].mxu0
        %v1944 = vpop.f32.mrb[0].mxu0
        %v1945 = vadd.f32 0.0, %v1944
        %v1946 = vpop.f32.mrb[0].mxu0
        %1947 = vmatprep.mubr.bf16.mxu0 0
        %1948 = vmatmul.mubr.bf16.gmra.mrb[0].mxu0 %v1402
        %v1949 = vpop.f32.mrb[0].mxu0
        %v1950 = vadd.f32 0.0, %v1949
        %v1951 = vpop.f32.mrb[0].mxu0
        %v1952 = vpop.f32.mrb[0].mxu0
        %v1953 = vadd.f32 0.0, %v1952
        %v1954 = vpop.f32.mrb[0].mxu0
        %1955 = vdwg.mxu0
        %v1956 = vmax.f32 %v1446, %v1574
        %v1957 = vmax.f32 %v1449, %v1577
        %v1958 = vmax.f32 %v1454, %v1582
        %v1959 = vmax.f32 %v1457, %v1585
        %v1960 = vmax.f32 %v1462, %v1590
        %v1961 = vmax.f32 %v1465, %v1593
        %v1962 = vmax.f32 %v1470, %v1598
        %v1963 = vmax.f32 %v1473, %v1601
        %v1964 = vmax.f32 %v1478, %v1606
        %v1965 = vmax.f32 %v1481, %v1609
        %v1966 = vmax.f32 %v1486, %v1614
        %v1967 = vmax.f32 %v1489, %v1617
        %v1968 = vmax.f32 %v1494, %v1622
        %v1969 = vmax.f32 %v1497, %v1625
        %v1970 = vmax.f32 %v1502, %v1630
        %v1971 = vmax.f32 %v1505, %v1633
        %v1972 = vmax.f32 %v1510, %v1638
        %v1973 = vmax.f32 %v1513, %v1641
        %v1974 = vmax.f32 %v1518, %v1646
        %v1975 = vmax.f32 %v1521, %v1649
        %v1976 = vmax.f32 %v1526, %v1654
        %v1977 = vmax.f32 %v1529, %v1657
        %v1978 = vmax.f32 %v1534, %v1662
        %v1979 = vmax.f32 %v1537, %v1665
        %v1980 = vmax.f32 %v1542, %v1670
        %v1981 = vmax.f32 %v1545, %v1673
        %v1982 = vmax.f32 %v1550, %v1678
        %v1983 = vmax.f32 %v1553, %v1681
        %v1984 = vmax.f32 %v1558, %v1686
        %v1985 = vmax.f32 %v1561, %v1689
        %v1986 = vmax.f32 %v1566, %v1694
        %v1987 = vmax.f32 %v1569, %v1697
        %v1988 = vmax.f32 %v1702, %v1830
        %v1989 = vmax.f32 %v1705, %v1833
        %v1990 = vmax.f32 %v1710, %v1838
        %v1991 = vmax.f32 %v1713, %v1841
        %v1992 = vmax.f32 %v1718, %v1846
        %v1993 = vmax.f32 %v1721, %v1849
        %v1994 = vmax.f32 %v1726, %v1854
        %v1995 = vmax.f32 %v1729, %v1857
        %v1996 = vmax.f32 %v1734, %v1862
        %v1997 = vmax.f32 %v1737, %v1865
        %v1998 = vmax.f32 %v1742, %v1870
        %v1999 = vmax.f32 %v1745, %v1873
        %v2000 = vmax.f32 %v1750, %v1878
        %v2001 = vmax.f32 %v1753, %v1881
        %v2002 = vmax.f32 %v1758, %v1886
        %v2003 = vmax.f32 %v1761, %v1889
        %v2004 = vmax.f32 %v1766, %v1894
        %v2005 = vmax.f32 %v1769, %v1897
        %v2006 = vmax.f32 %v1774, %v1902
        %v2007 = vmax.f32 %v1777, %v1905
        %v2008 = vmax.f32 %v1782, %v1910
        %v2009 = vmax.f32 %v1785, %v1913
        %v2010 = vmax.f32 %v1790, %v1918
        %v2011 = vmax.f32 %v1793, %v1921
        %v2012 = vmax.f32 %v1798, %v1926
        %v2013 = vmax.f32 %v1801, %v1929
        %v2014 = vmax.f32 %v1806, %v1934
        %v2015 = vmax.f32 %v1809, %v1937
        %v2016 = vmax.f32 %v1814, %v1942
        %v2017 = vmax.f32 %v1817, %v1945
        %v2018 = vmax.f32 %v1822, %v1950
        %v2019 = vmax.f32 %v1825, %v1953
        %v2020 = vmax.f32 %v1956, %v1988
        %v2021 = vmax.f32 %v1957, %v1989
        %v2022 = vmax.f32 %v1958, %v1990
        %v2023 = vmax.f32 %v1959, %v1991
        %v2024 = vmax.f32 %v1960, %v1992
        %v2025 = vmax.f32 %v1961, %v1993
        %v2026 = vmax.f32 %v1962, %v1994
        %v2027 = vmax.f32 %v1963, %v1995
        %v2028 = vmax.f32 %v1964, %v1996
        %v2029 = vmax.f32 %v1965, %v1997
        %v2030 = vmax.f32 %v1966, %v1998
        %v2031 = vmax.f32 %v1967, %v1999
        %v2032 = vmax.f32 %v1968, %v2000
        %v2033 = vmax.f32 %v1969, %v2001
        %v2034 = vmax.f32 %v1970, %v2002
        %v2035 = vmax.f32 %v1971, %v2003
        %v2036 = vmax.f32 %v1972, %v2004
        %v2037 = vmax.f32 %v1973, %v2005
        %v2038 = vmax.f32 %v1974, %v2006
        %v2039 = vmax.f32 %v1975, %v2007
        %v2040 = vmax.f32 %v1976, %v2008
        %v2041 = vmax.f32 %v1977, %v2009
        %v2042 = vmax.f32 %v1978, %v2010
        %v2043 = vmax.f32 %v1979, %v2011
        %v2044 = vmax.f32 %v1980, %v2012
        %v2045 = vmax.f32 %v1981, %v2013
        %v2046 = vmax.f32 %v1982, %v2014
        %v2047 = vmax.f32 %v1983, %v2015
        %v2048 = vmax.f32 %v1984, %v2016
        %v2049 = vmax.f32 %v1985, %v2017
        %v2050 = vmax.f32 %v1986, %v2018
        %v2051 = vmax.f32 %v1987, %v2019
        %v2052 = vld [vmem:[%s2] sm:$0x1]
        %v2054 = vlaneseq
        %v2055 = vshrl.u32 %v2054, 7
        %v2056 = vsub.s32 0, %v2055
        %v2057 = vrot.slane %v2052, %v2056
        %v2059 = vadd.f32 %v2020, %v2057
        %v2060 = vadd.f32 %v2021, %v2057
        %v2061 = vadd.f32 %v2022, %v2057
        %v2062 = vadd.f32 %v2023, %v2057
        %v2063 = vadd.f32 %v2024, %v2057
        %v2064 = vadd.f32 %v2025, %v2057
        %v2065 = vadd.f32 %v2026, %v2057
        %v2066 = vadd.f32 %v2027, %v2057
        %v2067 = vadd.f32 %v2028, %v2057
        %v2068 = vadd.f32 %v2029, %v2057
        %v2069 = vadd.f32 %v2030, %v2057
        %v2070 = vadd.f32 %v2031, %v2057
        %v2071 = vadd.f32 %v2032, %v2057
        %v2072 = vadd.f32 %v2033, %v2057
        %v2073 = vadd.f32 %v2034, %v2057
        %v2074 = vadd.f32 %v2035, %v2057
        %v2075 = vadd.f32 %v2036, %v2057
        %v2076 = vadd.f32 %v2037, %v2057
        %v2077 = vadd.f32 %v2038, %v2057
        %v2078 = vadd.f32 %v2039, %v2057
        %v2079 = vadd.f32 %v2040, %v2057
        %v2080 = vadd.f32 %v2041, %v2057
        %v2081 = vadd.f32 %v2042, %v2057
        %v2082 = vadd.f32 %v2043, %v2057
        %v2083 = vadd.f32 %v2044, %v2057
        %v2084 = vadd.f32 %v2045, %v2057
        %v2085 = vadd.f32 %v2046, %v2057
        %v2086 = vadd.f32 %v2047, %v2057
        %v2087 = vadd.f32 %v2048, %v2057
        %v2088 = vadd.f32 %v2049, %v2057
        %v2089 = vadd.f32 %v2050, %v2057
        %v2090 = vadd.f32 %v2051, %v2057
        %v2091 = vpack.c.bf16 %v2060, %v2059
        %v2092 = vpack.c.bf16 %v2062, %v2061
        %v2093 = vpack.c.bf16 %v2064, %v2063
        %v2094 = vpack.c.bf16 %v2066, %v2065
        %v2095 = vpack.c.bf16 %v2068, %v2067
        %v2096 = vpack.c.bf16 %v2070, %v2069
        %v2097 = vpack.c.bf16 %v2072, %v2071
        %v2098 = vpack.c.bf16 %v2074, %v2073
        %v2099 = vpack.c.bf16 %v2076, %v2075
        %v2100 = vpack.c.bf16 %v2078, %v2077
        %v2101 = vpack.c.bf16 %v2080, %v2079
        %v2102 = vpack.c.bf16 %v2082, %v2081
        %v2103 = vpack.c.bf16 %v2084, %v2083
        %v2104 = vpack.c.bf16 %v2086, %v2085
        %v2105 = vpack.c.bf16 %v2088, %v2087
        %v2106 = vpack.c.bf16 %v2090, %v2089
        %v2123 = vunpack.c.l.b16 %v2091
        %v2124 = vunpack.c.h.b16 %v2091
        %v2125 = vunpack.c.l.b16 %v2092
        %v2126 = vunpack.c.h.b16 %v2092
        %v2127 = vunpack.c.l.b16 %v2093
        %v2128 = vunpack.c.h.b16 %v2093
        %v2129 = vunpack.c.l.b16 %v2094
        %v2130 = vunpack.c.h.b16 %v2094
        %v2131 = vunpack.c.l.b16 %v2095
        %v2132 = vunpack.c.h.b16 %v2095
        %v2133 = vunpack.c.l.b16 %v2096
        %v2134 = vunpack.c.h.b16 %v2096
        %v2135 = vunpack.c.l.b16 %v2097
        %v2136 = vunpack.c.h.b16 %v2097
        %v2137 = vunpack.c.l.b16 %v2098
        %v2138 = vunpack.c.h.b16 %v2098
        %v2139 = vunpack.c.l.b16 %v2099
        %v2140 = vunpack.c.h.b16 %v2099
        %v2141 = vunpack.c.l.b16 %v2100
        %v2142 = vunpack.c.h.b16 %v2100
        %v2143 = vunpack.c.l.b16 %v2101
        %v2144 = vunpack.c.h.b16 %v2101
        %v2145 = vunpack.c.l.b16 %v2102
        %v2146 = vunpack.c.h.b16 %v2102
        %v2147 = vunpack.c.l.b16 %v2103
        %v2148 = vunpack.c.h.b16 %v2103
        %v2149 = vunpack.c.l.b16 %v2104
        %v2150 = vunpack.c.h.b16 %v2104
        %v2151 = vunpack.c.l.b16 %v2105
        %v2152 = vunpack.c.h.b16 %v2105
        %v2153 = vunpack.c.l.b16 %v2106
        %v2154 = vunpack.c.h.b16 %v2106
        %v2155 = vpack.c.b16 %v2123, %v2123
        %v2156 = vpack.c.b16 %v2124, %v2124
        %v2157 = vpack.c.b16 %v2125, %v2125
        %v2158 = vpack.c.b16 %v2126, %v2126
        %v2159 = vpack.c.b16 %v2127, %v2127
        %v2160 = vpack.c.b16 %v2128, %v2128
        %v2161 = vpack.c.b16 %v2129, %v2129
        %v2162 = vpack.c.b16 %v2130, %v2130
        %v2163 = vpack.c.b16 %v2131, %v2131
        %v2164 = vpack.c.b16 %v2132, %v2132
        %v2165 = vpack.c.b16 %v2133, %v2133
        %v2166 = vpack.c.b16 %v2134, %v2134
        %v2167 = vpack.c.b16 %v2135, %v2135
        %v2168 = vpack.c.b16 %v2136, %v2136
        %v2169 = vpack.c.b16 %v2137, %v2137
        %v2170 = vpack.c.b16 %v2138, %v2138
        %v2171 = vpack.c.b16 %v2139, %v2139
        %v2172 = vpack.c.b16 %v2140, %v2140
        %v2173 = vpack.c.b16 %v2141, %v2141
        %v2174 = vpack.c.b16 %v2142, %v2142
        %v2175 = vpack.c.b16 %v2143, %v2143
        %v2176 = vpack.c.b16 %v2144, %v2144
        %v2177 = vpack.c.b16 %v2145, %v2145
        %v2178 = vpack.c.b16 %v2146, %v2146
        %v2179 = vpack.c.b16 %v2147, %v2147
        %v2180 = vpack.c.b16 %v2148, %v2148
        %v2181 = vpack.c.b16 %v2149, %v2149
        %v2182 = vpack.c.b16 %v2150, %v2150
        %v2183 = vpack.c.b16 %v2151, %v2151
        %v2184 = vpack.c.b16 %v2152, %v2152
        %v2185 = vpack.c.b16 %v2153, %v2153
        %v2186 = vpack.c.b16 %v2154, %v2154
        %vm2219 = vcmask 257024
        %2220 = vst.msk [vmem:[%s721] sm:$0xf] %vm2219, %v2155
        %2221 = vst.msk [vmem:[%s721 + $0x4] sm:$0xf] %vm2219, %v2156
        %2222 = vst.msk [vmem:[%s721 + $0x8] sm:$0xf] %vm2219, %v2157
        %2223 = vst.msk [vmem:[%s721 + $0xc] sm:$0xf] %vm2219, %v2158
        %2224 = vst.msk [vmem:[%s721 + $0x10] sm:$0xf] %vm2219, %v2159
        %2225 = vst.msk [vmem:[%s721 + $0x14] sm:$0xf] %vm2219, %v2160
        %2226 = vst.msk [vmem:[%s721 + $0x18] sm:$0xf] %vm2219, %v2161
        %2227 = vst.msk [vmem:[%s721 + $0x1c] sm:$0xf] %vm2219, %v2162
        %2228 = vst.msk [vmem:[%s721 + $0x20] sm:$0xf] %vm2219, %v2163
        %2229 = vst.msk [vmem:[%s721 + $0x24] sm:$0xf] %vm2219, %v2164
        %2230 = vst.msk [vmem:[%s721 + $0x28] sm:$0xf] %vm2219, %v2165
        %2231 = vst.msk [vmem:[%s721 + $0x2c] sm:$0xf] %vm2219, %v2166
        %2232 = vst.msk [vmem:[%s721 + $0x30] sm:$0xf] %vm2219, %v2167
        %2233 = vst.msk [vmem:[%s721 + $0x34] sm:$0xf] %vm2219, %v2168
        %2234 = vst.msk [vmem:[%s721 + $0x38] sm:$0xf] %vm2219, %v2169
        %2235 = vst.msk [vmem:[%s721 + $0x3c] sm:$0xf] %vm2219, %v2170
        %2236 = vst.msk [vmem:[%s721 + $0x40] sm:$0xf] %vm2219, %v2171
        %2237 = vst.msk [vmem:[%s721 + $0x44] sm:$0xf] %vm2219, %v2172
        %2238 = vst.msk [vmem:[%s721 + $0x48] sm:$0xf] %vm2219, %v2173
        %2239 = vst.msk [vmem:[%s721 + $0x4c] sm:$0xf] %vm2219, %v2174
        %2240 = vst.msk [vmem:[%s721 + $0x50] sm:$0xf] %vm2219, %v2175
        %2241 = vst.msk [vmem:[%s721 + $0x54] sm:$0xf] %vm2219, %v2176
        %2242 = vst.msk [vmem:[%s721 + $0x58] sm:$0xf] %vm2219, %v2177
        %2243 = vst.msk [vmem:[%s721 + $0x5c] sm:$0xf] %vm2219, %v2178
        %2244 = vst.msk [vmem:[%s721 + $0x60] sm:$0xf] %vm2219, %v2179
        %2245 = vst.msk [vmem:[%s721 + $0x64] sm:$0xf] %vm2219, %v2180
        %2246 = vst.msk [vmem:[%s721 + $0x68] sm:$0xf] %vm2219, %v2181
        %2247 = vst.msk [vmem:[%s721 + $0x6c] sm:$0xf] %vm2219, %v2182
        %2248 = vst.msk [vmem:[%s721 + $0x70] sm:$0xf] %vm2219, %v2183
        %2249 = vst.msk [vmem:[%s721 + $0x74] sm:$0xf] %vm2219, %v2184
        %2250 = vst.msk [vmem:[%s721 + $0x78] sm:$0xf] %vm2219, %v2185
        %2251 = vst.msk [vmem:[%s721 + $0x7c] sm:$0xf] %vm2219, %v2186
        %s2252 = smul.u32 32, %s14
        %p2253 = scmp.lt.s32.totalorder %s2252, 63
        %s2254 = scalar_select %p2253, %s2252, 63
        %s2255 = smul.addr %s2254, 4
        %s2256 = scalar_lea.vmem %s3, %s2255
        // Predicated region
        $region74: #{model_forward.4} parent=68 // pred_check
          %p2257 = pneg %p100
        $region75: #{model_forward.4} parent=68 // pred_check_branch
          %2259 = sbr.rel (%p2257) target = $region77
        $region76: #{model_forward.4} parent=68 // pred_region
          %s2260 = smul.u32 32, %s14
        $region77: #{model_forward.4} parent=68 // pred_fallthru
          _
      $region69: #{model_forward.4} parent=5 // pred_fallthru
        _
      %p2261 = scmp.le.s32.totalorder 2, %s9
      // Predicated region
      $region78: #{model_forward.4} parent=5 // pred_check
        %p2262 = pneg %p2261
      $region79: #{model_forward.4} parent=5 // pred_check_branch
        %2264 = sbr.rel (%p2262) target = $region81
      $region80: #{model_forward.4} parent=5 // pred_region
        %s2265 = ssub.s32 %s9, 2
        // Predicated region
        $region82: #{model_forward.4} parent=80 // pred_check
          %p2266 = pneg %p106
        $region83: #{model_forward.4} parent=80 // pred_check_branch
          %2268 = sbr.rel (%p2266) target = $region85
        $region84: #{model_forward.4} parent=80 // pred_region
          %s2269 = smul.u32 32, %s15
          %p2270 = scmp.lt.s32.totalorder %s2269, 63
          %s2271 = scalar_select %p2270, %s2269, 63
          %s2272 = smul.addr %s2271, 4
          %s2273 = scalar_lea.vmem %s3, %s2272
        $region85: #{model_forward.4} parent=80 // pred_fallthru
          _
      $region81: #{model_forward.4} parent=5 // pred_fallthru
        _
    $region6: #{model_forward.4} parent=1 // loop_footer
      %s13 = sadd.s32 1, %s9
    $region7: #{model_forward.4} parent=1 // loop_footer_branch
      %8 = sbr.rel target = $region3
    $region8: #{model_forward.4} parent=1 // loop_exit
      _

// kernel: model_forward.5
$region0: #{model_forward.5}
  #allocation0 [shape = 'u32[]', space=smem, size = 0x4, offset = 0x4, fixed_abs, tag = 'smem constant byte address 0x4 - core index']
  #allocation1 [shape = 'u32[144,128]{1,0:T(1,128)}', space=vmem, size = 0x12000, scoped, tag = 'internal scratch']
  %s0 = inlined_call_operand.vmem [shape: bf16[4,128,800], index: 0, kind: input, shape index: {}]
  %s1 = inlined_call_operand.vmem [shape: bf16[800,32], index: 1, kind: input, shape index: {}]
  %s2 = inlined_call_operand.vmem [shape: f32[1,32], index: 2, kind: input, shape index: {}]
  %s3 = inlined_call_operand.vmem [shape: bf16[128,32], index: 3, kind: output, shape index: {}]
  %s4 = sld [smem:[#allocation0]]
  $region71: #{model_forward.5} parent=0
    _
  %s6 = ssub.s32 1, %s4
  %s7 = scalar_select 0, %s6, %s4
  $region1: #{model_forward.5} parent=0
    #allocation2 [shape = 'u8[917504]{0}', space=vmem, size = 0xe0000, scoped, tag = 'input window, operand 0']
    loop: start=0, step=1, limit=4
    $region2: #{model_forward.5} parent=1 // loop_pre_header
      _
    $region3: #{model_forward.5} parent=1 // loop_header
      %s9 = sphi 0, %s13
      %p10 = scmp.ge.s32.totalorder %s9, 4
      %s19 = sphi 0, %s21
      %s22 = sphi 0, %s19
      %s23 = sphi 0, %s22
      %s39 = sphi 0, %s23
      %s43 = sphi 0, %s43
      %s45 = sphi 0, %s43
      %s46 = sphi 0, %s45
      %s60 = sphi 0, %s46
      %s64 = sphi 0, %s64
      %s66 = sphi 0, %s64
      %s67 = sphi 0, %s66
      %s81 = sphi 0, %s67
      %s87 = sphi 0, %s89
      %s90 = sphi 0, %s87
      %s91 = sphi 0, %s90
      %s107 = sphi 0, %s91
    $region4: #{model_forward.5} parent=1 // loop_header_branch
      %12 = sbr.rel (%p10) target = $region8
    $region5: #{model_forward.5} parent=1 // loop_body
      %s14 = ssub.s32 %s9, 1
      %s15 = ssub.s32 %s9, 2
      %s16 = sadd.s32 %s9, 1
      %s17 = ssub.s32 %s9, %s16
      %p18 = scmp.eq.s32.totalorder %s17, 0
      %s20 = sadd.s32 %s19, 1
      %s21 = scalar_select %p18, %s19, %s20
      %p24 = pneg %p18
      %p25 = scmp.eq.s32.totalorder %s9, 1
      %p26 = por %p24, %p25
      %p27 = scmp.ne.s32.totalorder %s19, %s22
      %p28 = scmp.eq.s32.totalorder %s9, 0
      %p29 = por %p27, %p28
      %p30 = scmp.ne.s32.totalorder %s19, %s22
      %p31 = scmp.eq.s32.totalorder %s14, 1
      %p32 = por %p30, %p31
      %p33 = scmp.ne.s32.totalorder %s22, %s23
      %p34 = scmp.eq.s32.totalorder %s14, 0
      %p35 = por %p33, %p34
      %p36 = scmp.ne.s32.totalorder %s22, %s23
      %p37 = scmp.eq.s32.totalorder %s15, 1
      %p38 = por %p36, %p37
      %p40 = scmp.ne.s32.totalorder %s23, %s39
      %p41 = scmp.eq.s32.totalorder %s15, 0
      %p42 = por %p40, %p41
      %s44 = sadd.s32 %s43, 1
      %p47 = scmp.eq.s32.totalorder %s9, 1
      %p48 = scmp.ne.s32.totalorder %s43, %s45
      %p49 = scmp.eq.s32.totalorder %s9, 0
      %p50 = por %p48, %p49
      %p51 = scmp.ne.s32.totalorder %s43, %s45
      %p52 = scmp.eq.s32.totalorder %s14, 1
      %p53 = por %p51, %p52
      %p54 = scmp.ne.s32.totalorder %s45, %s46
      %p55 = scmp.eq.s32.totalorder %s14, 0
      %p56 = por %p54, %p55
      %p57 = scmp.ne.s32.totalorder %s45, %s46
      %p58 = scmp.eq.s32.totalorder %s15, 1
      %p59 = por %p57, %p58
      %p61 = scmp.ne.s32.totalorder %s46, %s60
      %p62 = scmp.eq.s32.totalorder %s15, 0
      %p63 = por %p61, %p62
      %s65 = sadd.s32 %s64, 1
      %p68 = scmp.eq.s32.totalorder %s9, 1
      %p69 = scmp.ne.s32.totalorder %s64, %s66
      %p70 = scmp.eq.s32.totalorder %s9, 0
      %p71 = por %p69, %p70
      %p72 = scmp.ne.s32.totalorder %s64, %s66
      %p73 = scmp.eq.s32.totalorder %s14, 1
      %p74 = por %p72, %p73
      %p75 = scmp.ne.s32.totalorder %s66, %s67
      %p76 = scmp.eq.s32.totalorder %s14, 0
      %p77 = por %p75, %p76
      %p78 = scmp.ne.s32.totalorder %s66, %s67
      %p79 = scmp.eq.s32.totalorder %s15, 1
      %p80 = por %p78, %p79
      %p82 = scmp.ne.s32.totalorder %s67, %s81
      %p83 = scmp.eq.s32.totalorder %s15, 0
      %p84 = por %p82, %p83
      %s85 = ssub.s32 %s9, %s16
      %p86 = scmp.eq.s32.totalorder %s85, 0
      %s88 = sadd.s32 %s87, 1
      %s89 = scalar_select %p86, %s87, %s88
      %p92 = pneg %p86
      %p93 = scmp.eq.s32.totalorder %s9, 1
      %p94 = por %p92, %p93
      %p95 = scmp.ne.s32.totalorder %s87, %s90
      %p96 = scmp.eq.s32.totalorder %s9, 0
      %p97 = por %p95, %p96
      %p98 = scmp.ne.s32.totalorder %s87, %s90
      %p99 = scmp.eq.s32.totalorder %s14, 1
      %p100 = por %p98, %p99
      %p101 = scmp.ne.s32.totalorder %s90, %s91
      %p102 = scmp.eq.s32.totalorder %s14, 0
      %p103 = por %p101, %p102
      %p104 = scmp.ne.s32.totalorder %s90, %s91
      %p105 = scmp.eq.s32.totalorder %s15, 1
      %p106 = por %p104, %p105
      %p108 = scmp.ne.s32.totalorder %s91, %s107
      %p109 = scmp.eq.s32.totalorder %s15, 0
      %p110 = por %p108, %p109
      %p111 = scmp.le.s32.totalorder 1, %s9
      %p112 = scmp.lt.s32.totalorder %s9, 3
      %p113 = pnand %p111, %p112
      %p114 = pneg %p113
      // Predicated region
      $region9: #{model_forward.5} parent=5 // pred_check
        _
      $region10: #{model_forward.5} parent=5 // pred_check_branch
        %116 = sbr.rel (%p113) target = $region12
      $region11: #{model_forward.5} parent=5 // pred_region
        %s117 = ssub.s32 %s9, 1
        // Predicated region
        $region13: #{model_forward.5} parent=11 // pred_check
          %p118 = pneg %p56
        $region14: #{model_forward.5} parent=11 // pred_check_branch
          %120 = sbr.rel (%p118) target = $region16
        $region15: #{model_forward.5} parent=11 // pred_region
          _
        $region16: #{model_forward.5} parent=11 // pred_fallthru
          _
        // Predicated region
        $region17: #{model_forward.5} parent=11 // pred_check
          %p121 = pneg %p77
        $region18: #{model_forward.5} parent=11 // pred_check_branch
          %123 = sbr.rel (%p121) target = $region20
        $region19: #{model_forward.5} parent=11 // pred_region
          _
        $region20: #{model_forward.5} parent=11 // pred_fallthru
          _
      $region12: #{model_forward.5} parent=5 // pred_fallthru
        _
      %p124 = scmp.lt.s32.totalorder %s9, 2
      // Predicated region
      $region21: #{model_forward.5} parent=5 // pred_check
        %p125 = pneg %p124
      $region22: #{model_forward.5} parent=5 // pred_check_branch
        %127 = sbr.rel (%p125) target = $region24
      $region23: #{model_forward.5} parent=5 // pred_region
        // Predicated region
        $region25: #{model_forward.5} parent=23 // pred_check
          %p128 = pneg %p29
        $region26: #{model_forward.5} parent=23 // pred_check_branch
          %130 = sbr.rel (%p128) target = $region28
        $region27: #{model_forward.5} parent=23 // pred_region
          %s131 = sand.u32 %s19, 1
          %s132 = sand.u32 %s19, 1
          %s133 = smul.addr %s132, 896
          %s134 = scalar_lea.vmem [#allocation2], %s133
          %s135 = smul.u32 8, %s9
          %s136 = smul.addr %s135, 7
          %s137 = smul.addr %s136, 4
          %s138 = scalar_lea.vmem %s0, %s137
          // Predicated region
          $region29: #{model_forward.5} parent=27 // pred_check
            _
          $region30: #{model_forward.5} parent=27 // pred_check_branch
            %140 = sbr.rel (0) target = $region32
          $region31: #{model_forward.5} parent=27 // pred_region
            // Predicated region
            $region33: #{model_forward.5} parent=31 // pred_check
              _
            $region34: #{model_forward.5} parent=31 // pred_check_branch
              %142 = sbr.rel (0) target = $region36
            $region35: #{model_forward.5} parent=31 // pred_region
              %s143 = scalar_lea.vmem %s138, 24
              %s144 = scalar_lea.vmem %s134, 24 [#allocation2]
              loop: start=0, step=1, limit=1
              $region37: #{model_forward.5} parent=35 // loop_pre_header
                _
              $region38: #{model_forward.5} parent=35 // loop_header
                %s146 = sphi 0, %s150
                %p147 = scmp.ge.s32.totalorder %s146, 1
                %s151 = sphi %s138, %s138
                %s152 = sphi %s134, %s134
              $region39: #{model_forward.5} parent=35 // loop_header_branch
                %149 = sbr.rel (%p147) target = $region43
              $region40: #{model_forward.5} parent=35 // loop_body
                %v153 = vld [vmem:[%s151] sm:$0xff]
                %154 = vst [vmem:[%s152] sm:$0xff] %v153
                %v155 = vld [vmem:[%s151 + $0x8] sm:$0xff]
                %156 = vst [vmem:[%s152 + $0x8] sm:$0xff] %v155
                %v157 = vld [vmem:[%s151 + $0x10] sm:$0xff]
                %158 = vst [vmem:[%s152 + $0x10] sm:$0xff] %v157
                %v159 = vld [vmem:[%s151 + $0x1c] sm:$0xff]
                %160 = vst [vmem:[%s152 + $0x1c] sm:$0xff] %v159
                %v161 = vld [vmem:[%s151 + $0x24] sm:$0xff]
                %162 = vst [vmem:[%s152 + $0x24] sm:$0xff] %v161
                %v163 = vld [vmem:[%s151 + $0x2c] sm:$0xff]
                %164 = vst [vmem:[%s152 + $0x2c] sm:$0xff] %v163
                %v165 = vld [vmem:[%s151 + $0x38] sm:$0xff]
                %166 = vst [vmem:[%s152 + $0x38] sm:$0xff] %v165
                %v167 = vld [vmem:[%s151 + $0x40] sm:$0xff]
                %168 = vst [vmem:[%s152 + $0x40] sm:$0xff] %v167
                %v169 = vld [vmem:[%s151 + $0x48] sm:$0xff]
                %170 = vst [vmem:[%s152 + $0x48] sm:$0xff] %v169
                %v171 = vld [vmem:[%s151 + $0x54] sm:$0xff]
                %172 = vst [vmem:[%s152 + $0x54] sm:$0xff] %v171
                %v173 = vld [vmem:[%s151 + $0x5c] sm:$0xff]
                %174 = vst [vmem:[%s152 + $0x5c] sm:$0xff] %v173
                %v175 = vld [vmem:[%s151 + $0x64] sm:$0xff]
                %176 = vst [vmem:[%s152 + $0x64] sm:$0xff] %v175
                %v177 = vld [vmem:[%s151 + $0x70] sm:$0xff]
                %178 = vst [vmem:[%s152 + $0x70] sm:$0xff] %v177
                %v179 = vld [vmem:[%s151 + $0x78] sm:$0xff]
                %180 = vst [vmem:[%s152 + $0x78] sm:$0xff] %v179
                %v181 = vld [vmem:[%s151 + $0x80] sm:$0xff]
                %182 = vst [vmem:[%s152 + $0x80] sm:$0xff] %v181
                %v183 = vld [vmem:[%s151 + $0x8c] sm:$0xff]
                %184 = vst [vmem:[%s152 + $0x8c] sm:$0xff] %v183
                %v185 = vld [vmem:[%s151 + $0x94] sm:$0xff]
                %186 = vst [vmem:[%s152 + $0x94] sm:$0xff] %v185
                %v187 = vld [vmem:[%s151 + $0x9c] sm:$0xff]
                %188 = vst [vmem:[%s152 + $0x9c] sm:$0xff] %v187
                %v189 = vld [vmem:[%s151 + $0xa8] sm:$0xff]
                %190 = vst [vmem:[%s152 + $0xa8] sm:$0xff] %v189
                %v191 = vld [vmem:[%s151 + $0xb0] sm:$0xff]
                %192 = vst [vmem:[%s152 + $0xb0] sm:$0xff] %v191
                %v193 = vld [vmem:[%s151 + $0xb8] sm:$0xff]
                %194 = vst [vmem:[%s152 + $0xb8] sm:$0xff] %v193
                %v195 = vld [vmem:[%s151 + $0xc4] sm:$0xff]
                %196 = vst [vmem:[%s152 + $0xc4] sm:$0xff] %v195
                %v197 = vld [vmem:[%s151 + $0xcc] sm:$0xff]
                %198 = vst [vmem:[%s152 + $0xcc] sm:$0xff] %v197
                %v199 = vld [vmem:[%s151 + $0xd4] sm:$0xff]
                %200 = vst [vmem:[%s152 + $0xd4] sm:$0xff] %v199
                %v201 = vld [vmem:[%s151 + $0x1c0] sm:$0xff]
                %202 = vst [vmem:[%s152 + $0xe0] sm:$0xff] %v201
                %v203 = vld [vmem:[%s151 + $0x1c8] sm:$0xff]
                %204 = vst [vmem:[%s152 + $0xe8] sm:$0xff] %v203
                %v205 = vld [vmem:[%s151 + $0x1d0] sm:$0xff]
                %206 = vst [vmem:[%s152 + $0xf0] sm:$0xff] %v205
                %v207 = vld [vmem:[%s151 + $0x1dc] sm:$0xff]
                %208 = vst [vmem:[%s152 + $0xfc] sm:$0xff] %v207
                %v209 = vld [vmem:[%s151 + $0x1e4] sm:$0xff]
                %210 = vst [vmem:[%s152 + $0x104] sm:$0xff] %v209
                %v211 = vld [vmem:[%s151 + $0x1ec] sm:$0xff]
                %212 = vst [vmem:[%s152 + $0x10c] sm:$0xff] %v211
                %v213 = vld [vmem:[%s151 + $0x1f8] sm:$0xff]
                %214 = vst [vmem:[%s152 + $0x118] sm:$0xff] %v213
                %v215 = vld [vmem:[%s151 + $0x200] sm:$0xff]
                %216 = vst [vmem:[%s152 + $0x120] sm:$0xff] %v215
                %v217 = vld [vmem:[%s151 + $0x208] sm:$0xff]
                %218 = vst [vmem:[%s152 + $0x128] sm:$0xff] %v217
                %v219 = vld [vmem:[%s151 + $0x214] sm:$0xff]
                %220 = vst [vmem:[%s152 + $0x134] sm:$0xff] %v219
                %v221 = vld [vmem:[%s151 + $0x21c] sm:$0xff]
                %222 = vst [vmem:[%s152 + $0x13c] sm:$0xff] %v221
                %v223 = vld [vmem:[%s151 + $0x224] sm:$0xff]
                %224 = vst [vmem:[%s152 + $0x144] sm:$0xff] %v223
                %v225 = vld [vmem:[%s151 + $0x230] sm:$0xff]
                %226 = vst [vmem:[%s152 + $0x150] sm:$0xff] %v225
                %v227 = vld [vmem:[%s151 + $0x238] sm:$0xff]
                %228 = vst [vmem:[%s152 + $0x158] sm:$0xff] %v227
                %v229 = vld [vmem:[%s151 + $0x240] sm:$0xff]
                %230 = vst [vmem:[%s152 + $0x160] sm:$0xff] %v229
                %v231 = vld [vmem:[%s151 + $0x24c] sm:$0xff]
                %232 = vst [vmem:[%s152 + $0x16c] sm:$0xff] %v231
                %v233 = vld [vmem:[%s151 + $0x254] sm:$0xff]
                %234 = vst [vmem:[%s152 + $0x174] sm:$0xff] %v233
                %v235 = vld [vmem:[%s151 + $0x25c] sm:$0xff]
                %236 = vst [vmem:[%s152 + $0x17c] sm:$0xff] %v235
                %v237 = vld [vmem:[%s151 + $0x268] sm:$0xff]
                %238 = vst [vmem:[%s152 + $0x188] sm:$0xff] %v237
                %v239 = vld [vmem:[%s151 + $0x270] sm:$0xff]
                %240 = vst [vmem:[%s152 + $0x190] sm:$0xff] %v239
                %v241 = vld [vmem:[%s151 + $0x278] sm:$0xff]
                %242 = vst [vmem:[%s152 + $0x198] sm:$0xff] %v241
                %v243 = vld [vmem:[%s151 + $0x284] sm:$0xff]
                %244 = vst [vmem:[%s152 + $0x1a4] sm:$0xff] %v243
                %v245 = vld [vmem:[%s151 + $0x28c] sm:$0xff]
                %246 = vst [vmem:[%s152 + $0x1ac] sm:$0xff] %v245
                %v247 = vld [vmem:[%s151 + $0x294] sm:$0xff]
                %248 = vst [vmem:[%s152 + $0x1b4] sm:$0xff] %v247
                %v249 = vld [vmem:[%s151 + $0x380] sm:$0xff]
                %250 = vst [vmem:[%s152 + $0x1c0] sm:$0xff] %v249
                %v251 = vld [vmem:[%s151 + $0x388] sm:$0xff]
                %252 = vst [vmem:[%s152 + $0x1c8] sm:$0xff] %v251
                %v253 = vld [vmem:[%s151 + $0x390] sm:$0xff]
                %254 = vst [vmem:[%s152 + $0x1d0] sm:$0xff] %v253
                %v255 = vld [vmem:[%s151 + $0x39c] sm:$0xff]
                %256 = vst [vmem:[%s152 + $0x1dc] sm:$0xff] %v255
                %v257 = vld [vmem:[%s151 + $0x3a4] sm:$0xff]
                %258 = vst [vmem:[%s152 + $0x1e4] sm:$0xff] %v257
                %v259 = vld [vmem:[%s151 + $0x3ac] sm:$0xff]
                %260 = vst [vmem:[%s152 + $0x1ec] sm:$0xff] %v259
                %v261 = vld [vmem:[%s151 + $0x3b8] sm:$0xff]
                %262 = vst [vmem:[%s152 + $0x1f8] sm:$0xff] %v261
                %v263 = vld [vmem:[%s151 + $0x3c0] sm:$0xff]
                %264 = vst [vmem:[%s152 + $0x200] sm:$0xff] %v263
                %v265 = vld [vmem:[%s151 + $0x3c8] sm:$0xff]
                %266 = vst [vmem:[%s152 + $0x208] sm:$0xff] %v265
                %v267 = vld [vmem:[%s151 + $0x3d4] sm:$0xff]
                %268 = vst [vmem:[%s152 + $0x214] sm:$0xff] %v267
                %v269 = vld [vmem:[%s151 + $0x3dc] sm:$0xff]
                %270 = vst [vmem:[%s152 + $0x21c] sm:$0xff] %v269
                %v271 = vld [vmem:[%s151 + $0x3e4] sm:$0xff]
                %272 = vst [vmem:[%s152 + $0x224] sm:$0xff] %v271
                %v273 = vld [vmem:[%s151 + $0x3f0] sm:$0xff]
                %274 = vst [vmem:[%s152 + $0x230] sm:$0xff] %v273
                %v275 = vld [vmem:[%s151 + $0x3f8] sm:$0xff]
                %276 = vst [vmem:[%s152 + $0x238] sm:$0xff] %v275
                %v277 = vld [vmem:[%s151 + $0x400] sm:$0xff]
                %278 = vst [vmem:[%s152 + $0x240] sm:$0xff] %v277
                %v279 = vld [vmem:[%s151 + $0x40c] sm:$0xff]
                %280 = vst [vmem:[%s152 + $0x24c] sm:$0xff] %v279
                %v281 = vld [vmem:[%s151 + $0x414] sm:$0xff]
                %282 = vst [vmem:[%s152 + $0x254] sm:$0xff] %v281
                %v283 = vld [vmem:[%s151 + $0x41c] sm:$0xff]
                %284 = vst [vmem:[%s152 + $0x25c] sm:$0xff] %v283
                %v285 = vld [vmem:[%s151 + $0x428] sm:$0xff]
                %286 = vst [vmem:[%s152 + $0x268] sm:$0xff] %v285
                %v287 = vld [vmem:[%s151 + $0x430] sm:$0xff]
                %288 = vst [vmem:[%s152 + $0x270] sm:$0xff] %v287
                %v289 = vld [vmem:[%s151 + $0x438] sm:$0xff]
                %290 = vst [vmem:[%s152 + $0x278] sm:$0xff] %v289
                %v291 = vld [vmem:[%s151 + $0x444] sm:$0xff]
                %292 = vst [vmem:[%s152 + $0x284] sm:$0xff] %v291
                %v293 = vld [vmem:[%s151 + $0x44c] sm:$0xff]
                %294 = vst [vmem:[%s152 + $0x28c] sm:$0xff] %v293
                %v295 = vld [vmem:[%s151 + $0x454] sm:$0xff]
                %296 = vst [vmem:[%s152 + $0x294] sm:$0xff] %v295
                %v297 = vld [vmem:[%s151 + $0x540] sm:$0xff]
                %298 = vst [vmem:[%s152 + $0x2a0] sm:$0xff] %v297
                %v299 = vld [vmem:[%s151 + $0x548] sm:$0xff]
                %300 = vst [vmem:[%s152 + $0x2a8] sm:$0xff] %v299
                %v301 = vld [vmem:[%s151 + $0x550] sm:$0xff]
                %302 = vst [vmem:[%s152 + $0x2b0] sm:$0xff] %v301
                %v303 = vld [vmem:[%s151 + $0x55c] sm:$0xff]
                %304 = vst [vmem:[%s152 + $0x2bc] sm:$0xff] %v303
                %v305 = vld [vmem:[%s151 + $0x564] sm:$0xff]
                %306 = vst [vmem:[%s152 + $0x2c4] sm:$0xff] %v305
                %v307 = vld [vmem:[%s151 + $0x56c] sm:$0xff]
                %308 = vst [vmem:[%s152 + $0x2cc] sm:$0xff] %v307
                %v309 = vld [vmem:[%s151 + $0x578] sm:$0xff]
                %310 = vst [vmem:[%s152 + $0x2d8] sm:$0xff] %v309
                %v311 = vld [vmem:[%s151 + $0x580] sm:$0xff]
                %312 = vst [vmem:[%s152 + $0x2e0] sm:$0xff] %v311
                %v313 = vld [vmem:[%s151 + $0x588] sm:$0xff]
                %314 = vst [vmem:[%s152 + $0x2e8] sm:$0xff] %v313
                %v315 = vld [vmem:[%s151 + $0x594] sm:$0xff]
                %316 = vst [vmem:[%s152 + $0x2f4] sm:$0xff] %v315
                %v317 = vld [vmem:[%s151 + $0x59c] sm:$0xff]
                %318 = vst [vmem:[%s152 + $0x2fc] sm:$0xff] %v317
                %v319 = vld [vmem:[%s151 + $0x5a4] sm:$0xff]
                %320 = vst [vmem:[%s152 + $0x304] sm:$0xff] %v319
                %v321 = vld [vmem:[%s151 + $0x5b0] sm:$0xff]
                %322 = vst [vmem:[%s152 + $0x310] sm:$0xff] %v321
                %v323 = vld [vmem:[%s151 + $0x5b8] sm:$0xff]
                %324 = vst [vmem:[%s152 + $0x318] sm:$0xff] %v323
                %v325 = vld [vmem:[%s151 + $0x5c0] sm:$0xff]
                %326 = vst [vmem:[%s152 + $0x320] sm:$0xff] %v325
                %v327 = vld [vmem:[%s151 + $0x5cc] sm:$0xff]
                %328 = vst [vmem:[%s152 + $0x32c] sm:$0xff] %v327
                %v329 = vld [vmem:[%s151 + $0x5d4] sm:$0xff]
                %330 = vst [vmem:[%s152 + $0x334] sm:$0xff] %v329
                %v331 = vld [vmem:[%s151 + $0x5dc] sm:$0xff]
                %332 = vst [vmem:[%s152 + $0x33c] sm:$0xff] %v331
                %v333 = vld [vmem:[%s151 + $0x5e8] sm:$0xff]
                %334 = vst [vmem:[%s152 + $0x348] sm:$0xff] %v333
                %v335 = vld [vmem:[%s151 + $0x5f0] sm:$0xff]
                %336 = vst [vmem:[%s152 + $0x350] sm:$0xff] %v335
                %v337 = vld [vmem:[%s151 + $0x5f8] sm:$0xff]
                %338 = vst [vmem:[%s152 + $0x358] sm:$0xff] %v337
                %v339 = vld [vmem:[%s151 + $0x604] sm:$0xff]
                %340 = vst [vmem:[%s152 + $0x364] sm:$0xff] %v339
                %v341 = vld [vmem:[%s151 + $0x60c] sm:$0xff]
                %342 = vst [vmem:[%s152 + $0x36c] sm:$0xff] %v341
                %v343 = vld [vmem:[%s151 + $0x614] sm:$0xff]
                %344 = vst [vmem:[%s152 + $0x374] sm:$0xff] %v343
              $region41: #{model_forward.5} parent=35 // loop_footer
                %s150 = sadd.s32 1, %s146
              $region42: #{model_forward.5} parent=35 // loop_footer_branch
                %145 = sbr.rel target = $region38
              $region43: #{model_forward.5} parent=35 // loop_exit
                _
              loop: start=0, step=1, limit=1
              $region44: #{model_forward.5} parent=35 // loop_pre_header
                _
              $region45: #{model_forward.5} parent=35 // loop_header
                %s347 = sphi 0, %s351
                %p348 = scmp.ge.s32.totalorder %s347, 1
                %s352 = sphi %s143, %s143
                %s353 = sphi %s144, %s144
              $region46: #{model_forward.5} parent=35 // loop_header_branch
                %350 = sbr.rel (%p348) target = $region50
              $region47: #{model_forward.5} parent=35 // loop_body
                %v354 = vld [vmem:[%s352] sm:$0xf]
                %355 = vst [vmem:[%s353] sm:$0xf] %v354
                %v356 = vld [vmem:[%s352 + $0x1c] sm:$0xf]
                %357 = vst [vmem:[%s353 + $0x1c] sm:$0xf] %v356
                %v358 = vld [vmem:[%s352 + $0x38] sm:$0xf]
                %359 = vst [vmem:[%s353 + $0x38] sm:$0xf] %v358
                %v360 = vld [vmem:[%s352 + $0x54] sm:$0xf]
                %361 = vst [vmem:[%s353 + $0x54] sm:$0xf] %v360
                %v362 = vld [vmem:[%s352 + $0x70] sm:$0xf]
                %363 = vst [vmem:[%s353 + $0x70] sm:$0xf] %v362
                %v364 = vld [vmem:[%s352 + $0x8c] sm:$0xf]
                %365 = vst [vmem:[%s353 + $0x8c] sm:$0xf] %v364
                %v366 = vld [vmem:[%s352 + $0xa8] sm:$0xf]
                %367 = vst [vmem:[%s353 + $0xa8] sm:$0xf] %v366
                %v368 = vld [vmem:[%s352 + $0xc4] sm:$0xf]
                %369 = vst [vmem:[%s353 + $0xc4] sm:$0xf] %v368
                %v370 = vld [vmem:[%s352 + $0x1c0] sm:$0xf]
                %371 = vst [vmem:[%s353 + $0xe0] sm:$0xf] %v370
                %v372 = vld [vmem:[%s352 + $0x1dc] sm:$0xf]
                %373 = vst [vmem:[%s353 + $0xfc] sm:$0xf] %v372
                %v374 = vld [vmem:[%s352 + $0x1f8] sm:$0xf]
                %375 = vst [vmem:[%s353 + $0x118] sm:$0xf] %v374
                %v376 = vld [vmem:[%s352 + $0x214] sm:$0xf]
                %377 = vst [vmem:[%s353 + $0x134] sm:$0xf] %v376
                %v378 = vld [vmem:[%s352 + $0x230] sm:$0xf]
                %379 = vst [vmem:[%s353 + $0x150] sm:$0xf] %v378
                %v380 = vld [vmem:[%s352 + $0x24c] sm:$0xf]
                %381 = vst [vmem:[%s353 + $0x16c] sm:$0xf] %v380
                %v382 = vld [vmem:[%s352 + $0x268] sm:$0xf]
                %383 = vst [vmem:[%s353 + $0x188] sm:$0xf] %v382
                %v384 = vld [vmem:[%s352 + $0x284] sm:$0xf]
                %385 = vst [vmem:[%s353 + $0x1a4] sm:$0xf] %v384
                %v386 = vld [vmem:[%s352 + $0x380] sm:$0xf]
                %387 = vst [vmem:[%s353 + $0x1c0] sm:$0xf] %v386
                %v388 = vld [vmem:[%s352 + $0x39c] sm:$0xf]
                %389 = vst [vmem:[%s353 + $0x1dc] sm:$0xf] %v388
                %v390 = vld [vmem:[%s352 + $0x3b8] sm:$0xf]
                %391 = vst [vmem:[%s353 + $0x1f8] sm:$0xf] %v390
                %v392 = vld [vmem:[%s352 + $0x3d4] sm:$0xf]
                %393 = vst [vmem:[%s353 + $0x214] sm:$0xf] %v392
                %v394 = vld [vmem:[%s352 + $0x3f0] sm:$0xf]
                %395 = vst [vmem:[%s353 + $0x230] sm:$0xf] %v394
                %v396 = vld [vmem:[%s352 + $0x40c] sm:$0xf]
                %397 = vst [vmem:[%s353 + $0x24c] sm:$0xf] %v396
                %v398 = vld [vmem:[%s352 + $0x428] sm:$0xf]
                %399 = vst [vmem:[%s353 + $0x268] sm:$0xf] %v398
                %v400 = vld [vmem:[%s352 + $0x444] sm:$0xf]
                %401 = vst [vmem:[%s353 + $0x284] sm:$0xf] %v400
                %v402 = vld [vmem:[%s352 + $0x540] sm:$0xf]
                %403 = vst [vmem:[%s353 + $0x2a0] sm:$0xf] %v402
                %v404 = vld [vmem:[%s352 + $0x55c] sm:$0xf]
                %405 = vst [vmem:[%s353 + $0x2bc] sm:$0xf] %v404
                %v406 = vld [vmem:[%s352 + $0x578] sm:$0xf]
                %407 = vst [vmem:[%s353 + $0x2d8] sm:$0xf] %v406
                %v408 = vld [vmem:[%s352 + $0x594] sm:$0xf]
                %409 = vst [vmem:[%s353 + $0x2f4] sm:$0xf] %v408
                %v410 = vld [vmem:[%s352 + $0x5b0] sm:$0xf]
                %411 = vst [vmem:[%s353 + $0x310] sm:$0xf] %v410
                %v412 = vld [vmem:[%s352 + $0x5cc] sm:$0xf]
                %413 = vst [vmem:[%s353 + $0x32c] sm:$0xf] %v412
                %v414 = vld [vmem:[%s352 + $0x5e8] sm:$0xf]
                %415 = vst [vmem:[%s353 + $0x348] sm:$0xf] %v414
                %v416 = vld [vmem:[%s352 + $0x604] sm:$0xf]
                %417 = vst [vmem:[%s353 + $0x364] sm:$0xf] %v416
              $region48: #{model_forward.5} parent=35 // loop_footer
                %s351 = sadd.s32 1, %s347
              $region49: #{model_forward.5} parent=35 // loop_footer_branch
                %346 = sbr.rel target = $region45
              $region50: #{model_forward.5} parent=35 // loop_exit
                _
            $region36: #{model_forward.5} parent=31 // pred_fallthru
              _
          $region32: #{model_forward.5} parent=27 // pred_fallthru
            _
          %418 = vnop
        $region28: #{model_forward.5} parent=23 // pred_fallthru
          _
      $region24: #{model_forward.5} parent=5 // pred_fallthru
        _
      %p419 = scmp.le.s32.totalorder 1, %s9
      %p420 = scmp.lt.s32.totalorder %s9, 3
      %p421 = pnand %p419, %p420
      %p422 = pneg %p421
      // Predicated region
      $region51: #{model_forward.5} parent=5 // pred_check
        _
      $region52: #{model_forward.5} parent=5 // pred_check_branch
        %424 = sbr.rel (%p421) target = $region54
      $region53: #{model_forward.5} parent=5 // pred_region
        %s425 = ssub.s32 %s9, 1
        %s426 = sand.u32 %s22, 1
        %s427 = sand.u32 %s22, 1
        %s428 = smul.addr %s427, 896
        %s429 = scalar_lea.vmem [#allocation2], %s428
        // Predicated region
        $region55: #{model_forward.5} parent=53 // pred_check
          %p430 = pneg %p35
        $region56: #{model_forward.5} parent=53 // pred_check_branch
          %432 = sbr.rel (%p430) target = $region58
        $region57: #{model_forward.5} parent=53 // pred_region
          _
        $region58: #{model_forward.5} parent=53 // pred_fallthru
          _
        %s433 = sand.u32 %s22, 1
        %s434 = sand.u32 %s22, 1
        %s435 = smul.addr %s434, 896
        %s436 = scalar_lea.vmem [#allocation2], %s435
        %p437 = pneg %p35
        %p438 = pneg %p32
        %p439 = pneg %p56
        %p440 = pneg %p53
        %p441 = pneg %p77
        %p442 = pneg %p74
        %p443 = pneg %p103
        %p444 = pneg %p100
        %s445 = smul.u32 8, %s14
        %p446 = scmp.lt.s32.totalorder %s445, 15
        %s447 = scalar_select %p446, %s445, 15
        %s448 = smul.addr %s447, 4
        %s449 = scalar_lea.vmem %s3, %s448
        %s450 = smul.u32 8, %s14
        %s451 = smul.u32 8, %s14
        %p452 = scmp.lt.s32.totalorder %s451, 15
        %s453 = scalar_select %p452, %s451, 15
        %s454 = smul.addr %s453, 4
        %s455 = scalar_lea.vmem %s3, %s454
        %s456 = smul.u32 8, %s14
        %v458 = vld [vmem:[%s429] sm:$0xff]
        %v459 = vld [vmem:[%s429 + $0x8] sm:$0xff]
        %v460 = vld [vmem:[%s429 + $0x10] sm:$0xff]
        %v461 = vld [vmem:[%s429 + $0x18] sm:$0xf]
        %v462 = vld [vmem:[%s429 + $0x1c] sm:$0xff]
        %v463 = vld [vmem:[%s429 + $0x24] sm:$0xff]
        %v464 = vld [vmem:[%s429 + $0x2c] sm:$0xff]
        %v465 = vld [vmem:[%s429 + $0x34] sm:$0xf]
        %v466 = vld [vmem:[%s429 + $0x38] sm:$0xff]
        %v467 = vld [vmem:[%s429 + $0x40] sm:$0xff]
        %v468 = vld [vmem:[%s429 + $0x48] sm:$0xff]
        %v469 = vld [vmem:[%s429 + $0x50] sm:$0xf]
        %v470 = vld [vmem:[%s429 + $0x54] sm:$0xff]
        %v471 = vld [vmem:[%s429 + $0x5c] sm:$0xff]
        %v472 = vld [vmem:[%s429 + $0x64] sm:$0xff]
        %v473 = vld [vmem:[%s429 + $0x6c] sm:$0xf]
        %v474 = vld [vmem:[%s429 + $0x70] sm:$0xff]
        %v475 = vld [vmem:[%s429 + $0x78] sm:$0xff]
        %v476 = vld [vmem:[%s429 + $0x80] sm:$0xff]
        %v477 = vld [vmem:[%s429 + $0x88] sm:$0xf]
        %v478 = vld [vmem:[%s429 + $0x8c] sm:$0xff]
        %v479 = vld [vmem:[%s429 + $0x94] sm:$0xff]
        %v480 = vld [vmem:[%s429 + $0x9c] sm:$0xff]
        %v481 = vld [vmem:[%s429 + $0xa4] sm:$0xf]
        %v482 = vld [vmem:[%s429 + $0xa8] sm:$0xff]
        %v483 = vld [vmem:[%s429 + $0xb0] sm:$0xff]
        %v484 = vld [vmem:[%s429 + $0xb8] sm:$0xff]
        %v485 = vld [vmem:[%s429 + $0xc0] sm:$0xf]
        %v486 = vld [vmem:[%s429 + $0xc4] sm:$0xff]
        %v487 = vld [vmem:[%s429 + $0xcc] sm:$0xff]
        %v488 = vld [vmem:[%s429 + $0xd4] sm:$0xff]
        %v489 = vld [vmem:[%s429 + $0xdc] sm:$0xf]
        %v490 = vld [vmem:[%s429 + $0xe0] sm:$0xff]
        %v491 = vld [vmem:[%s429 + $0xe8] sm:$0xff]
        %v492 = vld [vmem:[%s429 + $0xf0] sm:$0xff]
        %v493 = vld [vmem:[%s429 + $0xf8] sm:$0xf]
        %v494 = vld [vmem:[%s429 + $0xfc] sm:$0xff]
        %v495 = vld [vmem:[%s429 + $0x104] sm:$0xff]
        %v496 = vld [vmem:[%s429 + $0x10c] sm:$0xff]
        %v497 = vld [vmem:[%s429 + $0x114] sm:$0xf]
        %v498 = vld [vmem:[%s429 + $0x118] sm:$0xff]
        %v499 = vld [vmem:[%s429 + $0x120] sm:$0xff]
        %v500 = vld [vmem:[%s429 + $0x128] sm:$0xff]
        %v501 = vld [vmem:[%s429 + $0x130] sm:$0xf]
        %v502 = vld [vmem:[%s429 + $0x134] sm:$0xff]
        %v503 = vld [vmem:[%s429 + $0x13c] sm:$0xff]
        %v504 = vld [vmem:[%s429 + $0x144] sm:$0xff]
        %v505 = vld [vmem:[%s429 + $0x14c] sm:$0xf]
        %v506 = vld [vmem:[%s429 + $0x150] sm:$0xff]
        %v507 = vld [vmem:[%s429 + $0x158] sm:$0xff]
        %v508 = vld [vmem:[%s429 + $0x160] sm:$0xff]
        %v509 = vld [vmem:[%s429 + $0x168] sm:$0xf]
        %v510 = vld [vmem:[%s429 + $0x16c] sm:$0xff]
        %v511 = vld [vmem:[%s429 + $0x174] sm:$0xff]
        %v512 = vld [vmem:[%s429 + $0x17c] sm:$0xff]
        %v513 = vld [vmem:[%s429 + $0x184] sm:$0xf]
        %v514 = vld [vmem:[%s429 + $0x188] sm:$0xff]
        %v515 = vld [vmem:[%s429 + $0x190] sm:$0xff]
        %v516 = vld [vmem:[%s429 + $0x198] sm:$0xff]
        %v517 = vld [vmem:[%s429 + $0x1a0] sm:$0xf]
        %v518 = vld [vmem:[%s429 + $0x1a4] sm:$0xff]
        %v519 = vld [vmem:[%s429 + $0x1ac] sm:$0xff]
        %v520 = vld [vmem:[%s429 + $0x1b4] sm:$0xff]
        %v521 = vld [vmem:[%s429 + $0x1bc] sm:$0xf]
        %v522 = vld [vmem:[%s429 + $0x1c0] sm:$0xff]
        %v523 = vld [vmem:[%s429 + $0x1c8] sm:$0xff]
        %v524 = vld [vmem:[%s429 + $0x1d0] sm:$0xff]
        %v525 = vld [vmem:[%s429 + $0x1d8] sm:$0xf]
        %v526 = vld [vmem:[%s429 + $0x1dc] sm:$0xff]
        %v527 = vld [vmem:[%s429 + $0x1e4] sm:$0xff]
        %v528 = vld [vmem:[%s429 + $0x1ec] sm:$0xff]
        %v529 = vld [vmem:[%s429 + $0x1f4] sm:$0xf]
        %v530 = vld [vmem:[%s429 + $0x1f8] sm:$0xff]
        %v531 = vld [vmem:[%s429 + $0x200] sm:$0xff]
        %v532 = vld [vmem:[%s429 + $0x208] sm:$0xff]
        %v533 = vld [vmem:[%s429 + $0x210] sm:$0xf]
        %v534 = vld [vmem:[%s429 + $0x214] sm:$0xff]
        %v535 = vld [vmem:[%s429 + $0x21c] sm:$0xff]
        %v536 = vld [vmem:[%s429 + $0x224] sm:$0xff]
        %v537 = vld [vmem:[%s429 + $0x22c] sm:$0xf]
        %v538 = vld [vmem:[%s429 + $0x230] sm:$0xff]
        %v539 = vld [vmem:[%s429 + $0x238] sm:$0xff]
        %v540 = vld [vmem:[%s429 + $0x240] sm:$0xff]
        %v541 = vld [vmem:[%s429 + $0x248] sm:$0xf]
        %v542 = vld [vmem:[%s429 + $0x24c] sm:$0xff]
        %v543 = vld [vmem:[%s429 + $0x254] sm:$0xff]
        %v544 = vld [vmem:[%s429 + $0x25c] sm:$0xff]
        %v545 = vld [vmem:[%s429 + $0x264] sm:$0xf]
        %v546 = vld [vmem:[%s429 + $0x268] sm:$0xff]
        %v547 = vld [vmem:[%s429 + $0x270] sm:$0xff]
        %v548 = vld [vmem:[%s429 + $0x278] sm:$0xff]
        %v549 = vld [vmem:[%s429 + $0x280] sm:$0xf]
        %v550 = vld [vmem:[%s429 + $0x284] sm:$0xff]
        %v551 = vld [vmem:[%s429 + $0x28c] sm:$0xff]
        %v552 = vld [vmem:[%s429 + $0x294] sm:$0xff]
        %v553 = vld [vmem:[%s429 + $0x29c] sm:$0xf]
        %v554 = vld [vmem:[%s429 + $0x2a0] sm:$0xff]
        %v555 = vld [vmem:[%s429 + $0x2a8] sm:$0xff]
        %v556 = vld [vmem:[%s429 + $0x2b0] sm:$0xff]
        %v557 = vld [vmem:[%s429 + $0x2b8] sm:$0xf]
        %v558 = vld [vmem:[%s429 + $0x2bc] sm:$0xff]
        %v559 = vld [vmem:[%s429 + $0x2c4] sm:$0xff]
        %v560 = vld [vmem:[%s429 + $0x2cc] sm:$0xff]
        %v561 = vld [vmem:[%s429 + $0x2d4] sm:$0xf]
        %v562 = vld [vmem:[%s429 + $0x2d8] sm:$0xff]
        %v563 = vld [vmem:[%s429 + $0x2e0] sm:$0xff]
        %v564 = vld [vmem:[%s429 + $0x2e8] sm:$0xff]
        %v565 = vld [vmem:[%s429 + $0x2f0] sm:$0xf]
        %v566 = vld [vmem:[%s429 + $0x2f4] sm:$0xff]
        %v567 = vld [vmem:[%s429 + $0x2fc] sm:$0xff]
        %v568 = vld [vmem:[%s429 + $0x304] sm:$0xff]
        %v569 = vld [vmem:[%s429 + $0x30c] sm:$0xf]
        %v570 = vld [vmem:[%s429 + $0x310] sm:$0xff]
        %v571 = vld [vmem:[%s429 + $0x318] sm:$0xff]
        %v572 = vld [vmem:[%s429 + $0x320] sm:$0xff]
        %v573 = vld [vmem:[%s429 + $0x328] sm:$0xf]
        %v574 = vld [vmem:[%s429 + $0x32c] sm:$0xff]
        %v575 = vld [vmem:[%s429 + $0x334] sm:$0xff]
        %v576 = vld [vmem:[%s429 + $0x33c] sm:$0xff]
        %v577 = vld [vmem:[%s429 + $0x344] sm:$0xf]
        %v578 = vld [vmem:[%s429 + $0x348] sm:$0xff]
        %v579 = vld [vmem:[%s429 + $0x350] sm:$0xff]
        %v580 = vld [vmem:[%s429 + $0x358] sm:$0xff]
        %v581 = vld [vmem:[%s429 + $0x360] sm:$0xf]
        %v582 = vld [vmem:[%s429 + $0x364] sm:$0xff]
        %v583 = vld [vmem:[%s429 + $0x36c] sm:$0xff]
        %v584 = vld [vmem:[%s429 + $0x374] sm:$0xff]
        %v585 = vld [vmem:[%s429 + $0x37c] sm:$0xf]
        %v586 = vld [vmem:[%s1] sm:$0xf]
        %v587 = vld [vmem:[%s1 + $0x4] sm:$0xf]
        %v588 = vld [vmem:[%s1 + $0x8] sm:$0xf]
        %v589 = vld [vmem:[%s1 + $0xc] sm:$0xf]
        %v590 = vld [vmem:[%s1 + $0x10] sm:$0xf]
        %v591 = vld [vmem:[%s1 + $0x14] sm:$0xf]
        %v592 = vld [vmem:[%s1 + $0x18] sm:$0xf]
        %v593 = vld [vmem:[%s1 + $0x1c] sm:$0xf]
        %v594 = vld [vmem:[%s1 + $0x20] sm:$0xf]
        %v595 = vld [vmem:[%s1 + $0x24] sm:$0xf]
        %v596 = vld [vmem:[%s1 + $0x28] sm:$0xf]
        %v597 = vld [vmem:[%s1 + $0x2c] sm:$0xf]
        %v598 = vld [vmem:[%s1 + $0x30] sm:$0xf]
        %v599 = vld [vmem:[%s1 + $0x34] sm:$0xf]
        %v600 = vld [vmem:[%s1 + $0x38] sm:$0xf]
        %v601 = vld [vmem:[%s1 + $0x3c] sm:$0xf]
        %v602 = vld [vmem:[%s1 + $0x40] sm:$0xf]
        %v603 = vld [vmem:[%s1 + $0x44] sm:$0xf]
        %v604 = vld [vmem:[%s1 + $0x48] sm:$0xf]
        %v605 = vld [vmem:[%s1 + $0x4c] sm:$0xf]
        %v606 = vld [vmem:[%s1 + $0x50] sm:$0xf]
        %v607 = vld [vmem:[%s1 + $0x54] sm:$0xf]
        %v608 = vld [vmem:[%s1 + $0x58] sm:$0xf]
        %v609 = vld [vmem:[%s1 + $0x5c] sm:$0xf]
        %v610 = vld [vmem:[%s1 + $0x60] sm:$0xf]
        %v611 = vld [vmem:[%s1 + $0x64] sm:$0xf]
        %v612 = vld [vmem:[%s1 + $0x68] sm:$0xf]
        %v613 = vld [vmem:[%s1 + $0x6c] sm:$0xf]
        %v614 = vld [vmem:[%s1 + $0x70] sm:$0xf]
        %v615 = vld [vmem:[%s1 + $0x74] sm:$0xf]
        %v616 = vld [vmem:[%s1 + $0x78] sm:$0xf]
        %v617 = vld [vmem:[%s1 + $0x7c] sm:$0xf]
        %v618 = vld [vmem:[%s1 + $0x80] sm:$0xf]
        %v619 = vld [vmem:[%s1 + $0x84] sm:$0xf]
        %v620 = vld [vmem:[%s1 + $0x88] sm:$0xf]
        %v621 = vld [vmem:[%s1 + $0x8c] sm:$0xf]
        %v622 = vld [vmem:[%s1 + $0x90] sm:$0xf]
        %v623 = vld [vmem:[%s1 + $0x94] sm:$0xf]
        %v624 = vld [vmem:[%s1 + $0x98] sm:$0xf]
        %v625 = vld [vmem:[%s1 + $0x9c] sm:$0xf]
        %v626 = vld [vmem:[%s1 + $0xa0] sm:$0xf]
        %v627 = vld [vmem:[%s1 + $0xa4] sm:$0xf]
        %v628 = vld [vmem:[%s1 + $0xa8] sm:$0xf]
        %v629 = vld [vmem:[%s1 + $0xac] sm:$0xf]
        %v630 = vld [vmem:[%s1 + $0xb0] sm:$0xf]
        %v631 = vld [vmem:[%s1 + $0xb4] sm:$0xf]
        %v632 = vld [vmem:[%s1 + $0xb8] sm:$0xf]
        %v633 = vld [vmem:[%s1 + $0xbc] sm:$0xf]
        %v634 = vld [vmem:[%s1 + $0xc0] sm:$0xf]
        %v635 = vld [vmem:[%s1 + $0xc4] sm:$0xf]
        %v636 = vld [vmem:[%s1 + $0xc8] sm:$0xf]
        %v637 = vld [vmem:[%s1 + $0xcc] sm:$0xf]
        %v638 = vld [vmem:[%s1 + $0xd0] sm:$0xf]
        %v639 = vld [vmem:[%s1 + $0xd4] sm:$0xf]
        %v640 = vld [vmem:[%s1 + $0xd8] sm:$0xf]
        %v641 = vld [vmem:[%s1 + $0xdc] sm:$0xf]
        %v642 = vld [vmem:[%s1 + $0xe0] sm:$0xf]
        %v643 = vld [vmem:[%s1 + $0xe4] sm:$0xf]
        %v644 = vld [vmem:[%s1 + $0xe8] sm:$0xf]
        %v645 = vld [vmem:[%s1 + $0xec] sm:$0xf]
        %v646 = vld [vmem:[%s1 + $0xf0] sm:$0xf]
        %v647 = vld [vmem:[%s1 + $0xf4] sm:$0xf]
        %v648 = vld [vmem:[%s1 + $0xf8] sm:$0xf]
        %v649 = vld [vmem:[%s1 + $0xfc] sm:$0xf]
        %v650 = vld [vmem:[%s1 + $0x100] sm:$0xf]
        %v651 = vld [vmem:[%s1 + $0x104] sm:$0xf]
        %v652 = vld [vmem:[%s1 + $0x108] sm:$0xf]
        %v653 = vld [vmem:[%s1 + $0x10c] sm:$0xf]
        %v654 = vld [vmem:[%s1 + $0x110] sm:$0xf]
        %v655 = vld [vmem:[%s1 + $0x114] sm:$0xf]
        %v656 = vld [vmem:[%s1 + $0x118] sm:$0xf]
        %v657 = vld [vmem:[%s1 + $0x11c] sm:$0xf]
        %v658 = vld [vmem:[%s1 + $0x120] sm:$0xf]
        %v659 = vld [vmem:[%s1 + $0x124] sm:$0xf]
        %v660 = vld [vmem:[%s1 + $0x128] sm:$0xf]
        %v661 = vld [vmem:[%s1 + $0x12c] sm:$0xf]
        %v662 = vld [vmem:[%s1 + $0x130] sm:$0xf]
        %v663 = vld [vmem:[%s1 + $0x134] sm:$0xf]
        %v664 = vld [vmem:[%s1 + $0x138] sm:$0xf]
        %v665 = vld [vmem:[%s1 + $0x13c] sm:$0xf]
        %v666 = vld [vmem:[%s1 + $0x140] sm:$0xf]
        %v667 = vld [vmem:[%s1 + $0x144] sm:$0xf]
        %v668 = vld [vmem:[%s1 + $0x148] sm:$0xf]
        %v669 = vld [vmem:[%s1 + $0x14c] sm:$0xf]
        %v670 = vld [vmem:[%s1 + $0x150] sm:$0xf]
        %v671 = vld [vmem:[%s1 + $0x154] sm:$0xf]
        %v672 = vld [vmem:[%s1 + $0x158] sm:$0xf]
        %v673 = vld [vmem:[%s1 + $0x15c] sm:$0xf]
        %v674 = vld [vmem:[%s1 + $0x160] sm:$0xf]
        %v675 = vld [vmem:[%s1 + $0x164] sm:$0xf]
        %v676 = vld [vmem:[%s1 + $0x168] sm:$0xf]
        %v677 = vld [vmem:[%s1 + $0x16c] sm:$0xf]
        %v678 = vld [vmem:[%s1 + $0x170] sm:$0xf]
        %v679 = vld [vmem:[%s1 + $0x174] sm:$0xf]
        %v680 = vld [vmem:[%s1 + $0x178] sm:$0xf]
        %v681 = vld [vmem:[%s1 + $0x17c] sm:$0xf]
        %v682 = vld [vmem:[%s1 + $0x180] sm:$0xf]
        %v683 = vld [vmem:[%s1 + $0x184] sm:$0xf]
        %v684 = vld [vmem:[%s1 + $0x188] sm:$0xf]
        %v685 = vld [vmem:[%s1 + $0x18c] sm:$0xf]
        %v814 = vunpack.c.l.b16 %v458
        %v815 = vunpack.c.h.b16 %v458
        %v816 = vunpack.c.l.b16 %v459
        %v817 = vunpack.c.h.b16 %v459
        %v818 = vunpack.c.l.b16 %v460
        %v819 = vunpack.c.h.b16 %v460
        %v820 = vunpack.c.l.b16 %v461
        %v821 = vunpack.c.l.b16 %v462
        %v822 = vunpack.c.h.b16 %v462
        %v823 = vunpack.c.l.b16 %v463
        %v824 = vunpack.c.h.b16 %v463
        %v825 = vunpack.c.l.b16 %v464
        %v826 = vunpack.c.h.b16 %v464
        %v827 = vunpack.c.l.b16 %v465
        %v828 = vunpack.c.l.b16 %v466
        %v829 = vunpack.c.h.b16 %v466
        %v830 = vunpack.c.l.b16 %v467
        %v831 = vunpack.c.h.b16 %v467
        %v832 = vunpack.c.l.b16 %v468
        %v833 = vunpack.c.h.b16 %v468
        %v834 = vunpack.c.l.b16 %v469
        %v835 = vunpack.c.l.b16 %v470
        %v836 = vunpack.c.h.b16 %v470
        %v837 = vunpack.c.l.b16 %v471
        %v838 = vunpack.c.h.b16 %v471
        %v839 = vunpack.c.l.b16 %v472
        %v840 = vunpack.c.h.b16 %v472
        %v841 = vunpack.c.l.b16 %v473
        %v842 = vunpack.c.l.b16 %v474
        %v843 = vunpack.c.h.b16 %v474
        %v844 = vunpack.c.l.b16 %v475
        %v845 = vunpack.c.h.b16 %v475
        %v846 = vunpack.c.l.b16 %v476
        %v847 = vunpack.c.h.b16 %v476
        %v848 = vunpack.c.l.b16 %v477
        %v849 = vunpack.c.l.b16 %v478
        %v850 = vunpack.c.h.b16 %v478
        %v851 = vunpack.c.l.b16 %v479
        %v852 = vunpack.c.h.b16 %v479
        %v853 = vunpack.c.l.b16 %v480
        %v854 = vunpack.c.h.b16 %v480
        %v855 = vunpack.c.l.b16 %v481
        %v856 = vunpack.c.l.b16 %v482
        %v857 = vunpack.c.h.b16 %v482
        %v858 = vunpack.c.l.b16 %v483
        %v859 = vunpack.c.h.b16 %v483
        %v860 = vunpack.c.l.b16 %v484
        %v861 = vunpack.c.h.b16 %v484
        %v862 = vunpack.c.l.b16 %v485
        %v863 = vunpack.c.l.b16 %v486
        %v864 = vunpack.c.h.b16 %v486
        %v865 = vunpack.c.l.b16 %v487
        %v866 = vunpack.c.h.b16 %v487
        %v867 = vunpack.c.l.b16 %v488
        %v868 = vunpack.c.h.b16 %v488
        %v869 = vunpack.c.l.b16 %v489
        %v870 = vunpack.c.l.b16 %v490
        %v871 = vunpack.c.h.b16 %v490
        %v872 = vunpack.c.l.b16 %v491
        %v873 = vunpack.c.h.b16 %v491
        %v874 = vunpack.c.l.b16 %v492
        %v875 = vunpack.c.h.b16 %v492
        %v876 = vunpack.c.l.b16 %v493
        %v877 = vunpack.c.l.b16 %v494
        %v878 = vunpack.c.h.b16 %v494
        %v879 = vunpack.c.l.b16 %v495
        %v880 = vunpack.c.h.b16 %v495
        %v881 = vunpack.c.l.b16 %v496
        %v882 = vunpack.c.h.b16 %v496
        %v883 = vunpack.c.l.b16 %v497
        %v884 = vunpack.c.l.b16 %v498
        %v885 = vunpack.c.h.b16 %v498
        %v886 = vunpack.c.l.b16 %v499
        %v887 = vunpack.c.h.b16 %v499
        %v888 = vunpack.c.l.b16 %v500
        %v889 = vunpack.c.h.b16 %v500
        %v890 = vunpack.c.l.b16 %v501
        %v891 = vunpack.c.l.b16 %v502
        %v892 = vunpack.c.h.b16 %v502
        %v893 = vunpack.c.l.b16 %v503
        %v894 = vunpack.c.h.b16 %v503
        %v895 = vunpack.c.l.b16 %v504
        %v896 = vunpack.c.h.b16 %v504
        %v897 = vunpack.c.l.b16 %v505
        %v898 = vunpack.c.l.b16 %v506
        %v899 = vunpack.c.h.b16 %v506
        %v900 = vunpack.c.l.b16 %v507
        %v901 = vunpack.c.h.b16 %v507
        %v902 = vunpack.c.l.b16 %v508
        %v903 = vunpack.c.h.b16 %v508
        %v904 = vunpack.c.l.b16 %v509
        %v905 = vunpack.c.l.b16 %v510
        %v906 = vunpack.c.h.b16 %v510
        %v907 = vunpack.c.l.b16 %v511
        %v908 = vunpack.c.h.b16 %v511
        %v909 = vunpack.c.l.b16 %v512
        %v910 = vunpack.c.h.b16 %v512
        %v911 = vunpack.c.l.b16 %v513
        %v912 = vunpack.c.l.b16 %v514
        %v913 = vunpack.c.h.b16 %v514
        %v914 = vunpack.c.l.b16 %v515
        %v915 = vunpack.c.h.b16 %v515
        %v916 = vunpack.c.l.b16 %v516
        %v917 = vunpack.c.h.b16 %v516
        %v918 = vunpack.c.l.b16 %v517
        %v919 = vunpack.c.l.b16 %v518
        %v920 = vunpack.c.h.b16 %v518
        %v921 = vunpack.c.l.b16 %v519
        %v922 = vunpack.c.h.b16 %v519
        %v923 = vunpack.c.l.b16 %v520
        %v924 = vunpack.c.h.b16 %v520
        %v925 = vunpack.c.l.b16 %v521
        %v926 = vunpack.c.l.b16 %v522
        %v927 = vunpack.c.h.b16 %v522
        %v928 = vunpack.c.l.b16 %v523
        %v929 = vunpack.c.h.b16 %v523
        %v930 = vunpack.c.l.b16 %v524
        %v931 = vunpack.c.h.b16 %v524
        %v932 = vunpack.c.l.b16 %v525
        %v933 = vunpack.c.l.b16 %v526
        %v934 = vunpack.c.h.b16 %v526
        %v935 = vunpack.c.l.b16 %v527
        %v936 = vunpack.c.h.b16 %v527
        %v937 = vunpack.c.l.b16 %v528
        %v938 = vunpack.c.h.b16 %v528
        %v939 = vunpack.c.l.b16 %v529
        %v940 = vunpack.c.l.b16 %v530
        %v941 = vunpack.c.h.b16 %v530
        %v942 = vunpack.c.l.b16 %v531
        %v943 = vunpack.c.h.b16 %v531
        %v944 = vunpack.c.l.b16 %v532
        %v945 = vunpack.c.h.b16 %v532
        %v946 = vunpack.c.l.b16 %v533
        %v947 = vunpack.c.l.b16 %v534
        %v948 = vunpack.c.h.b16 %v534
        %v949 = vunpack.c.l.b16 %v535
        %v950 = vunpack.c.h.b16 %v535
        %v951 = vunpack.c.l.b16 %v536
        %v952 = vunpack.c.h.b16 %v536
        %v953 = vunpack.c.l.b16 %v537
        %v954 = vunpack.c.l.b16 %v538
        %v955 = vunpack.c.h.b16 %v538
        %v956 = vunpack.c.l.b16 %v539
        %v957 = vunpack.c.h.b16 %v539
        %v958 = vunpack.c.l.b16 %v540
        %v959 = vunpack.c.h.b16 %v540
        %v960 = vunpack.c.l.b16 %v541
        %v961 = vunpack.c.l.b16 %v542
        %v962 = vunpack.c.h.b16 %v542
        %v963 = vunpack.c.l.b16 %v543
        %v964 = vunpack.c.h.b16 %v543
        %v965 = vunpack.c.l.b16 %v544
        %v966 = vunpack.c.h.b16 %v544
        %v967 = vunpack.c.l.b16 %v545
        %v968 = vunpack.c.l.b16 %v546
        %v969 = vunpack.c.h.b16 %v546
        %v970 = vunpack.c.l.b16 %v547
        %v971 = vunpack.c.h.b16 %v547
        %v972 = vunpack.c.l.b16 %v548
        %v973 = vunpack.c.h.b16 %v548
        %v974 = vunpack.c.l.b16 %v549
        %v975 = vunpack.c.l.b16 %v550
        %v976 = vunpack.c.h.b16 %v550
        %v977 = vunpack.c.l.b16 %v551
        %v978 = vunpack.c.h.b16 %v551
        %v979 = vunpack.c.l.b16 %v552
        %v980 = vunpack.c.h.b16 %v552
        %v981 = vunpack.c.l.b16 %v553
        %v982 = vunpack.c.l.b16 %v554
        %v983 = vunpack.c.h.b16 %v554
        %v984 = vunpack.c.l.b16 %v555
        %v985 = vunpack.c.h.b16 %v555
        %v986 = vunpack.c.l.b16 %v556
        %v987 = vunpack.c.h.b16 %v556
        %v988 = vunpack.c.l.b16 %v557
        %v989 = vunpack.c.l.b16 %v558
        %v990 = vunpack.c.h.b16 %v558
        %v991 = vunpack.c.l.b16 %v559
        %v992 = vunpack.c.h.b16 %v559
        %v993 = vunpack.c.l.b16 %v560
        %v994 = vunpack.c.h.b16 %v560
        %v995 = vunpack.c.l.b16 %v561
        %v996 = vunpack.c.l.b16 %v562
        %v997 = vunpack.c.h.b16 %v562
        %v998 = vunpack.c.l.b16 %v563
        %v999 = vunpack.c.h.b16 %v563
        %v1000 = vunpack.c.l.b16 %v564
        %v1001 = vunpack.c.h.b16 %v564
        %v1002 = vunpack.c.l.b16 %v565
        %v1003 = vunpack.c.l.b16 %v566
        %v1004 = vunpack.c.h.b16 %v566
        %v1005 = vunpack.c.l.b16 %v567
        %v1006 = vunpack.c.h.b16 %v567
        %v1007 = vunpack.c.l.b16 %v568
        %v1008 = vunpack.c.h.b16 %v568
        %v1009 = vunpack.c.l.b16 %v569
        %v1010 = vunpack.c.l.b16 %v570
        %v1011 = vunpack.c.h.b16 %v570
        %v1012 = vunpack.c.l.b16 %v571
        %v1013 = vunpack.c.h.b16 %v571
        %v1014 = vunpack.c.l.b16 %v572
        %v1015 = vunpack.c.h.b16 %v572
        %v1016 = vunpack.c.l.b16 %v573
        %v1017 = vunpack.c.l.b16 %v574
        %v1018 = vunpack.c.h.b16 %v574
        %v1019 = vunpack.c.l.b16 %v575
        %v1020 = vunpack.c.h.b16 %v575
        %v1021 = vunpack.c.l.b16 %v576
        %v1022 = vunpack.c.h.b16 %v576
        %v1023 = vunpack.c.l.b16 %v577
        %v1024 = vunpack.c.l.b16 %v578
        %v1025 = vunpack.c.h.b16 %v578
        %v1026 = vunpack.c.l.b16 %v579
        %v1027 = vunpack.c.h.b16 %v579
        %v1028 = vunpack.c.l.b16 %v580
        %v1029 = vunpack.c.h.b16 %v580
        %v1030 = vunpack.c.l.b16 %v581
        %v1031 = vunpack.c.l.b16 %v582
        %v1032 = vunpack.c.h.b16 %v582
        %v1033 = vunpack.c.l.b16 %v583
        %v1034 = vunpack.c.h.b16 %v583
        %v1035 = vunpack.c.l.b16 %v584
        %v1036 = vunpack.c.h.b16 %v584
        %v1037 = vunpack.c.l.b16 %v585
        %v1038 = vpack.c.b16 %v821, %v814
        %v1039 = vpack.c.b16 %v822, %v815
        %v1040 = vpack.c.b16 %v823, %v816
        %v1041 = vpack.c.b16 %v824, %v817
        %v1042 = vpack.c.b16 %v825, %v818
        %v1043 = vpack.c.b16 %v826, %v819
        %v1044 = vpack.c.b16 %v827, %v820
        %v1045 = vpack.c.b16 %v835, %v828
        %v1046 = vpack.c.b16 %v836, %v829
        %v1047 = vpack.c.b16 %v837, %v830
        %v1048 = vpack.c.b16 %v838, %v831
        %v1049 = vpack.c.b16 %v839, %v832
        %v1050 = vpack.c.b16 %v840, %v833
        %v1051 = vpack.c.b16 %v841, %v834
        %v1052 = vpack.c.b16 %v849, %v842
        %v1053 = vpack.c.b16 %v850, %v843
        %v1054 = vpack.c.b16 %v851, %v844
        %v1055 = vpack.c.b16 %v852, %v845
        %v1056 = vpack.c.b16 %v853, %v846
        %v1057 = vpack.c.b16 %v854, %v847
        %v1058 = vpack.c.b16 %v855, %v848
        %v1059 = vpack.c.b16 %v863, %v856
        %v1060 = vpack.c.b16 %v864, %v857
        %v1061 = vpack.c.b16 %v865, %v858
        %v1062 = vpack.c.b16 %v866, %v859
        %v1063 = vpack.c.b16 %v867, %v860
        %v1064 = vpack.c.b16 %v868, %v861
        %v1065 = vpack.c.b16 %v869, %v862
        %v1066 = vpack.c.b16 %v877, %v870
        %v1067 = vpack.c.b16 %v878, %v871
        %v1068 = vpack.c.b16 %v879, %v872
        %v1069 = vpack.c.b16 %v880, %v873
        %v1070 = vpack.c.b16 %v881, %v874
        %v1071 = vpack.c.b16 %v882, %v875
        %v1072 = vpack.c.b16 %v883, %v876
        %v1073 = vpack.c.b16 %v891, %v884
        %v1074 = vpack.c.b16 %v892, %v885
        %v1075 = vpack.c.b16 %v893, %v886
        %v1076 = vpack.c.b16 %v894, %v887
        %v1077 = vpack.c.b16 %v895, %v888
        %v1078 = vpack.c.b16 %v896, %v889
        %v1079 = vpack.c.b16 %v897, %v890
        %v1080 = vpack.c.b16 %v905, %v898
        %v1081 = vpack.c.b16 %v906, %v899
        %v1082 = vpack.c.b16 %v907, %v900
        %v1083 = vpack.c.b16 %v908, %v901
        %v1084 = vpack.c.b16 %v909, %v902
        %v1085 = vpack.c.b16 %v910, %v903
        %v1086 = vpack.c.b16 %v911, %v904
        %v1087 = vpack.c.b16 %v919, %v912
        %v1088 = vpack.c.b16 %v920, %v913
        %v1089 = vpack.c.b16 %v921, %v914
        %v1090 = vpack.c.b16 %v922, %v915
        %v1091 = vpack.c.b16 %v923, %v916
        %v1092 = vpack.c.b16 %v924, %v917
        %v1093 = vpack.c.b16 %v925, %v918
        %v1094 = vpack.c.b16 %v933, %v926
        %v1095 = vpack.c.b16 %v934, %v927
        %v1096 = vpack.c.b16 %v935, %v928
        %v1097 = vpack.c.b16 %v936, %v929
        %v1098 = vpack.c.b16 %v937, %v930
        %v1099 = vpack.c.b16 %v938, %v931
        %v1100 = vpack.c.b16 %v939, %v932
        %v1101 = vpack.c.b16 %v947, %v940
        %v1102 = vpack.c.b16 %v948, %v941
        %v1103 = vpack.c.b16 %v949, %v942
        %v1104 = vpack.c.b16 %v950, %v943
        %v1105 = vpack.c.b16 %v951, %v944
        %v1106 = vpack.c.b16 %v952, %v945
        %v1107 = vpack.c.b16 %v953, %v946
        %v1108 = vpack.c.b16 %v961, %v954
        %v1109 = vpack.c.b16 %v962, %v955
        %v1110 = vpack.c.b16 %v963, %v956
        %v1111 = vpack.c.b16 %v964, %v957
        %v1112 = vpack.c.b16 %v965, %v958
        %v1113 = vpack.c.b16 %v966, %v959
        %v1114 = vpack.c.b16 %v967, %v960
        %v1115 = vpack.c.b16 %v975, %v968
        %v1116 = vpack.c.b16 %v976, %v969
        %v1117 = vpack.c.b16 %v977, %v970
        %v1118 = vpack.c.b16 %v978, %v971
        %v1119 = vpack.c.b16 %v979, %v972
        %v1120 = vpack.c.b16 %v980, %v973
        %v1121 = vpack.c.b16 %v981, %v974
        %v1122 = vpack.c.b16 %v989, %v982
        %v1123 = vpack.c.b16 %v990, %v983
        %v1124 = vpack.c.b16 %v991, %v984
        %v1125 = vpack.c.b16 %v992, %v985
        %v1126 = vpack.c.b16 %v993, %v986
        %v1127 = vpack.c.b16 %v994, %v987
        %v1128 = vpack.c.b16 %v995, %v988
        %v1129 = vpack.c.b16 %v1003, %v996
        %v1130 = vpack.c.b16 %v1004, %v997
        %v1131 = vpack.c.b16 %v1005, %v998
        %v1132 = vpack.c.b16 %v1006, %v999
        %v1133 = vpack.c.b16 %v1007, %v1000
        %v1134 = vpack.c.b16 %v1008, %v1001
        %v1135 = vpack.c.b16 %v1009, %v1002
        %v1136 = vpack.c.b16 %v1017, %v1010
        %v1137 = vpack.c.b16 %v1018, %v1011
        %v1138 = vpack.c.b16 %v1019, %v1012
        %v1139 = vpack.c.b16 %v1020, %v1013
        %v1140 = vpack.c.b16 %v1021, %v1014
        %v1141 = vpack.c.b16 %v1022, %v1015
        %v1142 = vpack.c.b16 %v1023, %v1016
        %v1143 = vpack.c.b16 %v1031, %v1024
        %v1144 = vpack.c.b16 %v1032, %v1025
        %v1145 = vpack.c.b16 %v1033, %v1026
        %v1146 = vpack.c.b16 %v1034, %v1027
        %v1147 = vpack.c.b16 %v1035, %v1028
        %v1148 = vpack.c.b16 %v1036, %v1029
        %v1149 = vpack.c.b16 %v1037, %v1030
        %v1346 = vunpack.c.l.b16 %v586
        %v1347 = vunpack.c.l.b16 %v587
        %v1348 = vunpack.c.l.b16 %v588
        %v1349 = vunpack.c.l.b16 %v589
        %v1350 = vunpack.c.l.b16 %v590
        %v1351 = vunpack.c.l.b16 %v591
        %v1352 = vunpack.c.l.b16 %v592
        %v1353 = vunpack.c.l.b16 %v593
        %v1354 = vunpack.c.l.b16 %v594
        %v1355 = vunpack.c.l.b16 %v595
        %v1356 = vunpack.c.l.b16 %v596
        %v1357 = vunpack.c.l.b16 %v597
        %v1358 = vunpack.c.l.b16 %v598
        %v1359 = vunpack.c.l.b16 %v599
        %v1360 = vunpack.c.l.b16 %v600
        %v1361 = vunpack.c.l.b16 %v601
        %v1362 = vunpack.c.l.b16 %v602
        %v1363 = vunpack.c.l.b16 %v603
        %v1364 = vunpack.c.l.b16 %v604
        %v1365 = vunpack.c.l.b16 %v605
        %v1366 = vunpack.c.l.b16 %v606
        %v1367 = vunpack.c.l.b16 %v607
        %v1368 = vunpack.c.l.b16 %v608
        %v1369 = vunpack.c.l.b16 %v609
        %v1370 = vunpack.c.l.b16 %v610
        %v1371 = vunpack.c.l.b16 %v611
        %v1372 = vunpack.c.l.b16 %v612
        %v1373 = vunpack.c.l.b16 %v613
        %v1374 = vunpack.c.l.b16 %v614
        %v1375 = vunpack.c.l.b16 %v615
        %v1376 = vunpack.c.l.b16 %v616
        %v1377 = vunpack.c.l.b16 %v617
        %v1378 = vunpack.c.l.b16 %v618
        %v1379 = vunpack.c.l.b16 %v619
        %v1380 = vunpack.c.l.b16 %v620
        %v1381 = vunpack.c.l.b16 %v621
        %v1382 = vunpack.c.l.b16 %v622
        %v1383 = vunpack.c.l.b16 %v623
        %v1384 = vunpack.c.l.b16 %v624
        %v1385 = vunpack.c.l.b16 %v625
        %v1386 = vunpack.c.l.b16 %v626
        %v1387 = vunpack.c.l.b16 %v627
        %v1388 = vunpack.c.l.b16 %v628
        %v1389 = vunpack.c.l.b16 %v629
        %v1390 = vunpack.c.l.b16 %v630
        %v1391 = vunpack.c.l.b16 %v631
        %v1392 = vunpack.c.l.b16 %v632
        %v1393 = vunpack.c.l.b16 %v633
        %v1394 = vunpack.c.l.b16 %v634
        %v1395 = vunpack.c.l.b16 %v635
        %v1396 = vunpack.c.l.b16 %v636
        %v1397 = vunpack.c.l.b16 %v637
        %v1398 = vunpack.c.l.b16 %v638
        %v1399 = vunpack.c.l.b16 %v639
        %v1400 = vunpack.c.l.b16 %v640
        %v1401 = vunpack.c.l.b16 %v641
        %v1402 = vunpack.c.l.b16 %v642
        %v1403 = vunpack.c.l.b16 %v643
        %v1404 = vunpack.c.l.b16 %v644
        %v1405 = vunpack.c.l.b16 %v645
        %v1406 = vunpack.c.l.b16 %v646
        %v1407 = vunpack.c.l.b16 %v647
        %v1408 = vunpack.c.l.b16 %v648
        %v1409 = vunpack.c.l.b16 %v649
        %v1410 = vunpack.c.l.b16 %v650
        %v1411 = vunpack.c.l.b16 %v651
        %v1412 = vunpack.c.l.b16 %v652
        %v1413 = vunpack.c.l.b16 %v653
        %v1414 = vunpack.c.l.b16 %v654
        %v1415 = vunpack.c.l.b16 %v655
        %v1416 = vunpack.c.l.b16 %v656
        %v1417 = vunpack.c.l.b16 %v657
        %v1418 = vunpack.c.l.b16 %v658
        %v1419 = vunpack.c.l.b16 %v659
        %v1420 = vunpack.c.l.b16 %v660
        %v1421 = vunpack.c.l.b16 %v661
        %v1422 = vunpack.c.l.b16 %v662
        %v1423 = vunpack.c.l.b16 %v663
        %v1424 = vunpack.c.l.b16 %v664
        %v1425 = vunpack.c.l.b16 %v665
        %v1426 = vunpack.c.l.b16 %v666
        %v1427 = vunpack.c.l.b16 %v667
        %v1428 = vunpack.c.l.b16 %v668
        %v1429 = vunpack.c.l.b16 %v669
        %v1430 = vunpack.c.l.b16 %v670
        %v1431 = vunpack.c.l.b16 %v671
        %v1432 = vunpack.c.l.b16 %v672
        %v1433 = vunpack.c.l.b16 %v673
        %v1434 = vunpack.c.l.b16 %v674
        %v1435 = vunpack.c.l.b16 %v675
        %v1436 = vunpack.c.l.b16 %v676
        %v1437 = vunpack.c.l.b16 %v677
        %v1438 = vunpack.c.l.b16 %v678
        %v1439 = vunpack.c.l.b16 %v679
        %v1440 = vunpack.c.l.b16 %v680
        %v1441 = vunpack.c.l.b16 %v681
        %v1442 = vunpack.c.l.b16 %v682
        %v1443 = vunpack.c.l.b16 %v683
        %v1444 = vunpack.c.l.b16 %v684
        %v1445 = vunpack.c.l.b16 %v685
        %v1446 = vpack.c.b16 %v1347, %v1346
        %v1447 = vpack.c.b16 %v1349, %v1348
        %v1448 = vpack.c.b16 %v1351, %v1350
        %v1449 = vpack.c.b16 %v1353, %v1352
        %v1450 = vpack.c.b16 %v1355, %v1354
        %v1451 = vpack.c.b16 %v1357, %v1356
        %v1452 = vpack.c.b16 %v1359, %v1358
        %v1453 = vpack.c.b16 %v1361, %v1360
        %v1454 = vpack.c.b16 %v1363, %v1362
        %v1455 = vpack.c.b16 %v1365, %v1364
        %v1456 = vpack.c.b16 %v1367, %v1366
        %v1457 = vpack.c.b16 %v1369, %v1368
        %v1458 = vpack.c.b16 %v1371, %v1370
        %v1459 = vpack.c.b16 %v1373, %v1372
        %v1460 = vpack.c.b16 %v1375, %v1374
        %v1461 = vpack.c.b16 %v1377, %v1376
        %v1462 = vpack.c.b16 %v1379, %v1378
        %v1463 = vpack.c.b16 %v1381, %v1380
        %v1464 = vpack.c.b16 %v1383, %v1382
        %v1465 = vpack.c.b16 %v1385, %v1384
        %v1466 = vpack.c.b16 %v1387, %v1386
        %v1467 = vpack.c.b16 %v1389, %v1388
        %v1468 = vpack.c.b16 %v1391, %v1390
        %v1469 = vpack.c.b16 %v1393, %v1392
        %v1470 = vpack.c.b16 %v1395, %v1394
        %v1471 = vpack.c.b16 %v1397, %v1396
        %v1472 = vpack.c.b16 %v1399, %v1398
        %v1473 = vpack.c.b16 %v1401, %v1400
        %v1474 = vpack.c.b16 %v1403, %v1402
        %v1475 = vpack.c.b16 %v1405, %v1404
        %v1476 = vpack.c.b16 %v1407, %v1406
        %v1477 = vpack.c.b16 %v1409, %v1408
        %v1478 = vpack.c.b16 %v1411, %v1410
        %v1479 = vpack.c.b16 %v1413, %v1412
        %v1480 = vpack.c.b16 %v1415, %v1414
        %v1481 = vpack.c.b16 %v1417, %v1416
        %v1482 = vpack.c.b16 %v1419, %v1418
        %v1483 = vpack.c.b16 %v1421, %v1420
        %v1484 = vpack.c.b16 %v1423, %v1422
        %v1485 = vpack.c.b16 %v1425, %v1424
        %v1486 = vpack.c.b16 %v1427, %v1426
        %v1487 = vpack.c.b16 %v1429, %v1428
        %v1488 = vpack.c.b16 %v1431, %v1430
        %v1489 = vpack.c.b16 %v1433, %v1432
        %v1490 = vpack.c.b16 %v1435, %v1434
        %v1491 = vpack.c.b16 %v1437, %v1436
        %v1492 = vpack.c.b16 %v1439, %v1438
        %v1493 = vpack.c.b16 %v1441, %v1440
        %v1494 = vpack.c.b16 %v1443, %v1442
        %v1495 = vpack.c.b16 %v1445, %v1444
        %vm1546 = vcmask 261120
        %v1548 = vsel %vm1546, %v1044, 0
        %v1551 = vsel %vm1546, %v1051, 0
        %v1554 = vsel %vm1546, %v1058, 0
        %v1557 = vsel %vm1546, %v1065, 0
        %v1560 = vsel %vm1546, %v1072, 0
        %v1563 = vsel %vm1546, %v1079, 0
        %v1566 = vsel %vm1546, %v1086, 0
        %v1569 = vsel %vm1546, %v1093, 0
        %v1572 = vsel %vm1546, %v1100, 0
        %v1575 = vsel %vm1546, %v1107, 0
        %v1578 = vsel %vm1546, %v1114, 0
        %v1581 = vsel %vm1546, %v1121, 0
        %v1584 = vsel %vm1546, %v1128, 0
        %v1587 = vsel %vm1546, %v1135, 0
        %v1590 = vsel %vm1546, %v1142, 0
        %v1593 = vsel %vm1546, %v1149, 0
        %1595 = vmatprep.subr.bf16.mxu0 0
        %1596 = vmatpush1.bf16.msra.mxu0 %v1446
        %1597 = vmatprep.subr.bf16.mxu0 0
        %1598 = vmatpush1.bf16.msra.mxu0 %v1447
        %1599 = vmatprep.subr.bf16.mxu0 0
        %1600 = vmatpush1.bf16.msra.mxu0 %v1448
        %1601 = vmatprep.subr.bf16.mxu0 0
        %1602 = vmatpush1.bf16.msra.mxu0 %v1449
        %1603 = vmatprep.subr.bf16.mxu0 0
        %1604 = vmatpush1.bf16.msra.mxu0 %v1450
        %1605 = vmatprep.subr.bf16.mxu0 0
        %1606 = vmatpush1.bf16.msra.mxu0 %v1451
        %1607 = vmatprep.subr.bf16.mxu0 0
        %1608 = vmatpush1.bf16.msra.mxu0 %v1452
        %1609 = vmatprep.subr.bf16.mxu0 0
        %1610 = vmatpush1.bf16.msra.mxu0 %v1453
        %1611 = vmatprep.subr.bf16.mxu0 0
        %1612 = vmatpush1.bf16.msra.mxu0 %v1454
        %1613 = vmatprep.subr.bf16.mxu0 0
        %1614 = vmatpush1.bf16.msra.mxu0 %v1455
        %1615 = vmatprep.subr.bf16.mxu0 0
        %1616 = vmatpush1.bf16.msra.mxu0 %v1456
        %1617 = vmatprep.subr.bf16.mxu0 0
        %1618 = vmatpush1.bf16.msra.mxu0 %v1457
        %1619 = vmatprep.subr.bf16.mxu0 0
        %1620 = vmatpush1.bf16.msra.mxu0 %v1458
        %1621 = vmatprep.subr.bf16.mxu0 0
        %1622 = vmatpush1.bf16.msra.mxu0 %v1459
        %1623 = vmatprep.subr.bf16.mxu0 0
        %1624 = vmatpush1.bf16.msra.mxu0 %v1460
        %1625 = vmatprep.subr.bf16.mxu0 0
        %1626 = vmatpush1.bf16.msra.mxu0 %v1461
        %1627 = vmatprep.mubr.bf16.mxu0 %v1039
        %1628 = vmatmul.mubr.bf16.gmra.mrb[0].mxu0 %v1038
        %v1629 = vpop.f32.mrb[0].mxu0
        %v1630 = vadd.f32 0.0, %v1629
        %v1631 = vpop.f32.mrb[0].mxu0
        %v1632 = vpop.f32.mrb[0].mxu0
        %v1633 = vadd.f32 0.0, %v1632
        %v1634 = vpop.f32.mrb[0].mxu0
        %1635 = vmatprep.mubr.bf16.mxu0 %v1046
        %1636 = vmatmul.mubr.bf16.gmra.mrb[0].mxu0 %v1045
        %v1637 = vpop.f32.mrb[0].mxu0
        %v1638 = vadd.f32 0.0, %v1637
        %v1639 = vpop.f32.mrb[0].mxu0
        %v1640 = vpop.f32.mrb[0].mxu0
        %v1641 = vadd.f32 0.0, %v1640
        %v1642 = vpop.f32.mrb[0].mxu0
        %1643 = vmatprep.mubr.bf16.mxu0 %v1053
        %1644 = vmatmul.mubr.bf16.gmra.mrb[0].mxu0 %v1052
        %v1645 = vpop.f32.mrb[0].mxu0
        %v1646 = vadd.f32 0.0, %v1645
        %v1647 = vpop.f32.mrb[0].mxu0
        %v1648 = vpop.f32.mrb[0].mxu0
        %v1649 = vadd.f32 0.0, %v1648
        %v1650 = vpop.f32.mrb[0].mxu0
        %1651 = vmatprep.mubr.bf16.mxu0 %v1060
        %1652 = vmatmul.mubr.bf16.gmra.mrb[0].mxu0 %v1059
        %v1653 = vpop.f32.mrb[0].mxu0
        %v1654 = vadd.f32 0.0, %v1653
        %v1655 = vpop.f32.mrb[0].mxu0
        %v1656 = vpop.f32.mrb[0].mxu0
        %v1657 = vadd.f32 0.0, %v1656
        %v1658 = vpop.f32.mrb[0].mxu0
        %1659 = vmatprep.mubr.bf16.mxu0 %v1067
        %1660 = vmatmul.mubr.bf16.gmra.mrb[0].mxu0 %v1066
        %v1661 = vpop.f32.mrb[0].mxu0
        %v1662 = vadd.f32 0.0, %v1661
        %v1663 = vpop.f32.mrb[0].mxu0
        %v1664 = vpop.f32.mrb[0].mxu0
        %v1665 = vadd.f32 0.0, %v1664
        %v1666 = vpop.f32.mrb[0].mxu0
        %1667 = vmatprep.mubr.bf16.mxu0 %v1074
        %1668 = vmatmul.mubr.bf16.gmra.mrb[0].mxu0 %v1073
        %v1669 = vpop.f32.mrb[0].mxu0
        %v1670 = vadd.f32 0.0, %v1669
        %v1671 = vpop.f32.mrb[0].mxu0
        %v1672 = vpop.f32.mrb[0].mxu0
        %v1673 = vadd.f32 0.0, %v1672
        %v1674 = vpop.f32.mrb[0].mxu0
        %1675 = vmatprep.mubr.bf16.mxu0 %v1081
        %1676 = vmatmul.mubr.bf16.gmra.mrb[0].mxu0 %v1080
        %v1677 = vpop.f32.mrb[0].mxu0
        %v1678 = vadd.f32 0.0, %v1677
        %v1679 = vpop.f32.mrb[0].mxu0
        %v1680 = vpop.f32.mrb[0].mxu0
        %v1681 = vadd.f32 0.0, %v1680
        %v1682 = vpop.f32.mrb[0].mxu0
        %1683 = vmatprep.mubr.bf16.mxu0 %v1088
        %1684 = vmatmul.mubr.bf16.gmra.mrb[0].mxu0 %v1087
        %v1685 = vpop.f32.mrb[0].mxu0
        %v1686 = vadd.f32 0.0, %v1685
        %v1687 = vpop.f32.mrb[0].mxu0
        %v1688 = vpop.f32.mrb[0].mxu0
        %v1689 = vadd.f32 0.0, %v1688
        %v1690 = vpop.f32.mrb[0].mxu0
        %1691 = vmatprep.mubr.bf16.mxu0 %v1095
        %1692 = vmatmul.mubr.bf16.gmra.mrb[0].mxu0 %v1094
        %v1693 = vpop.f32.mrb[0].mxu0
        %v1694 = vadd.f32 0.0, %v1693
        %v1695 = vpop.f32.mrb[0].mxu0
        %v1696 = vpop.f32.mrb[0].mxu0
        %v1697 = vadd.f32 0.0, %v1696
        %v1698 = vpop.f32.mrb[0].mxu0
        %1699 = vmatprep.mubr.bf16.mxu0 %v1102
        %1700 = vmatmul.mubr.bf16.gmra.mrb[0].mxu0 %v1101
        %v1701 = vpop.f32.mrb[0].mxu0
        %v1702 = vadd.f32 0.0, %v1701
        %v1703 = vpop.f32.mrb[0].mxu0
        %v1704 = vpop.f32.mrb[0].mxu0
        %v1705 = vadd.f32 0.0, %v1704
        %v1706 = vpop.f32.mrb[0].mxu0
        %1707 = vmatprep.mubr.bf16.mxu0 %v1109
        %1708 = vmatmul.mubr.bf16.gmra.mrb[0].mxu0 %v1108
        %v1709 = vpop.f32.mrb[0].mxu0
        %v1710 = vadd.f32 0.0, %v1709
        %v1711 = vpop.f32.mrb[0].mxu0
        %v1712 = vpop.f32.mrb[0].mxu0
        %v1713 = vadd.f32 0.0, %v1712
        %v1714 = vpop.f32.mrb[0].mxu0
        %1715 = vmatprep.mubr.bf16.mxu0 %v1116
        %1716 = vmatmul.mubr.bf16.gmra.mrb[0].mxu0 %v1115
        %v1717 = vpop.f32.mrb[0].mxu0
        %v1718 = vadd.f32 0.0, %v1717
        %v1719 = vpop.f32.mrb[0].mxu0
        %v1720 = vpop.f32.mrb[0].mxu0
        %v1721 = vadd.f32 0.0, %v1720
        %v1722 = vpop.f32.mrb[0].mxu0
        %1723 = vmatprep.mubr.bf16.mxu0 %v1123
        %1724 = vmatmul.mubr.bf16.gmra.mrb[0].mxu0 %v1122
        %v1725 = vpop.f32.mrb[0].mxu0
        %v1726 = vadd.f32 0.0, %v1725
        %v1727 = vpop.f32.mrb[0].mxu0
        %v1728 = vpop.f32.mrb[0].mxu0
        %v1729 = vadd.f32 0.0, %v1728
        %v1730 = vpop.f32.mrb[0].mxu0
        %1731 = vmatprep.mubr.bf16.mxu0 %v1130
        %1732 = vmatmul.mubr.bf16.gmra.mrb[0].mxu0 %v1129
        %v1733 = vpop.f32.mrb[0].mxu0
        %v1734 = vadd.f32 0.0, %v1733
        %v1735 = vpop.f32.mrb[0].mxu0
        %v1736 = vpop.f32.mrb[0].mxu0
        %v1737 = vadd.f32 0.0, %v1736
        %v1738 = vpop.f32.mrb[0].mxu0
        %1739 = vmatprep.mubr.bf16.mxu0 %v1137
        %1740 = vmatmul.mubr.bf16.gmra.mrb[0].mxu0 %v1136
        %v1741 = vpop.f32.mrb[0].mxu0
        %v1742 = vadd.f32 0.0, %v1741
        %v1743 = vpop.f32.mrb[0].mxu0
        %v1744 = vpop.f32.mrb[0].mxu0
        %v1745 = vadd.f32 0.0, %v1744
        %v1746 = vpop.f32.mrb[0].mxu0
        %1747 = vmatprep.mubr.bf16.mxu0 %v1144
        %1748 = vmatmul.mubr.bf16.gmra.mrb[0].mxu0 %v1143
        %v1749 = vpop.f32.mrb[0].mxu0
        %v1750 = vadd.f32 0.0, %v1749
        %v1751 = vpop.f32.mrb[0].mxu0
        %v1752 = vpop.f32.mrb[0].mxu0
        %v1753 = vadd.f32 0.0, %v1752
        %v1754 = vpop.f32.mrb[0].mxu0
        %1755 = vdwg.mxu0
        %1756 = vmatprep.subr.bf16.mxu0 0
        %1757 = vmatpush1.bf16.msra.mxu0 %v1462
        %1758 = vmatprep.subr.bf16.mxu0 0
        %1759 = vmatpush1.bf16.msra.mxu0 %v1463
        %1760 = vmatprep.subr.bf16.mxu0 0
        %1761 = vmatpush1.bf16.msra.mxu0 %v1464
        %1762 = vmatprep.subr.bf16.mxu0 0
        %1763 = vmatpush1.bf16.msra.mxu0 %v1465
        %1764 = vmatprep.subr.bf16.mxu0 0
        %1765 = vmatpush1.bf16.msra.mxu0 %v1466
        %1766 = vmatprep.subr.bf16.mxu0 0
        %1767 = vmatpush1.bf16.msra.mxu0 %v1467
        %1768 = vmatprep.subr.bf16.mxu0 0
        %1769 = vmatpush1.bf16.msra.mxu0 %v1468
        %1770 = vmatprep.subr.bf16.mxu0 0
        %1771 = vmatpush1.bf16.msra.mxu0 %v1469
        %1772 = vmatprep.subr.bf16.mxu0 0
        %1773 = vmatpush1.bf16.msra.mxu0 %v1470
        %1774 = vmatprep.subr.bf16.mxu0 0
        %1775 = vmatpush1.bf16.msra.mxu0 %v1471
        %1776 = vmatprep.subr.bf16.mxu0 0
        %1777 = vmatpush1.bf16.msra.mxu0 %v1472
        %1778 = vmatprep.subr.bf16.mxu0 0
        %1779 = vmatpush1.bf16.msra.mxu0 %v1473
        %1780 = vmatprep.subr.bf16.mxu0 0
        %1781 = vmatpush1.bf16.msra.mxu0 %v1474
        %1782 = vmatprep.subr.bf16.mxu0 0
        %1783 = vmatpush1.bf16.msra.mxu0 %v1475
        %1784 = vmatprep.subr.bf16.mxu0 0
        %1785 = vmatpush1.bf16.msra.mxu0 %v1476
        %1786 = vmatprep.subr.bf16.mxu0 0
        %1787 = vmatpush1.bf16.msra.mxu0 %v1477
        %1788 = vmatprep.mubr.bf16.mxu0 %v1041
        %1789 = vmatmul.mubr.bf16.gmra.mrb[0].mxu0 %v1040
        %v1790 = vpop.f32.mrb[0].mxu0
        %v1791 = vadd.f32 %v1630, %v1790
        %v1792 = vpop.f32.mrb[0].mxu0
        %v1793 = vpop.f32.mrb[0].mxu0
        %v1794 = vadd.f32 %v1633, %v1793
        %v1795 = vpop.f32.mrb[0].mxu0
        %1796 = vmatprep.mubr.bf16.mxu0 %v1048
        %1797 = vmatmul.mubr.bf16.gmra.mrb[0].mxu0 %v1047
        %v1798 = vpop.f32.mrb[0].mxu0
        %v1799 = vadd.f32 %v1638, %v1798
        %v1800 = vpop.f32.mrb[0].mxu0
        %v1801 = vpop.f32.mrb[0].mxu0
        %v1802 = vadd.f32 %v1641, %v1801
        %v1803 = vpop.f32.mrb[0].mxu0
        %1804 = vmatprep.mubr.bf16.mxu0 %v1055
        %1805 = vmatmul.mubr.bf16.gmra.mrb[0].mxu0 %v1054
        %v1806 = vpop.f32.mrb[0].mxu0
        %v1807 = vadd.f32 %v1646, %v1806
        %v1808 = vpop.f32.mrb[0].mxu0
        %v1809 = vpop.f32.mrb[0].mxu0
        %v1810 = vadd.f32 %v1649, %v1809
        %v1811 = vpop.f32.mrb[0].mxu0
        %1812 = vmatprep.mubr.bf16.mxu0 %v1062
        %1813 = vmatmul.mubr.bf16.gmra.mrb[0].mxu0 %v1061
        %v1814 = vpop.f32.mrb[0].mxu0
        %v1815 = vadd.f32 %v1654, %v1814
        %v1816 = vpop.f32.mrb[0].mxu0
        %v1817 = vpop.f32.mrb[0].mxu0
        %v1818 = vadd.f32 %v1657, %v1817
        %v1819 = vpop.f32.mrb[0].mxu0
        %1820 = vmatprep.mubr.bf16.mxu0 %v1069
        %1821 = vmatmul.mubr.bf16.gmra.mrb[0].mxu0 %v1068
        %v1822 = vpop.f32.mrb[0].mxu0
        %v1823 = vadd.f32 %v1662, %v1822
        %v1824 = vpop.f32.mrb[0].mxu0
        %v1825 = vpop.f32.mrb[0].mxu0
        %v1826 = vadd.f32 %v1665, %v1825
        %v1827 = vpop.f32.mrb[0].mxu0
        %1828 = vmatprep.mubr.bf16.mxu0 %v1076
        %1829 = vmatmul.mubr.bf16.gmra.mrb[0].mxu0 %v1075
        %v1830 = vpop.f32.mrb[0].mxu0
        %v1831 = vadd.f32 %v1670, %v1830
        %v1832 = vpop.f32.mrb[0].mxu0
        %v1833 = vpop.f32.mrb[0].mxu0
        %v1834 = vadd.f32 %v1673, %v1833
        %v1835 = vpop.f32.mrb[0].mxu0
        %1836 = vmatprep.mubr.bf16.mxu0 %v1083
        %1837 = vmatmul.mubr.bf16.gmra.mrb[0].mxu0 %v1082
        %v1838 = vpop.f32.mrb[0].mxu0
        %v1839 = vadd.f32 %v1678, %v1838
        %v1840 = vpop.f32.mrb[0].mxu0
        %v1841 = vpop.f32.mrb[0].mxu0
        %v1842 = vadd.f32 %v1681, %v1841
        %v1843 = vpop.f32.mrb[0].mxu0
        %1844 = vmatprep.mubr.bf16.mxu0 %v1090
        %1845 = vmatmul.mubr.bf16.gmra.mrb[0].mxu0 %v1089
        %v1846 = vpop.f32.mrb[0].mxu0
        %v1847 = vadd.f32 %v1686, %v1846
        %v1848 = vpop.f32.mrb[0].mxu0
        %v1849 = vpop.f32.mrb[0].mxu0
        %v1850 = vadd.f32 %v1689, %v1849
        %v1851 = vpop.f32.mrb[0].mxu0
        %1852 = vmatprep.mubr.bf16.mxu0 %v1097
        %1853 = vmatmul.mubr.bf16.gmra.mrb[0].mxu0 %v1096
        %v1854 = vpop.f32.mrb[0].mxu0
        %v1855 = vadd.f32 %v1694, %v1854
        %v1856 = vpop.f32.mrb[0].mxu0
        %v1857 = vpop.f32.mrb[0].mxu0
        %v1858 = vadd.f32 %v1697, %v1857
        %v1859 = vpop.f32.mrb[0].mxu0
        %1860 = vmatprep.mubr.bf16.mxu0 %v1104
        %1861 = vmatmul.mubr.bf16.gmra.mrb[0].mxu0 %v1103
        %v1862 = vpop.f32.mrb[0].mxu0
        %v1863 = vadd.f32 %v1702, %v1862
        %v1864 = vpop.f32.mrb[0].mxu0
        %v1865 = vpop.f32.mrb[0].mxu0
        %v1866 = vadd.f32 %v1705, %v1865
        %v1867 = vpop.f32.mrb[0].mxu0
        %1868 = vmatprep.mubr.bf16.mxu0 %v1111
        %1869 = vmatmul.mubr.bf16.gmra.mrb[0].mxu0 %v1110
        %v1870 = vpop.f32.mrb[0].mxu0
        %v1871 = vadd.f32 %v1710, %v1870
        %v1872 = vpop.f32.mrb[0].mxu0
        %v1873 = vpop.f32.mrb[0].mxu0
        %v1874 = vadd.f32 %v1713, %v1873
        %v1875 = vpop.f32.mrb[0].mxu0
        %1876 = vmatprep.mubr.bf16.mxu0 %v1118
        %1877 = vmatmul.mubr.bf16.gmra.mrb[0].mxu0 %v1117
        %v1878 = vpop.f32.mrb[0].mxu0
        %v1879 = vadd.f32 %v1718, %v1878
        %v1880 = vpop.f32.mrb[0].mxu0
        %v1881 = vpop.f32.mrb[0].mxu0
        %v1882 = vadd.f32 %v1721, %v1881
        %v1883 = vpop.f32.mrb[0].mxu0
        %1884 = vmatprep.mubr.bf16.mxu0 %v1125
        %1885 = vmatmul.mubr.bf16.gmra.mrb[0].mxu0 %v1124
        %v1886 = vpop.f32.mrb[0].mxu0
        %v1887 = vadd.f32 %v1726, %v1886
        %v1888 = vpop.f32.mrb[0].mxu0
        %v1889 = vpop.f32.mrb[0].mxu0
        %v1890 = vadd.f32 %v1729, %v1889
        %v1891 = vpop.f32.mrb[0].mxu0
        %1892 = vmatprep.mubr.bf16.mxu0 %v1132
        %1893 = vmatmul.mubr.bf16.gmra.mrb[0].mxu0 %v1131
        %v1894 = vpop.f32.mrb[0].mxu0
        %v1895 = vadd.f32 %v1734, %v1894
        %v1896 = vpop.f32.mrb[0].mxu0
        %v1897 = vpop.f32.mrb[0].mxu0
        %v1898 = vadd.f32 %v1737, %v1897
        %v1899 = vpop.f32.mrb[0].mxu0
        %1900 = vmatprep.mubr.bf16.mxu0 %v1139
        %1901 = vmatmul.mubr.bf16.gmra.mrb[0].mxu0 %v1138
        %v1902 = vpop.f32.mrb[0].mxu0
        %v1903 = vadd.f32 %v1742, %v1902
        %v1904 = vpop.f32.mrb[0].mxu0
        %v1905 = vpop.f32.mrb[0].mxu0
        %v1906 = vadd.f32 %v1745, %v1905
        %v1907 = vpop.f32.mrb[0].mxu0
        %1908 = vmatprep.mubr.bf16.mxu0 %v1146
        %1909 = vmatmul.mubr.bf16.gmra.mrb[0].mxu0 %v1145
        %v1910 = vpop.f32.mrb[0].mxu0
        %v1911 = vadd.f32 %v1750, %v1910
        %v1912 = vpop.f32.mrb[0].mxu0
        %v1913 = vpop.f32.mrb[0].mxu0
        %v1914 = vadd.f32 %v1753, %v1913
        %v1915 = vpop.f32.mrb[0].mxu0
        %1916 = vdwg.mxu0
        %1917 = vmatprep.subr.bf16.mxu0 0
        %1918 = vmatpush1.bf16.msra.mxu0 %v1478
        %1919 = vmatprep.subr.bf16.mxu0 0
        %1920 = vmatpush1.bf16.msra.mxu0 %v1479
        %1921 = vmatprep.subr.bf16.mxu0 0
        %1922 = vmatpush1.bf16.msra.mxu0 %v1480
        %1923 = vmatprep.subr.bf16.mxu0 0
        %1924 = vmatpush1.bf16.msra.mxu0 %v1481
        %1925 = vmatprep.subr.bf16.mxu0 0
        %1926 = vmatpush1.bf16.msra.mxu0 %v1482
        %1927 = vmatprep.subr.bf16.mxu0 0
        %1928 = vmatpush1.bf16.msra.mxu0 %v1483
        %1929 = vmatprep.subr.bf16.mxu0 0
        %1930 = vmatpush1.bf16.msra.mxu0 %v1484
        %1931 = vmatprep.subr.bf16.mxu0 0
        %1932 = vmatpush1.bf16.msra.mxu0 %v1485
        %1933 = vmatprep.subr.bf16.mxu0 0
        %1934 = vmatpush1.bf16.msra.mxu0 %v1486
        %1935 = vmatprep.subr.bf16.mxu0 0
        %1936 = vmatpush1.bf16.msra.mxu0 %v1487
        %1937 = vmatprep.subr.bf16.mxu0 0
        %1938 = vmatpush1.bf16.msra.mxu0 %v1488
        %1939 = vmatprep.subr.bf16.mxu0 0
        %1940 = vmatpush1.bf16.msra.mxu0 %v1489
        %1941 = vmatprep.subr.bf16.mxu0 0
        %1942 = vmatpush1.bf16.msra.mxu0 %v1490
        %1943 = vmatprep.subr.bf16.mxu0 0
        %1944 = vmatpush1.bf16.msra.mxu0 %v1491
        %1945 = vmatprep.subr.bf16.mxu0 0
        %1946 = vmatpush1.bf16.msra.mxu0 %v1492
        %1947 = vmatprep.subr.bf16.mxu0 0
        %1948 = vmatpush1.bf16.msra.mxu0 %v1493
        %1949 = vmatprep.mubr.bf16.mxu0 %v1043
        %1950 = vmatmul.mubr.bf16.gmra.mrb[0].mxu0 %v1042
        %v1951 = vpop.f32.mrb[0].mxu0
        %v1952 = vadd.f32 %v1791, %v1951
        %v1953 = vpop.f32.mrb[0].mxu0
        %v1954 = vpop.f32.mrb[0].mxu0
        %v1955 = vadd.f32 %v1794, %v1954
        %v1956 = vpop.f32.mrb[0].mxu0
        %1957 = vmatprep.mubr.bf16.mxu0 %v1050
        %1958 = vmatmul.mubr.bf16.gmra.mrb[0].mxu0 %v1049
        %v1959 = vpop.f32.mrb[0].mxu0
        %v1960 = vadd.f32 %v1799, %v1959
        %v1961 = vpop.f32.mrb[0].mxu0
        %v1962 = vpop.f32.mrb[0].mxu0
        %v1963 = vadd.f32 %v1802, %v1962
        %v1964 = vpop.f32.mrb[0].mxu0
        %1965 = vmatprep.mubr.bf16.mxu0 %v1057
        %1966 = vmatmul.mubr.bf16.gmra.mrb[0].mxu0 %v1056
        %v1967 = vpop.f32.mrb[0].mxu0
        %v1968 = vadd.f32 %v1807, %v1967
        %v1969 = vpop.f32.mrb[0].mxu0
        %v1970 = vpop.f32.mrb[0].mxu0
        %v1971 = vadd.f32 %v1810, %v1970
        %v1972 = vpop.f32.mrb[0].mxu0
        %1973 = vmatprep.mubr.bf16.mxu0 %v1064
        %1974 = vmatmul.mubr.bf16.gmra.mrb[0].mxu0 %v1063
        %v1975 = vpop.f32.mrb[0].mxu0
        %v1976 = vadd.f32 %v1815, %v1975
        %v1977 = vpop.f32.mrb[0].mxu0
        %v1978 = vpop.f32.mrb[0].mxu0
        %v1979 = vadd.f32 %v1818, %v1978
        %v1980 = vpop.f32.mrb[0].mxu0
        %1981 = vmatprep.mubr.bf16.mxu0 %v1071
        %1982 = vmatmul.mubr.bf16.gmra.mrb[0].mxu0 %v1070
        %v1983 = vpop.f32.mrb[0].mxu0
        %v1984 = vadd.f32 %v1823, %v1983
        %v1985 = vpop.f32.mrb[0].mxu0
        %v1986 = vpop.f32.mrb[0].mxu0
        %v1987 = vadd.f32 %v1826, %v1986
        %v1988 = vpop.f32.mrb[0].mxu0
        %1989 = vmatprep.mubr.bf16.mxu0 %v1078
        %1990 = vmatmul.mubr.bf16.gmra.mrb[0].mxu0 %v1077
        %v1991 = vpop.f32.mrb[0].mxu0
        %v1992 = vadd.f32 %v1831, %v1991
        %v1993 = vpop.f32.mrb[0].mxu0
        %v1994 = vpop.f32.mrb[0].mxu0
        %v1995 = vadd.f32 %v1834, %v1994
        %v1996 = vpop.f32.mrb[0].mxu0
        %1997 = vmatprep.mubr.bf16.mxu0 %v1085
        %1998 = vmatmul.mubr.bf16.gmra.mrb[0].mxu0 %v1084
        %v1999 = vpop.f32.mrb[0].mxu0
        %v2000 = vadd.f32 %v1839, %v1999
        %v2001 = vpop.f32.mrb[0].mxu0
        %v2002 = vpop.f32.mrb[0].mxu0
        %v2003 = vadd.f32 %v1842, %v2002
        %v2004 = vpop.f32.mrb[0].mxu0
        %2005 = vmatprep.mubr.bf16.mxu0 %v1092
        %2006 = vmatmul.mubr.bf16.gmra.mrb[0].mxu0 %v1091
        %v2007 = vpop.f32.mrb[0].mxu0
        %v2008 = vadd.f32 %v1847, %v2007
        %v2009 = vpop.f32.mrb[0].mxu0
        %v2010 = vpop.f32.mrb[0].mxu0
        %v2011 = vadd.f32 %v1850, %v2010
        %v2012 = vpop.f32.mrb[0].mxu0
        %2013 = vmatprep.mubr.bf16.mxu0 %v1099
        %2014 = vmatmul.mubr.bf16.gmra.mrb[0].mxu0 %v1098
        %v2015 = vpop.f32.mrb[0].mxu0
        %v2016 = vadd.f32 %v1855, %v2015
        %v2017 = vpop.f32.mrb[0].mxu0
        %v2018 = vpop.f32.mrb[0].mxu0
        %v2019 = vadd.f32 %v1858, %v2018
        %v2020 = vpop.f32.mrb[0].mxu0
        %2021 = vmatprep.mubr.bf16.mxu0 %v1106
        %2022 = vmatmul.mubr.bf16.gmra.mrb[0].mxu0 %v1105
        %v2023 = vpop.f32.mrb[0].mxu0
        %v2024 = vadd.f32 %v1863, %v2023
        %v2025 = vpop.f32.mrb[0].mxu0
        %v2026 = vpop.f32.mrb[0].mxu0
        %v2027 = vadd.f32 %v1866, %v2026
        %v2028 = vpop.f32.mrb[0].mxu0
        %2029 = vmatprep.mubr.bf16.mxu0 %v1113
        %2030 = vmatmul.mubr.bf16.gmra.mrb[0].mxu0 %v1112
        %v2031 = vpop.f32.mrb[0].mxu0
        %v2032 = vadd.f32 %v1871, %v2031
        %v2033 = vpop.f32.mrb[0].mxu0
        %v2034 = vpop.f32.mrb[0].mxu0
        %v2035 = vadd.f32 %v1874, %v2034
        %v2036 = vpop.f32.mrb[0].mxu0
        %2037 = vmatprep.mubr.bf16.mxu0 %v1120
        %2038 = vmatmul.mubr.bf16.gmra.mrb[0].mxu0 %v1119
        %v2039 = vpop.f32.mrb[0].mxu0
        %v2040 = vadd.f32 %v1879, %v2039
        %v2041 = vpop.f32.mrb[0].mxu0
        %v2042 = vpop.f32.mrb[0].mxu0
        %v2043 = vadd.f32 %v1882, %v2042
        %v2044 = vpop.f32.mrb[0].mxu0
        %2045 = vmatprep.mubr.bf16.mxu0 %v1127
        %2046 = vmatmul.mubr.bf16.gmra.mrb[0].mxu0 %v1126
        %v2047 = vpop.f32.mrb[0].mxu0
        %v2048 = vadd.f32 %v1887, %v2047
        %v2049 = vpop.f32.mrb[0].mxu0
        %v2050 = vpop.f32.mrb[0].mxu0
        %v2051 = vadd.f32 %v1890, %v2050
        %v2052 = vpop.f32.mrb[0].mxu0
        %2053 = vmatprep.mubr.bf16.mxu0 %v1134
        %2054 = vmatmul.mubr.bf16.gmra.mrb[0].mxu0 %v1133
        %v2055 = vpop.f32.mrb[0].mxu0
        %v2056 = vadd.f32 %v1895, %v2055
        %v2057 = vpop.f32.mrb[0].mxu0
        %v2058 = vpop.f32.mrb[0].mxu0
        %v2059 = vadd.f32 %v1898, %v2058
        %v2060 = vpop.f32.mrb[0].mxu0
        %2061 = vmatprep.mubr.bf16.mxu0 %v1141
        %2062 = vmatmul.mubr.bf16.gmra.mrb[0].mxu0 %v1140
        %v2063 = vpop.f32.mrb[0].mxu0
        %v2064 = vadd.f32 %v1903, %v2063
        %v2065 = vpop.f32.mrb[0].mxu0
        %v2066 = vpop.f32.mrb[0].mxu0
        %v2067 = vadd.f32 %v1906, %v2066
        %v2068 = vpop.f32.mrb[0].mxu0
        %2069 = vmatprep.mubr.bf16.mxu0 %v1148
        %2070 = vmatmul.mubr.bf16.gmra.mrb[0].mxu0 %v1147
        %v2071 = vpop.f32.mrb[0].mxu0
        %v2072 = vadd.f32 %v1911, %v2071
        %v2073 = vpop.f32.mrb[0].mxu0
        %v2074 = vpop.f32.mrb[0].mxu0
        %v2075 = vadd.f32 %v1914, %v2074
        %v2076 = vpop.f32.mrb[0].mxu0
        %2077 = vdwg.mxu0
        %2078 = vmatprep.subr.bf16.mxu0 0
        %2079 = vmatpush1.bf16.msra.mxu0 %v1494
        %2080 = vmatprep.subr.bf16.mxu0 0
        %2081 = vmatpush1.bf16.msra.mxu0 %v1495
        %2082 = vmatprep.subr.bf16.mxu0 0
        %2083 = vmatpush1.bf16.msra.mxu0 0
        %2084 = vmatprep.subr.bf16.mxu0 0
        %2085 = vmatpush1.bf16.msra.mxu0 0
        %2086 = vmatprep.subr.bf16.mxu0 0
        %2087 = vmatpush1.bf16.msra.mxu0 0
        %2088 = vmatprep.subr.bf16.mxu0 0
        %2089 = vmatpush1.bf16.msra.mxu0 0
        %2090 = vmatprep.subr.bf16.mxu0 0
        %2091 = vmatpush1.bf16.msra.mxu0 0
        %2092 = vmatprep.subr.bf16.mxu0 0
        %2093 = vmatpush1.bf16.msra.mxu0 0
        %2094 = vmatprep.subr.bf16.mxu0 0
        %2095 = vmatpush1.bf16.msra.mxu0 0
        %2096 = vmatprep.subr.bf16.mxu0 0
        %2097 = vmatpush1.bf16.msra.mxu0 0
        %2098 = vmatprep.subr.bf16.mxu0 0
        %2099 = vmatpush1.bf16.msra.mxu0 0
        %2100 = vmatprep.subr.bf16.mxu0 0
        %2101 = vmatpush1.bf16.msra.mxu0 0
        %2102 = vmatprep.subr.bf16.mxu0 0
        %2103 = vmatpush1.bf16.msra.mxu0 0
        %2104 = vmatprep.subr.bf16.mxu0 0
        %2105 = vmatpush1.bf16.msra.mxu0 0
        %2106 = vmatprep.subr.bf16.mxu0 0
        %2107 = vmatpush1.bf16.msra.mxu0 0
        %2108 = vmatprep.subr.bf16.mxu0 0
        %2109 = vmatpush1.bf16.msra.mxu0 0
        %2110 = vmatprep.mubr.bf16.mxu0 0
        %2111 = vmatmul.mubr.bf16.gmra.mrb[0].mxu0 %v1548
        %v2112 = vpop.f32.mrb[0].mxu0
        %v2113 = vadd.f32 %v1952, %v2112
        %v2114 = vpop.f32.mrb[0].mxu0
        %v2115 = vpop.f32.mrb[0].mxu0
        %v2116 = vadd.f32 %v1955, %v2115
        %v2117 = vpop.f32.mrb[0].mxu0
        %2118 = vmatprep.mubr.bf16.mxu0 0
        %2119 = vmatmul.mubr.bf16.gmra.mrb[0].mxu0 %v1551
        %v2120 = vpop.f32.mrb[0].mxu0
        %v2121 = vadd.f32 %v1960, %v2120
        %v2122 = vpop.f32.mrb[0].mxu0
        %v2123 = vpop.f32.mrb[0].mxu0
        %v2124 = vadd.f32 %v1963, %v2123
        %v2125 = vpop.f32.mrb[0].mxu0
        %2126 = vmatprep.mubr.bf16.mxu0 0
        %2127 = vmatmul.mubr.bf16.gmra.mrb[0].mxu0 %v1554
        %v2128 = vpop.f32.mrb[0].mxu0
        %v2129 = vadd.f32 %v1968, %v2128
        %v2130 = vpop.f32.mrb[0].mxu0
        %v2131 = vpop.f32.mrb[0].mxu0
        %v2132 = vadd.f32 %v1971, %v2131
        %v2133 = vpop.f32.mrb[0].mxu0
        %2134 = vmatprep.mubr.bf16.mxu0 0
        %2135 = vmatmul.mubr.bf16.gmra.mrb[0].mxu0 %v1557
        %v2136 = vpop.f32.mrb[0].mxu0
        %v2137 = vadd.f32 %v1976, %v2136
        %v2138 = vpop.f32.mrb[0].mxu0
        %v2139 = vpop.f32.mrb[0].mxu0
        %v2140 = vadd.f32 %v1979, %v2139
        %v2141 = vpop.f32.mrb[0].mxu0
        %2142 = vmatprep.mubr.bf16.mxu0 0
        %2143 = vmatmul.mubr.bf16.gmra.mrb[0].mxu0 %v1560
        %v2144 = vpop.f32.mrb[0].mxu0
        %v2145 = vadd.f32 %v1984, %v2144
        %v2146 = vpop.f32.mrb[0].mxu0
        %v2147 = vpop.f32.mrb[0].mxu0
        %v2148 = vadd.f32 %v1987, %v2147
        %v2149 = vpop.f32.mrb[0].mxu0
        %2150 = vmatprep.mubr.bf16.mxu0 0
        %2151 = vmatmul.mubr.bf16.gmra.mrb[0].mxu0 %v1563
        %v2152 = vpop.f32.mrb[0].mxu0
        %v2153 = vadd.f32 %v1992, %v2152
        %v2154 = vpop.f32.mrb[0].mxu0
        %v2155 = vpop.f32.mrb[0].mxu0
        %v2156 = vadd.f32 %v1995, %v2155
        %v2157 = vpop.f32.mrb[0].mxu0
        %2158 = vmatprep.mubr.bf16.mxu0 0
        %2159 = vmatmul.mubr.bf16.gmra.mrb[0].mxu0 %v1566
        %v2160 = vpop.f32.mrb[0].mxu0
        %v2161 = vadd.f32 %v2000, %v2160
        %v2162 = vpop.f32.mrb[0].mxu0
        %v2163 = vpop.f32.mrb[0].mxu0
        %v2164 = vadd.f32 %v2003, %v2163
        %v2165 = vpop.f32.mrb[0].mxu0
        %2166 = vmatprep.mubr.bf16.mxu0 0
        %2167 = vmatmul.mubr.bf16.gmra.mrb[0].mxu0 %v1569
        %v2168 = vpop.f32.mrb[0].mxu0
        %v2169 = vadd.f32 %v2008, %v2168
        %v2170 = vpop.f32.mrb[0].mxu0
        %v2171 = vpop.f32.mrb[0].mxu0
        %v2172 = vadd.f32 %v2011, %v2171
        %v2173 = vpop.f32.mrb[0].mxu0
        %2174 = vmatprep.mubr.bf16.mxu0 0
        %2175 = vmatmul.mubr.bf16.gmra.mrb[0].mxu0 %v1572
        %v2176 = vpop.f32.mrb[0].mxu0
        %v2177 = vadd.f32 %v2016, %v2176
        %v2178 = vpop.f32.mrb[0].mxu0
        %v2179 = vpop.f32.mrb[0].mxu0
        %v2180 = vadd.f32 %v2019, %v2179
        %v2181 = vpop.f32.mrb[0].mxu0
        %2182 = vmatprep.mubr.bf16.mxu0 0
        %2183 = vmatmul.mubr.bf16.gmra.mrb[0].mxu0 %v1575
        %v2184 = vpop.f32.mrb[0].mxu0
        %v2185 = vadd.f32 %v2024, %v2184
        %v2186 = vpop.f32.mrb[0].mxu0
        %v2187 = vpop.f32.mrb[0].mxu0
        %v2188 = vadd.f32 %v2027, %v2187
        %v2189 = vpop.f32.mrb[0].mxu0
        %2190 = vmatprep.mubr.bf16.mxu0 0
        %2191 = vmatmul.mubr.bf16.gmra.mrb[0].mxu0 %v1578
        %v2192 = vpop.f32.mrb[0].mxu0
        %v2193 = vadd.f32 %v2032, %v2192
        %v2194 = vpop.f32.mrb[0].mxu0
        %v2195 = vpop.f32.mrb[0].mxu0
        %v2196 = vadd.f32 %v2035, %v2195
        %v2197 = vpop.f32.mrb[0].mxu0
        %2198 = vmatprep.mubr.bf16.mxu0 0
        %2199 = vmatmul.mubr.bf16.gmra.mrb[0].mxu0 %v1581
        %v2200 = vpop.f32.mrb[0].mxu0
        %v2201 = vadd.f32 %v2040, %v2200
        %v2202 = vpop.f32.mrb[0].mxu0
        %v2203 = vpop.f32.mrb[0].mxu0
        %v2204 = vadd.f32 %v2043, %v2203
        %v2205 = vpop.f32.mrb[0].mxu0
        %2206 = vmatprep.mubr.bf16.mxu0 0
        %2207 = vmatmul.mubr.bf16.gmra.mrb[0].mxu0 %v1584
        %v2208 = vpop.f32.mrb[0].mxu0
        %v2209 = vadd.f32 %v2048, %v2208
        %v2210 = vpop.f32.mrb[0].mxu0
        %v2211 = vpop.f32.mrb[0].mxu0
        %v2212 = vadd.f32 %v2051, %v2211
        %v2213 = vpop.f32.mrb[0].mxu0
        %2214 = vmatprep.mubr.bf16.mxu0 0
        %2215 = vmatmul.mubr.bf16.gmra.mrb[0].mxu0 %v1587
        %v2216 = vpop.f32.mrb[0].mxu0
        %v2217 = vadd.f32 %v2056, %v2216
        %v2218 = vpop.f32.mrb[0].mxu0
        %v2219 = vpop.f32.mrb[0].mxu0
        %v2220 = vadd.f32 %v2059, %v2219
        %v2221 = vpop.f32.mrb[0].mxu0
        %2222 = vmatprep.mubr.bf16.mxu0 0
        %2223 = vmatmul.mubr.bf16.gmra.mrb[0].mxu0 %v1590
        %v2224 = vpop.f32.mrb[0].mxu0
        %v2225 = vadd.f32 %v2064, %v2224
        %v2226 = vpop.f32.mrb[0].mxu0
        %v2227 = vpop.f32.mrb[0].mxu0
        %v2228 = vadd.f32 %v2067, %v2227
        %v2229 = vpop.f32.mrb[0].mxu0
        %2230 = vmatprep.mubr.bf16.mxu0 0
        %2231 = vmatmul.mubr.bf16.gmra.mrb[0].mxu0 %v1593
        %v2232 = vpop.f32.mrb[0].mxu0
        %v2233 = vadd.f32 %v2072, %v2232
        %v2234 = vpop.f32.mrb[0].mxu0
        %v2235 = vpop.f32.mrb[0].mxu0
        %v2236 = vadd.f32 %v2075, %v2235
        %v2237 = vpop.f32.mrb[0].mxu0
        %2238 = vdwg.mxu0
        %v2239 = vmax.f32 %v2113, %v2145
        %v2240 = vmax.f32 %v2116, %v2148
        %v2241 = vmax.f32 %v2121, %v2153
        %v2242 = vmax.f32 %v2124, %v2156
        %v2243 = vmax.f32 %v2129, %v2161
        %v2244 = vmax.f32 %v2132, %v2164
        %v2245 = vmax.f32 %v2137, %v2169
        %v2246 = vmax.f32 %v2140, %v2172
        %v2247 = vmax.f32 %v2177, %v2209
        %v2248 = vmax.f32 %v2180, %v2212
        %v2249 = vmax.f32 %v2185, %v2217
        %v2250 = vmax.f32 %v2188, %v2220
        %v2251 = vmax.f32 %v2193, %v2225
        %v2252 = vmax.f32 %v2196, %v2228
        %v2253 = vmax.f32 %v2201, %v2233
        %v2254 = vmax.f32 %v2204, %v2236
        %v2255 = vmax.f32 %v2239, %v2247
        %v2256 = vmax.f32 %v2240, %v2248
        %v2257 = vmax.f32 %v2241, %v2249
        %v2258 = vmax.f32 %v2242, %v2250
        %v2259 = vmax.f32 %v2243, %v2251
        %v2260 = vmax.f32 %v2244, %v2252
        %v2261 = vmax.f32 %v2245, %v2253
        %v2262 = vmax.f32 %v2246, %v2254
        %v2263 = vld [vmem:[%s2] sm:$0x1]
        %v2265 = vlaneseq
        %v2266 = vshrl.u32 %v2265, 7
        %v2267 = vsub.s32 0, %v2266
        %v2268 = vrot.slane %v2263, %v2267
        %v2270 = vadd.f32 %v2255, %v2268
        %v2271 = vadd.f32 %v2256, %v2268
        %v2272 = vadd.f32 %v2257, %v2268
        %v2273 = vadd.f32 %v2258, %v2268
        %v2274 = vadd.f32 %v2259, %v2268
        %v2275 = vadd.f32 %v2260, %v2268
        %v2276 = vadd.f32 %v2261, %v2268
        %v2277 = vadd.f32 %v2262, %v2268
        %v2278 = vpack.c.bf16 %v2271, %v2270
        %v2279 = vpack.c.bf16 %v2273, %v2272
        %v2280 = vpack.c.bf16 %v2275, %v2274
        %v2281 = vpack.c.bf16 %v2277, %v2276
        %v2286 = vunpack.c.l.b16 %v2278
        %v2287 = vunpack.c.h.b16 %v2278
        %v2288 = vunpack.c.l.b16 %v2279
        %v2289 = vunpack.c.h.b16 %v2279
        %v2290 = vunpack.c.l.b16 %v2280
        %v2291 = vunpack.c.h.b16 %v2280
        %v2292 = vunpack.c.l.b16 %v2281
        %v2293 = vunpack.c.h.b16 %v2281
        %v2294 = vpack.c.b16 %v2286, %v2286
        %v2295 = vpack.c.b16 %v2287, %v2287
        %v2296 = vpack.c.b16 %v2288, %v2288
        %v2297 = vpack.c.b16 %v2289, %v2289
        %v2298 = vpack.c.b16 %v2290, %v2290
        %v2299 = vpack.c.b16 %v2291, %v2291
        %v2300 = vpack.c.b16 %v2292, %v2292
        %v2301 = vpack.c.b16 %v2293, %v2293
        %vm2310 = vcmask 257024
        %2311 = vst.msk [vmem:[%s455] sm:$0xf] %vm2310, %v2294
        %2312 = vst.msk [vmem:[%s455 + $0x4] sm:$0xf] %vm2310, %v2295
        %2313 = vst.msk [vmem:[%s455 + $0x8] sm:$0xf] %vm2310, %v2296
        %2314 = vst.msk [vmem:[%s455 + $0xc] sm:$0xf] %vm2310, %v2297
        %2315 = vst.msk [vmem:[%s455 + $0x10] sm:$0xf] %vm2310, %v2298
        %2316 = vst.msk [vmem:[%s455 + $0x14] sm:$0xf] %vm2310, %v2299
        %2317 = vst.msk [vmem:[%s455 + $0x18] sm:$0xf] %vm2310, %v2300
        %2318 = vst.msk [vmem:[%s455 + $0x1c] sm:$0xf] %vm2310, %v2301
        %s2319 = smul.u32 8, %s14
        %p2320 = scmp.lt.s32.totalorder %s2319, 15
        %s2321 = scalar_select %p2320, %s2319, 15
        %s2322 = smul.addr %s2321, 4
        %s2323 = scalar_lea.vmem %s3, %s2322
        // Predicated region
        $region59: #{model_forward.5} parent=53 // pred_check
          %p2324 = pneg %p100
        $region60: #{model_forward.5} parent=53 // pred_check_branch
          %2326 = sbr.rel (%p2324) target = $region62
        $region61: #{model_forward.5} parent=53 // pred_region
          %s2327 = smul.u32 8, %s14
        $region62: #{model_forward.5} parent=53 // pred_fallthru
          _
      $region54: #{model_forward.5} parent=5 // pred_fallthru
        _
      %p2328 = scmp.le.s32.totalorder 2, %s9
      // Predicated region
      $region63: #{model_forward.5} parent=5 // pred_check
        %p2329 = pneg %p2328
      $region64: #{model_forward.5} parent=5 // pred_check_branch
        %2331 = sbr.rel (%p2329) target = $region66
      $region65: #{model_forward.5} parent=5 // pred_region
        %s2332 = ssub.s32 %s9, 2
        // Predicated region
        $region67: #{model_forward.5} parent=65 // pred_check
          %p2333 = pneg %p106
        $region68: #{model_forward.5} parent=65 // pred_check_branch
          %2335 = sbr.rel (%p2333) target = $region70
        $region69: #{model_forward.5} parent=65 // pred_region
          %s2336 = smul.u32 8, %s15
          %p2337 = scmp.lt.s32.totalorder %s2336, 15
          %s2338 = scalar_select %p2337, %s2336, 15
          %s2339 = smul.addr %s2338, 4
          %s2340 = scalar_lea.vmem %s3, %s2339
        $region70: #{model_forward.5} parent=65 // pred_fallthru
          _
      $region66: #{model_forward.5} parent=5 // pred_fallthru
        _
    $region6: #{model_forward.5} parent=1 // loop_footer
      %s13 = sadd.s32 1, %s9
    $region7: #{model_forward.5} parent=1 // loop_footer_branch
      %8 = sbr.rel target = $region3
    $region8: #{model_forward.5} parent=1 // loop_exit
      _

// kernel: model_forward.6
$region0: #{model_forward.6}
  #allocation0 [shape = 'u32[]', space=smem, size = 0x4, offset = 0x4, fixed_abs, tag = 'smem constant byte address 0x4 - core index']
  #allocation1 [shape = 'u32[144,128]{1,0:T(1,128)}', space=vmem, size = 0x12000, scoped, tag = 'internal scratch']
  %s0 = inlined_call_operand.vmem [shape: bf16[4,32,800], index: 0, kind: input, shape index: {}]
  %s1 = inlined_call_operand.vmem [shape: bf16[800,64], index: 1, kind: input, shape index: {}]
  %s2 = inlined_call_operand.vmem [shape: f32[1,64], index: 2, kind: input, shape index: {}]
  %s3 = inlined_call_operand.vmem [shape: bf16[32,64], index: 3, kind: output, shape index: {}]
  %s4 = sld [smem:[#allocation0]]
  $region71: #{model_forward.6} parent=0
    _
  %s6 = ssub.s32 1, %s4
  %s7 = scalar_select 0, %s6, %s4
  $region1: #{model_forward.6} parent=0
    #allocation2 [shape = 'u8[229376]{0}', space=vmem, size = 0x38000, scoped, tag = 'input window, operand 0']
    loop: start=0, step=1, limit=4
    $region2: #{model_forward.6} parent=1 // loop_pre_header
      _
    $region3: #{model_forward.6} parent=1 // loop_header
      %s9 = sphi 0, %s13
      %p10 = scmp.ge.s32.totalorder %s9, 4
      %s19 = sphi 0, %s21
      %s22 = sphi 0, %s19
      %s23 = sphi 0, %s22
      %s39 = sphi 0, %s23
      %s43 = sphi 0, %s43
      %s45 = sphi 0, %s43
      %s46 = sphi 0, %s45
      %s60 = sphi 0, %s46
      %s64 = sphi 0, %s64
      %s66 = sphi 0, %s64
      %s67 = sphi 0, %s66
      %s81 = sphi 0, %s67
      %s87 = sphi 0, %s89
      %s90 = sphi 0, %s87
      %s91 = sphi 0, %s90
      %s107 = sphi 0, %s91
    $region4: #{model_forward.6} parent=1 // loop_header_branch
      %12 = sbr.rel (%p10) target = $region8
    $region5: #{model_forward.6} parent=1 // loop_body
      %s14 = ssub.s32 %s9, 1
      %s15 = ssub.s32 %s9, 2
      %s16 = sadd.s32 %s9, 1
      %s17 = ssub.s32 %s9, %s16
      %p18 = scmp.eq.s32.totalorder %s17, 0
      %s20 = sadd.s32 %s19, 1
      %s21 = scalar_select %p18, %s19, %s20
      %p24 = pneg %p18
      %p25 = scmp.eq.s32.totalorder %s9, 1
      %p26 = por %p24, %p25
      %p27 = scmp.ne.s32.totalorder %s19, %s22
      %p28 = scmp.eq.s32.totalorder %s9, 0
      %p29 = por %p27, %p28
      %p30 = scmp.ne.s32.totalorder %s19, %s22
      %p31 = scmp.eq.s32.totalorder %s14, 1
      %p32 = por %p30, %p31
      %p33 = scmp.ne.s32.totalorder %s22, %s23
      %p34 = scmp.eq.s32.totalorder %s14, 0
      %p35 = por %p33, %p34
      %p36 = scmp.ne.s32.totalorder %s22, %s23
      %p37 = scmp.eq.s32.totalorder %s15, 1
      %p38 = por %p36, %p37
      %p40 = scmp.ne.s32.totalorder %s23, %s39
      %p41 = scmp.eq.s32.totalorder %s15, 0
      %p42 = por %p40, %p41
      %s44 = sadd.s32 %s43, 1
      %p47 = scmp.eq.s32.totalorder %s9, 1
      %p48 = scmp.ne.s32.totalorder %s43, %s45
      %p49 = scmp.eq.s32.totalorder %s9, 0
      %p50 = por %p48, %p49
      %p51 = scmp.ne.s32.totalorder %s43, %s45
      %p52 = scmp.eq.s32.totalorder %s14, 1
      %p53 = por %p51, %p52
      %p54 = scmp.ne.s32.totalorder %s45, %s46
      %p55 = scmp.eq.s32.totalorder %s14, 0
      %p56 = por %p54, %p55
      %p57 = scmp.ne.s32.totalorder %s45, %s46
      %p58 = scmp.eq.s32.totalorder %s15, 1
      %p59 = por %p57, %p58
      %p61 = scmp.ne.s32.totalorder %s46, %s60
      %p62 = scmp.eq.s32.totalorder %s15, 0
      %p63 = por %p61, %p62
      %s65 = sadd.s32 %s64, 1
      %p68 = scmp.eq.s32.totalorder %s9, 1
      %p69 = scmp.ne.s32.totalorder %s64, %s66
      %p70 = scmp.eq.s32.totalorder %s9, 0
      %p71 = por %p69, %p70
      %p72 = scmp.ne.s32.totalorder %s64, %s66
      %p73 = scmp.eq.s32.totalorder %s14, 1
      %p74 = por %p72, %p73
      %p75 = scmp.ne.s32.totalorder %s66, %s67
      %p76 = scmp.eq.s32.totalorder %s14, 0
      %p77 = por %p75, %p76
      %p78 = scmp.ne.s32.totalorder %s66, %s67
      %p79 = scmp.eq.s32.totalorder %s15, 1
      %p80 = por %p78, %p79
      %p82 = scmp.ne.s32.totalorder %s67, %s81
      %p83 = scmp.eq.s32.totalorder %s15, 0
      %p84 = por %p82, %p83
      %s85 = ssub.s32 %s9, %s16
      %p86 = scmp.eq.s32.totalorder %s85, 0
      %s88 = sadd.s32 %s87, 1
      %s89 = scalar_select %p86, %s87, %s88
      %p92 = pneg %p86
      %p93 = scmp.eq.s32.totalorder %s9, 1
      %p94 = por %p92, %p93
      %p95 = scmp.ne.s32.totalorder %s87, %s90
      %p96 = scmp.eq.s32.totalorder %s9, 0
      %p97 = por %p95, %p96
      %p98 = scmp.ne.s32.totalorder %s87, %s90
      %p99 = scmp.eq.s32.totalorder %s14, 1
      %p100 = por %p98, %p99
      %p101 = scmp.ne.s32.totalorder %s90, %s91
      %p102 = scmp.eq.s32.totalorder %s14, 0
      %p103 = por %p101, %p102
      %p104 = scmp.ne.s32.totalorder %s90, %s91
      %p105 = scmp.eq.s32.totalorder %s15, 1
      %p106 = por %p104, %p105
      %p108 = scmp.ne.s32.totalorder %s91, %s107
      %p109 = scmp.eq.s32.totalorder %s15, 0
      %p110 = por %p108, %p109
      %p111 = scmp.le.s32.totalorder 1, %s9
      %p112 = scmp.lt.s32.totalorder %s9, 3
      %p113 = pnand %p111, %p112
      %p114 = pneg %p113
      // Predicated region
      $region9: #{model_forward.6} parent=5 // pred_check
        _
      $region10: #{model_forward.6} parent=5 // pred_check_branch
        %116 = sbr.rel (%p113) target = $region12
      $region11: #{model_forward.6} parent=5 // pred_region
        %s117 = ssub.s32 %s9, 1
        // Predicated region
        $region13: #{model_forward.6} parent=11 // pred_check
          %p118 = pneg %p56
        $region14: #{model_forward.6} parent=11 // pred_check_branch
          %120 = sbr.rel (%p118) target = $region16
        $region15: #{model_forward.6} parent=11 // pred_region
          _
        $region16: #{model_forward.6} parent=11 // pred_fallthru
          _
        // Predicated region
        $region17: #{model_forward.6} parent=11 // pred_check
          %p121 = pneg %p77
        $region18: #{model_forward.6} parent=11 // pred_check_branch
          %123 = sbr.rel (%p121) target = $region20
        $region19: #{model_forward.6} parent=11 // pred_region
          _
        $region20: #{model_forward.6} parent=11 // pred_fallthru
          _
      $region12: #{model_forward.6} parent=5 // pred_fallthru
        _
      %p124 = scmp.lt.s32.totalorder %s9, 2
      // Predicated region
      $region21: #{model_forward.6} parent=5 // pred_check
        %p125 = pneg %p124
      $region22: #{model_forward.6} parent=5 // pred_check_branch
        %127 = sbr.rel (%p125) target = $region24
      $region23: #{model_forward.6} parent=5 // pred_region
        // Predicated region
        $region25: #{model_forward.6} parent=23 // pred_check
          %p128 = pneg %p29
        $region26: #{model_forward.6} parent=23 // pred_check_branch
          %130 = sbr.rel (%p128) target = $region28
        $region27: #{model_forward.6} parent=23 // pred_region
          %s131 = sand.u32 %s19, 1
          %s132 = sand.u32 %s19, 1
          %s133 = smul.addr %s132, 224
          %s134 = scalar_lea.vmem [#allocation2], %s133
          %s135 = smul.u32 2, %s9
          %s136 = smul.addr %s135, 7
          %s137 = smul.addr %s136, 4
          %s138 = scalar_lea.vmem %s0, %s137
          // Predicated region
          $region29: #{model_forward.6} parent=27 // pred_check
            _
          $region30: #{model_forward.6} parent=27 // pred_check_branch
            %140 = sbr.rel (0) target = $region32
          $region31: #{model_forward.6} parent=27 // pred_region
            // Predicated region
            $region33: #{model_forward.6} parent=31 // pred_check
              _
            $region34: #{model_forward.6} parent=31 // pred_check_branch
              %142 = sbr.rel (0) target = $region36
            $region35: #{model_forward.6} parent=31 // pred_region
              %s143 = scalar_lea.vmem %s138, 24
              %s144 = scalar_lea.vmem %s134, 24 [#allocation2]
              loop: start=0, step=1, limit=1
              $region37: #{model_forward.6} parent=35 // loop_pre_header
                _
              $region38: #{model_forward.6} parent=35 // loop_header
                %s146 = sphi 0, %s150
                %p147 = scmp.ge.s32.totalorder %s146, 1
                %s151 = sphi %s138, %s138
                %s152 = sphi %s134, %s134
              $region39: #{model_forward.6} parent=35 // loop_header_branch
                %149 = sbr.rel (%p147) target = $region43
              $region40: #{model_forward.6} parent=35 // loop_body
                %v153 = vld [vmem:[%s151] sm:$0xff]
                %154 = vst [vmem:[%s152] sm:$0xff] %v153
                %v155 = vld [vmem:[%s151 + $0x8] sm:$0xff]
                %156 = vst [vmem:[%s152 + $0x8] sm:$0xff] %v155
                %v157 = vld [vmem:[%s151 + $0x10] sm:$0xff]
                %158 = vst [vmem:[%s152 + $0x10] sm:$0xff] %v157
                %v159 = vld [vmem:[%s151 + $0x1c] sm:$0xff]
                %160 = vst [vmem:[%s152 + $0x1c] sm:$0xff] %v159
                %v161 = vld [vmem:[%s151 + $0x24] sm:$0xff]
                %162 = vst [vmem:[%s152 + $0x24] sm:$0xff] %v161
                %v163 = vld [vmem:[%s151 + $0x2c] sm:$0xff]
                %164 = vst [vmem:[%s152 + $0x2c] sm:$0xff] %v163
                %v165 = vld [vmem:[%s151 + $0x70] sm:$0xff]
                %166 = vst [vmem:[%s152 + $0x38] sm:$0xff] %v165
                %v167 = vld [vmem:[%s151 + $0x78] sm:$0xff]
                %168 = vst [vmem:[%s152 + $0x40] sm:$0xff] %v167
                %v169 = vld [vmem:[%s151 + $0x80] sm:$0xff]
                %170 = vst [vmem:[%s152 + $0x48] sm:$0xff] %v169
                %v171 = vld [vmem:[%s151 + $0x8c] sm:$0xff]
                %172 = vst [vmem:[%s152 + $0x54] sm:$0xff] %v171
                %v173 = vld [vmem:[%s151 + $0x94] sm:$0xff]
                %174 = vst [vmem:[%s152 + $0x5c] sm:$0xff] %v173
                %v175 = vld [vmem:[%s151 + $0x9c] sm:$0xff]
                %176 = vst [vmem:[%s152 + $0x64] sm:$0xff] %v175
                %v177 = vld [vmem:[%s151 + $0xe0] sm:$0xff]
                %178 = vst [vmem:[%s152 + $0x70] sm:$0xff] %v177
                %v179 = vld [vmem:[%s151 + $0xe8] sm:$0xff]
                %180 = vst [vmem:[%s152 + $0x78] sm:$0xff] %v179
                %v181 = vld [vmem:[%s151 + $0xf0] sm:$0xff]
                %182 = vst [vmem:[%s152 + $0x80] sm:$0xff] %v181
                %v183 = vld [vmem:[%s151 + $0xfc] sm:$0xff]
                %184 = vst [vmem:[%s152 + $0x8c] sm:$0xff] %v183
                %v185 = vld [vmem:[%s151 + $0x104] sm:$0xff]
                %186 = vst [vmem:[%s152 + $0x94] sm:$0xff] %v185
                %v187 = vld [vmem:[%s151 + $0x10c] sm:$0xff]
                %188 = vst [vmem:[%s152 + $0x9c] sm:$0xff] %v187
                %v189 = vld [vmem:[%s151 + $0x150] sm:$0xff]
                %190 = vst [vmem:[%s152 + $0xa8] sm:$0xff] %v189
                %v191 = vld [vmem:[%s151 + $0x158] sm:$0xff]
                %192 = vst [vmem:[%s152 + $0xb0] sm:$0xff] %v191
                %v193 = vld [vmem:[%s151 + $0x160] sm:$0xff]
                %194 = vst [vmem:[%s152 + $0xb8] sm:$0xff] %v193
                %v195 = vld [vmem:[%s151 + $0x16c] sm:$0xff]
                %196 = vst [vmem:[%s152 + $0xc4] sm:$0xff] %v195
                %v197 = vld [vmem:[%s151 + $0x174] sm:$0xff]
                %198 = vst [vmem:[%s152 + $0xcc] sm:$0xff] %v197
                %v199 = vld [vmem:[%s151 + $0x17c] sm:$0xff]
                %200 = vst [vmem:[%s152 + $0xd4] sm:$0xff] %v199
              $region41: #{model_forward.6} parent=35 // loop_footer
                %s150 = sadd.s32 1, %s146
              $region42: #{model_forward.6} parent=35 // loop_footer_branch
                %145 = sbr.rel target = $region38
              $region43: #{model_forward.6} parent=35 // loop_exit
                _
              loop: start=0, step=1, limit=1
              $region44: #{model_forward.6} parent=35 // loop_pre_header
                _
              $region45: #{model_forward.6} parent=35 // loop_header
                %s203 = sphi 0, %s207
                %p204 = scmp.ge.s32.totalorder %s203, 1
                %s208 = sphi %s143, %s143
                %s209 = sphi %s144, %s144
              $region46: #{model_forward.6} parent=35 // loop_header_branch
                %206 = sbr.rel (%p204) target = $region50
              $region47: #{model_forward.6} parent=35 // loop_body
                %v210 = vld [vmem:[%s208] sm:$0xf]
                %211 = vst [vmem:[%s209] sm:$0xf] %v210
                %v212 = vld [vmem:[%s208 + $0x1c] sm:$0xf]
                %213 = vst [vmem:[%s209 + $0x1c] sm:$0xf] %v212
                %v214 = vld [vmem:[%s208 + $0x70] sm:$0xf]
                %215 = vst [vmem:[%s209 + $0x38] sm:$0xf] %v214
                %v216 = vld [vmem:[%s208 + $0x8c] sm:$0xf]
                %217 = vst [vmem:[%s209 + $0x54] sm:$0xf] %v216
                %v218 = vld [vmem:[%s208 + $0xe0] sm:$0xf]
                %219 = vst [vmem:[%s209 + $0x70] sm:$0xf] %v218
                %v220 = vld [vmem:[%s208 + $0xfc] sm:$0xf]
                %221 = vst [vmem:[%s209 + $0x8c] sm:$0xf] %v220
                %v222 = vld [vmem:[%s208 + $0x150] sm:$0xf]
                %223 = vst [vmem:[%s209 + $0xa8] sm:$0xf] %v222
                %v224 = vld [vmem:[%s208 + $0x16c] sm:$0xf]
                %225 = vst [vmem:[%s209 + $0xc4] sm:$0xf] %v224
              $region48: #{model_forward.6} parent=35 // loop_footer
                %s207 = sadd.s32 1, %s203
              $region49: #{model_forward.6} parent=35 // loop_footer_branch
                %202 = sbr.rel target = $region45
              $region50: #{model_forward.6} parent=35 // loop_exit
                _
            $region36: #{model_forward.6} parent=31 // pred_fallthru
              _
          $region32: #{model_forward.6} parent=27 // pred_fallthru
            _
          %226 = vnop
        $region28: #{model_forward.6} parent=23 // pred_fallthru
          _
      $region24: #{model_forward.6} parent=5 // pred_fallthru
        _
      %p227 = scmp.le.s32.totalorder 1, %s9
      %p228 = scmp.lt.s32.totalorder %s9, 3
      %p229 = pnand %p227, %p228
      %p230 = pneg %p229
      // Predicated region
      $region51: #{model_forward.6} parent=5 // pred_check
        _
      $region52: #{model_forward.6} parent=5 // pred_check_branch
        %232 = sbr.rel (%p229) target = $region54
      $region53: #{model_forward.6} parent=5 // pred_region
        %s233 = ssub.s32 %s9, 1
        %s234 = sand.u32 %s22, 1
        %s235 = sand.u32 %s22, 1
        %s236 = smul.addr %s235, 224
        %s237 = scalar_lea.vmem [#allocation2], %s236
        // Predicated region
        $region55: #{model_forward.6} parent=53 // pred_check
          %p238 = pneg %p35
        $region56: #{model_forward.6} parent=53 // pred_check_branch
          %240 = sbr.rel (%p238) target = $region58
        $region57: #{model_forward.6} parent=53 // pred_region
          _
        $region58: #{model_forward.6} parent=53 // pred_fallthru
          _
        %s241 = sand.u32 %s22, 1
        %s242 = sand.u32 %s22, 1
        %s243 = smul.addr %s242, 224
        %s244 = scalar_lea.vmem [#allocation2], %s243
        %p245 = pneg %p35
        %p246 = pneg %p32
        %p247 = pneg %p56
        %p248 = pneg %p53
        %p249 = pneg %p77
        %p250 = pneg %p74
        %p251 = pneg %p103
        %p252 = pneg %p100
        %s253 = smul.u32 2, %s14
        %p254 = scmp.lt.s32.totalorder %s253, 3
        %s255 = scalar_select %p254, %s253, 3
        %s256 = smul.addr %s255, 4
        %s257 = scalar_lea.vmem %s3, %s256
        %s258 = smul.u32 2, %s14
        %s259 = smul.u32 2, %s14
        %p260 = scmp.lt.s32.totalorder %s259, 3
        %s261 = scalar_select %p260, %s259, 3
        %s262 = smul.addr %s261, 4
        %s263 = scalar_lea.vmem %s3, %s262
        %s264 = smul.u32 2, %s14
        %v266 = vld [vmem:[%s237] sm:$0xff]
        %v267 = vld [vmem:[%s237 + $0x8] sm:$0xff]
        %v268 = vld [vmem:[%s237 + $0x10] sm:$0xff]
        %v269 = vld [vmem:[%s237 + $0x18] sm:$0xf]
        %v270 = vld [vmem:[%s237 + $0x1c] sm:$0xff]
        %v271 = vld [vmem:[%s237 + $0x24] sm:$0xff]
        %v272 = vld [vmem:[%s237 + $0x2c] sm:$0xff]
        %v273 = vld [vmem:[%s237 + $0x34] sm:$0xf]
        %v274 = vld [vmem:[%s237 + $0x38] sm:$0xff]
        %v275 = vld [vmem:[%s237 + $0x40] sm:$0xff]
        %v276 = vld [vmem:[%s237 + $0x48] sm:$0xff]
        %v277 = vld [vmem:[%s237 + $0x50] sm:$0xf]
        %v278 = vld [vmem:[%s237 + $0x54] sm:$0xff]
        %v279 = vld [vmem:[%s237 + $0x5c] sm:$0xff]
        %v280 = vld [vmem:[%s237 + $0x64] sm:$0xff]
        %v281 = vld [vmem:[%s237 + $0x6c] sm:$0xf]
        %v282 = vld [vmem:[%s237 + $0x70] sm:$0xff]
        %v283 = vld [vmem:[%s237 + $0x78] sm:$0xff]
        %v284 = vld [vmem:[%s237 + $0x80] sm:$0xff]
        %v285 = vld [vmem:[%s237 + $0x88] sm:$0xf]
        %v286 = vld [vmem:[%s237 + $0x8c] sm:$0xff]
        %v287 = vld [vmem:[%s237 + $0x94] sm:$0xff]
        %v288 = vld [vmem:[%s237 + $0x9c] sm:$0xff]
        %v289 = vld [vmem:[%s237 + $0xa4] sm:$0xf]
        %v290 = vld [vmem:[%s237 + $0xa8] sm:$0xff]
        %v291 = vld [vmem:[%s237 + $0xb0] sm:$0xff]
        %v292 = vld [vmem:[%s237 + $0xb8] sm:$0xff]
        %v293 = vld [vmem:[%s237 + $0xc0] sm:$0xf]
        %v294 = vld [vmem:[%s237 + $0xc4] sm:$0xff]
        %v295 = vld [vmem:[%s237 + $0xcc] sm:$0xff]
        %v296 = vld [vmem:[%s237 + $0xd4] sm:$0xff]
        %v297 = vld [vmem:[%s237 + $0xdc] sm:$0xf]
        %v298 = vld [vmem:[%s1] sm:$0xf]
        %v299 = vld [vmem:[%s1 + $0x4] sm:$0xf]
        %v300 = vld [vmem:[%s1 + $0x8] sm:$0xf]
        %v301 = vld [vmem:[%s1 + $0xc] sm:$0xf]
        %v302 = vld [vmem:[%s1 + $0x10] sm:$0xf]
        %v303 = vld [vmem:[%s1 + $0x14] sm:$0xf]
        %v304 = vld [vmem:[%s1 + $0x18] sm:$0xf]
        %v305 = vld [vmem:[%s1 + $0x1c] sm:$0xf]
        %v306 = vld [vmem:[%s1 + $0x20] sm:$0xf]
        %v307 = vld [vmem:[%s1 + $0x24] sm:$0xf]
        %v308 = vld [vmem:[%s1 + $0x28] sm:$0xf]
        %v309 = vld [vmem:[%s1 + $0x2c] sm:$0xf]
        %v310 = vld [vmem:[%s1 + $0x30] sm:$0xf]
        %v311 = vld [vmem:[%s1 + $0x34] sm:$0xf]
        %v312 = vld [vmem:[%s1 + $0x38] sm:$0xf]
        %v313 = vld [vmem:[%s1 + $0x3c] sm:$0xf]
        %v314 = vld [vmem:[%s1 + $0x40] sm:$0xf]
        %v315 = vld [vmem:[%s1 + $0x44] sm:$0xf]
        %v316 = vld [vmem:[%s1 + $0x48] sm:$0xf]
        %v317 = vld [vmem:[%s1 + $0x4c] sm:$0xf]
        %v318 = vld [vmem:[%s1 + $0x50] sm:$0xf]
        %v319 = vld [vmem:[%s1 + $0x54] sm:$0xf]
        %v320 = vld [vmem:[%s1 + $0x58] sm:$0xf]
        %v321 = vld [vmem:[%s1 + $0x5c] sm:$0xf]
        %v322 = vld [vmem:[%s1 + $0x60] sm:$0xf]
        %v323 = vld [vmem:[%s1 + $0x64] sm:$0xf]
        %v324 = vld [vmem:[%s1 + $0x68] sm:$0xf]
        %v325 = vld [vmem:[%s1 + $0x6c] sm:$0xf]
        %v326 = vld [vmem:[%s1 + $0x70] sm:$0xf]
        %v327 = vld [vmem:[%s1 + $0x74] sm:$0xf]
        %v328 = vld [vmem:[%s1 + $0x78] sm:$0xf]
        %v329 = vld [vmem:[%s1 + $0x7c] sm:$0xf]
        %v330 = vld [vmem:[%s1 + $0x80] sm:$0xf]
        %v331 = vld [vmem:[%s1 + $0x84] sm:$0xf]
        %v332 = vld [vmem:[%s1 + $0x88] sm:$0xf]
        %v333 = vld [vmem:[%s1 + $0x8c] sm:$0xf]
        %v334 = vld [vmem:[%s1 + $0x90] sm:$0xf]
        %v335 = vld [vmem:[%s1 + $0x94] sm:$0xf]
        %v336 = vld [vmem:[%s1 + $0x98] sm:$0xf]
        %v337 = vld [vmem:[%s1 + $0x9c] sm:$0xf]
        %v338 = vld [vmem:[%s1 + $0xa0] sm:$0xf]
        %v339 = vld [vmem:[%s1 + $0xa4] sm:$0xf]
        %v340 = vld [vmem:[%s1 + $0xa8] sm:$0xf]
        %v341 = vld [vmem:[%s1 + $0xac] sm:$0xf]
        %v342 = vld [vmem:[%s1 + $0xb0] sm:$0xf]
        %v343 = vld [vmem:[%s1 + $0xb4] sm:$0xf]
        %v344 = vld [vmem:[%s1 + $0xb8] sm:$0xf]
        %v345 = vld [vmem:[%s1 + $0xbc] sm:$0xf]
        %v346 = vld [vmem:[%s1 + $0xc0] sm:$0xf]
        %v347 = vld [vmem:[%s1 + $0xc4] sm:$0xf]
        %v348 = vld [vmem:[%s1 + $0xc8] sm:$0xf]
        %v349 = vld [vmem:[%s1 + $0xcc] sm:$0xf]
        %v350 = vld [vmem:[%s1 + $0xd0] sm:$0xf]
        %v351 = vld [vmem:[%s1 + $0xd4] sm:$0xf]
        %v352 = vld [vmem:[%s1 + $0xd8] sm:$0xf]
        %v353 = vld [vmem:[%s1 + $0xdc] sm:$0xf]
        %v354 = vld [vmem:[%s1 + $0xe0] sm:$0xf]
        %v355 = vld [vmem:[%s1 + $0xe4] sm:$0xf]
        %v356 = vld [vmem:[%s1 + $0xe8] sm:$0xf]
        %v357 = vld [vmem:[%s1 + $0xec] sm:$0xf]
        %v358 = vld [vmem:[%s1 + $0xf0] sm:$0xf]
        %v359 = vld [vmem:[%s1 + $0xf4] sm:$0xf]
        %v360 = vld [vmem:[%s1 + $0xf8] sm:$0xf]
        %v361 = vld [vmem:[%s1 + $0xfc] sm:$0xf]
        %v362 = vld [vmem:[%s1 + $0x100] sm:$0xf]
        %v363 = vld [vmem:[%s1 + $0x104] sm:$0xf]
        %v364 = vld [vmem:[%s1 + $0x108] sm:$0xf]
        %v365 = vld [vmem:[%s1 + $0x10c] sm:$0xf]
        %v366 = vld [vmem:[%s1 + $0x110] sm:$0xf]
        %v367 = vld [vmem:[%s1 + $0x114] sm:$0xf]
        %v368 = vld [vmem:[%s1 + $0x118] sm:$0xf]
        %v369 = vld [vmem:[%s1 + $0x11c] sm:$0xf]
        %v370 = vld [vmem:[%s1 + $0x120] sm:$0xf]
        %v371 = vld [vmem:[%s1 + $0x124] sm:$0xf]
        %v372 = vld [vmem:[%s1 + $0x128] sm:$0xf]
        %v373 = vld [vmem:[%s1 + $0x12c] sm:$0xf]
        %v374 = vld [vmem:[%s1 + $0x130] sm:$0xf]
        %v375 = vld [vmem:[%s1 + $0x134] sm:$0xf]
        %v376 = vld [vmem:[%s1 + $0x138] sm:$0xf]
        %v377 = vld [vmem:[%s1 + $0x13c] sm:$0xf]
        %v378 = vld [vmem:[%s1 + $0x140] sm:$0xf]
        %v379 = vld [vmem:[%s1 + $0x144] sm:$0xf]
        %v380 = vld [vmem:[%s1 + $0x148] sm:$0xf]
        %v381 = vld [vmem:[%s1 + $0x14c] sm:$0xf]
        %v382 = vld [vmem:[%s1 + $0x150] sm:$0xf]
        %v383 = vld [vmem:[%s1 + $0x154] sm:$0xf]
        %v384 = vld [vmem:[%s1 + $0x158] sm:$0xf]
        %v385 = vld [vmem:[%s1 + $0x15c] sm:$0xf]
        %v386 = vld [vmem:[%s1 + $0x160] sm:$0xf]
        %v387 = vld [vmem:[%s1 + $0x164] sm:$0xf]
        %v388 = vld [vmem:[%s1 + $0x168] sm:$0xf]
        %v389 = vld [vmem:[%s1 + $0x16c] sm:$0xf]
        %v390 = vld [vmem:[%s1 + $0x170] sm:$0xf]
        %v391 = vld [vmem:[%s1 + $0x174] sm:$0xf]
        %v392 = vld [vmem:[%s1 + $0x178] sm:$0xf]
        %v393 = vld [vmem:[%s1 + $0x17c] sm:$0xf]
        %v394 = vld [vmem:[%s1 + $0x180] sm:$0xf]
        %v395 = vld [vmem:[%s1 + $0x184] sm:$0xf]
        %v396 = vld [vmem:[%s1 + $0x188] sm:$0xf]
        %v397 = vld [vmem:[%s1 + $0x18c] sm:$0xf]
        %v430 = vunpack.c.l.b16 %v266
        %v431 = vunpack.c.h.b16 %v266
        %v432 = vunpack.c.l.b16 %v267
        %v433 = vunpack.c.h.b16 %v267
        %v434 = vunpack.c.l.b16 %v268
        %v435 = vunpack.c.h.b16 %v268
        %v436 = vunpack.c.l.b16 %v269
        %v437 = vunpack.c.l.b16 %v270
        %v438 = vunpack.c.h.b16 %v270
        %v439 = vunpack.c.l.b16 %v271
        %v440 = vunpack.c.h.b16 %v271
        %v441 = vunpack.c.l.b16 %v272
        %v442 = vunpack.c.h.b16 %v272
        %v443 = vunpack.c.l.b16 %v273
        %v444 = vunpack.c.l.b16 %v274
        %v445 = vunpack.c.h.b16 %v274
        %v446 = vunpack.c.l.b16 %v275
        %v447 = vunpack.c.h.b16 %v275
        %v448 = vunpack.c.l.b16 %v276
        %v449 = vunpack.c.h.b16 %v276
        %v450 = vunpack.c.l.b16 %v277
        %v451 = vunpack.c.l.b16 %v278
        %v452 = vunpack.c.h.b16 %v278
        %v453 = vunpack.c.l.b16 %v279
        %v454 = vunpack.c.h.b16 %v279
        %v455 = vunpack.c.l.b16 %v280
        %v456 = vunpack.c.h.b16 %v280
        %v457 = vunpack.c.l.b16 %v281
        %v458 = vunpack.c.l.b16 %v282
        %v459 = vunpack.c.h.b16 %v282
        %v460 = vunpack.c.l.b16 %v283
        %v461 = vunpack.c.h.b16 %v283
        %v462 = vunpack.c.l.b16 %v284
        %v463 = vunpack.c.h.b16 %v284
        %v464 = vunpack.c.l.b16 %v285
        %v465 = vunpack.c.l.b16 %v286
        %v466 = vunpack.c.h.b16 %v286
        %v467 = vunpack.c.l.b16 %v287
        %v468 = vunpack.c.h.b16 %v287
        %v469 = vunpack.c.l.b16 %v288
        %v470 = vunpack.c.h.b16 %v288
        %v471 = vunpack.c.l.b16 %v289
        %v472 = vunpack.c.l.b16 %v290
        %v473 = vunpack.c.h.b16 %v290
        %v474 = vunpack.c.l.b16 %v291
        %v475 = vunpack.c.h.b16 %v291
        %v476 = vunpack.c.l.b16 %v292
        %v477 = vunpack.c.h.b16 %v292
        %v478 = vunpack.c.l.b16 %v293
        %v479 = vunpack.c.l.b16 %v294
        %v480 = vunpack.c.h.b16 %v294
        %v481 = vunpack.c.l.b16 %v295
        %v482 = vunpack.c.h.b16 %v295
        %v483 = vunpack.c.l.b16 %v296
        %v484 = vunpack.c.h.b16 %v296
        %v485 = vunpack.c.l.b16 %v297
        %v486 = vpack.c.b16 %v437, %v430
        %v487 = vpack.c.b16 %v438, %v431
        %v488 = vpack.c.b16 %v439, %v432
        %v489 = vpack.c.b16 %v440, %v433
        %v490 = vpack.c.b16 %v441, %v434
        %v491 = vpack.c.b16 %v442, %v435
        %v492 = vpack.c.b16 %v443, %v436
        %v493 = vpack.c.b16 %v451, %v444
        %v494 = vpack.c.b16 %v452, %v445
        %v495 = vpack.c.b16 %v453, %v446
        %v496 = vpack.c.b16 %v454, %v447
        %v497 = vpack.c.b16 %v455, %v448
        %v498 = vpack.c.b16 %v456, %v449
        %v499 = vpack.c.b16 %v457, %v450
        %v500 = vpack.c.b16 %v465, %v458
        %v501 = vpack.c.b16 %v466, %v459
        %v502 = vpack.c.b16 %v467, %v460
        %v503 = vpack.c.b16 %v468, %v461
        %v504 = vpack.c.b16 %v469, %v462
        %v505 = vpack.c.b16 %v470, %v463
        %v506 = vpack.c.b16 %v471, %v464
        %v507 = vpack.c.b16 %v479, %v472
        %v508 = vpack.c.b16 %v480, %v473
        %v509 = vpack.c.b16 %v481, %v474
        %v510 = vpack.c.b16 %v482, %v475
        %v511 = vpack.c.b16 %v483, %v476
        %v512 = vpack.c.b16 %v484, %v477
        %v513 = vpack.c.b16 %v485, %v478
        %v638 = vunpack.c.l.b16 %v298
        %v639 = vunpack.c.l.b16 %v299
        %v640 = vunpack.c.l.b16 %v300
        %v641 = vunpack.c.l.b16 %v301
        %v642 = vunpack.c.l.b16 %v302
        %v643 = vunpack.c.l.b16 %v303
        %v644 = vunpack.c.l.b16 %v304
        %v645 = vunpack.c.l.b16 %v305
        %v646 = vunpack.c.l.b16 %v306
        %v647 = vunpack.c.l.b16 %v307
        %v648 = vunpack.c.l.b16 %v308
        %v649 = vunpack.c.l.b16 %v309
        %v650 = vunpack.c.l.b16 %v310
        %v651 = vunpack.c.l.b16 %v311
        %v652 = vunpack.c.l.b16 %v312
        %v653 = vunpack.c.l.b16 %v313
        %v654 = vunpack.c.l.b16 %v314
        %v655 = vunpack.c.l.b16 %v315
        %v656 = vunpack.c.l.b16 %v316
        %v657 = vunpack.c.l.b16 %v317
        %v658 = vunpack.c.l.b16 %v318
        %v659 = vunpack.c.l.b16 %v319
        %v660 = vunpack.c.l.b16 %v320
        %v661 = vunpack.c.l.b16 %v321
        %v662 = vunpack.c.l.b16 %v322
        %v663 = vunpack.c.l.b16 %v323
        %v664 = vunpack.c.l.b16 %v324
        %v665 = vunpack.c.l.b16 %v325
        %v666 = vunpack.c.l.b16 %v326
        %v667 = vunpack.c.l.b16 %v327
        %v668 = vunpack.c.l.b16 %v328
        %v669 = vunpack.c.l.b16 %v329
        %v670 = vunpack.c.l.b16 %v330
        %v671 = vunpack.c.l.b16 %v331
        %v672 = vunpack.c.l.b16 %v332
        %v673 = vunpack.c.l.b16 %v333
        %v674 = vunpack.c.l.b16 %v334
        %v675 = vunpack.c.l.b16 %v335
        %v676 = vunpack.c.l.b16 %v336
        %v677 = vunpack.c.l.b16 %v337
        %v678 = vunpack.c.l.b16 %v338
        %v679 = vunpack.c.l.b16 %v339
        %v680 = vunpack.c.l.b16 %v340
        %v681 = vunpack.c.l.b16 %v341
        %v682 = vunpack.c.l.b16 %v342
        %v683 = vunpack.c.l.b16 %v343
        %v684 = vunpack.c.l.b16 %v344
        %v685 = vunpack.c.l.b16 %v345
        %v686 = vunpack.c.l.b16 %v346
        %v687 = vunpack.c.l.b16 %v347
        %v688 = vunpack.c.l.b16 %v348
        %v689 = vunpack.c.l.b16 %v349
        %v690 = vunpack.c.l.b16 %v350
        %v691 = vunpack.c.l.b16 %v351
        %v692 = vunpack.c.l.b16 %v352
        %v693 = vunpack.c.l.b16 %v353
        %v694 = vunpack.c.l.b16 %v354
        %v695 = vunpack.c.l.b16 %v355
        %v696 = vunpack.c.l.b16 %v356
        %v697 = vunpack.c.l.b16 %v357
        %v698 = vunpack.c.l.b16 %v358
        %v699 = vunpack.c.l.b16 %v359
        %v700 = vunpack.c.l.b16 %v360
        %v701 = vunpack.c.l.b16 %v361
        %v702 = vunpack.c.l.b16 %v362
        %v703 = vunpack.c.l.b16 %v363
        %v704 = vunpack.c.l.b16 %v364
        %v705 = vunpack.c.l.b16 %v365
        %v706 = vunpack.c.l.b16 %v366
        %v707 = vunpack.c.l.b16 %v367
        %v708 = vunpack.c.l.b16 %v368
        %v709 = vunpack.c.l.b16 %v369
        %v710 = vunpack.c.l.b16 %v370
        %v711 = vunpack.c.l.b16 %v371
        %v712 = vunpack.c.l.b16 %v372
        %v713 = vunpack.c.l.b16 %v373
        %v714 = vunpack.c.l.b16 %v374
        %v715 = vunpack.c.l.b16 %v375
        %v716 = vunpack.c.l.b16 %v376
        %v717 = vunpack.c.l.b16 %v377
        %v718 = vunpack.c.l.b16 %v378
        %v719 = vunpack.c.l.b16 %v379
        %v720 = vunpack.c.l.b16 %v380
        %v721 = vunpack.c.l.b16 %v381
        %v722 = vunpack.c.l.b16 %v382
        %v723 = vunpack.c.l.b16 %v383
        %v724 = vunpack.c.l.b16 %v384
        %v725 = vunpack.c.l.b16 %v385
        %v726 = vunpack.c.l.b16 %v386
        %v727 = vunpack.c.l.b16 %v387
        %v728 = vunpack.c.l.b16 %v388
        %v729 = vunpack.c.l.b16 %v389
        %v730 = vunpack.c.l.b16 %v390
        %v731 = vunpack.c.l.b16 %v391
        %v732 = vunpack.c.l.b16 %v392
        %v733 = vunpack.c.l.b16 %v393
        %v734 = vunpack.c.l.b16 %v394
        %v735 = vunpack.c.l.b16 %v395
        %v736 = vunpack.c.l.b16 %v396
        %v737 = vunpack.c.l.b16 %v397
        %v738 = vpack.c.b16 %v639, %v638
        %v739 = vpack.c.b16 %v641, %v640
        %v740 = vpack.c.b16 %v643, %v642
        %v741 = vpack.c.b16 %v645, %v644
        %v742 = vpack.c.b16 %v647, %v646
        %v743 = vpack.c.b16 %v649, %v648
        %v744 = vpack.c.b16 %v651, %v650
        %v745 = vpack.c.b16 %v653, %v652
        %v746 = vpack.c.b16 %v655, %v654
        %v747 = vpack.c.b16 %v657, %v656
        %v748 = vpack.c.b16 %v659, %v658
        %v749 = vpack.c.b16 %v661, %v660
        %v750 = vpack.c.b16 %v663, %v662
        %v751 = vpack.c.b16 %v665, %v664
        %v752 = vpack.c.b16 %v667, %v666
        %v753 = vpack.c.b16 %v669, %v668
        %v754 = vpack.c.b16 %v671, %v670
        %v755 = vpack.c.b16 %v673, %v672
        %v756 = vpack.c.b16 %v675, %v674
        %v757 = vpack.c.b16 %v677, %v676
        %v758 = vpack.c.b16 %v679, %v678
        %v759 = vpack.c.b16 %v681, %v680
        %v760 = vpack.c.b16 %v683, %v682
        %v761 = vpack.c.b16 %v685, %v684
        %v762 = vpack.c.b16 %v687, %v686
        %v763 = vpack.c.b16 %v689, %v688
        %v764 = vpack.c.b16 %v691, %v690
        %v765 = vpack.c.b16 %v693, %v692
        %v766 = vpack.c.b16 %v695, %v694
        %v767 = vpack.c.b16 %v697, %v696
        %v768 = vpack.c.b16 %v699, %v698
        %v769 = vpack.c.b16 %v701, %v700
        %v770 = vpack.c.b16 %v703, %v702
        %v771 = vpack.c.b16 %v705, %v704
        %v772 = vpack.c.b16 %v707, %v706
        %v773 = vpack.c.b16 %v709, %v708
        %v774 = vpack.c.b16 %v711, %v710
        %v775 = vpack.c.b16 %v713, %v712
        %v776 = vpack.c.b16 %v715, %v714
        %v777 = vpack.c.b16 %v717, %v716
        %v778 = vpack.c.b16 %v719, %v718
        %v779 = vpack.c.b16 %v721, %v720
        %v780 = vpack.c.b16 %v723, %v722
        %v781 = vpack.c.b16 %v725, %v724
        %v782 = vpack.c.b16 %v727, %v726
        %v783 = vpack.c.b16 %v729, %v728
        %v784 = vpack.c.b16 %v731, %v730
        %v785 = vpack.c.b16 %v733, %v732
        %v786 = vpack.c.b16 %v735, %v734
        %v787 = vpack.c.b16 %v737, %v736
        %vm838 = vcmask 261120
        %v840 = vsel %vm838, %v492, 0
        %v843 = vsel %vm838, %v499, 0
        %v846 = vsel %vm838, %v506, 0
        %v849 = vsel %vm838, %v513, 0
        %851 = vmatprep.subr.bf16.mxu0 0
        %852 = vmatpush1.bf16.msra.mxu0 %v738
        %853 = vmatprep.subr.bf16.mxu0 0
        %854 = vmatpush1.bf16.msra.mxu0 %v739
        %855 = vmatprep.subr.bf16.mxu0 0
        %856 = vmatpush1.bf16.msra.mxu0 %v740
        %857 = vmatprep.subr.bf16.mxu0 0
        %858 = vmatpush1.bf16.msra.mxu0 %v741
        %859 = vmatprep.subr.bf16.mxu0 0
        %860 = vmatpush1.bf16.msra.mxu0 %v742
        %861 = vmatprep.subr.bf16.mxu0 0
        %862 = vmatpush1.bf16.msra.mxu0 %v743
        %863 = vmatprep.subr.bf16.mxu0 0
        %864 = vmatpush1.bf16.msra.mxu0 %v744
        %865 = vmatprep.subr.bf16.mxu0 0
        %866 = vmatpush1.bf16.msra.mxu0 %v745
        %867 = vmatprep.subr.bf16.mxu0 0
        %868 = vmatpush1.bf16.msra.mxu0 %v746
        %869 = vmatprep.subr.bf16.mxu0 0
        %870 = vmatpush1.bf16.msra.mxu0 %v747
        %871 = vmatprep.subr.bf16.mxu0 0
        %872 = vmatpush1.bf16.msra.mxu0 %v748
        %873 = vmatprep.subr.bf16.mxu0 0
        %874 = vmatpush1.bf16.msra.mxu0 %v749
        %875 = vmatprep.subr.bf16.mxu0 0
        %876 = vmatpush1.bf16.msra.mxu0 %v750
        %877 = vmatprep.subr.bf16.mxu0 0
        %878 = vmatpush1.bf16.msra.mxu0 %v751
        %879 = vmatprep.subr.bf16.mxu0 0
        %880 = vmatpush1.bf16.msra.mxu0 %v752
        %881 = vmatprep.subr.bf16.mxu0 0
        %882 = vmatpush1.bf16.msra.mxu0 %v753
        %883 = vmatprep.mubr.bf16.mxu0 %v487
        %884 = vmatmul.mubr.bf16.gmra.mrb[0].mxu0 %v486
        %v885 = vpop.f32.mrb[0].mxu0
        %v886 = vadd.f32 0.0, %v885
        %v887 = vpop.f32.mrb[0].mxu0
        %v888 = vpop.f32.mrb[0].mxu0
        %v889 = vadd.f32 0.0, %v888
        %v890 = vpop.f32.mrb[0].mxu0
        %891 = vmatprep.mubr.bf16.mxu0 %v494
        %892 = vmatmul.mubr.bf16.gmra.mrb[0].mxu0 %v493
        %v893 = vpop.f32.mrb[0].mxu0
        %v894 = vadd.f32 0.0, %v893
        %v895 = vpop.f32.mrb[0].mxu0
        %v896 = vpop.f32.mrb[0].mxu0
        %v897 = vadd.f32 0.0, %v896
        %v898 = vpop.f32.mrb[0].mxu0
        %899 = vmatprep.mubr.bf16.mxu0 %v501
        %900 = vmatmul.mubr.bf16.gmra.mrb[0].mxu0 %v500
        %v901 = vpop.f32.mrb[0].mxu0
        %v902 = vadd.f32 0.0, %v901
        %v903 = vpop.f32.mrb[0].mxu0
        %v904 = vpop.f32.mrb[0].mxu0
        %v905 = vadd.f32 0.0, %v904
        %v906 = vpop.f32.mrb[0].mxu0
        %907 = vmatprep.mubr.bf16.mxu0 %v508
        %908 = vmatmul.mubr.bf16.gmra.mrb[0].mxu0 %v507
        %v909 = vpop.f32.mrb[0].mxu0
        %v910 = vadd.f32 0.0, %v909
        %v911 = vpop.f32.mrb[0].mxu0
        %v912 = vpop.f32.mrb[0].mxu0
        %v913 = vadd.f32 0.0, %v912
        %v914 = vpop.f32.mrb[0].mxu0
        %915 = vdwg.mxu0
        %916 = vmatprep.subr.bf16.mxu0 0
        %917 = vmatpush1.bf16.msra.mxu0 %v754
        %918 = vmatprep.subr.bf16.mxu0 0
        %919 = vmatpush1.bf16.msra.mxu0 %v755
        %920 = vmatprep.subr.bf16.mxu0 0
        %921 = vmatpush1.bf16.msra.mxu0 %v756
        %922 = vmatprep.subr.bf16.mxu0 0
        %923 = vmatpush1.bf16.msra.mxu0 %v757
        %924 = vmatprep.subr.bf16.mxu0 0
        %925 = vmatpush1.bf16.msra.mxu0 %v758
        %926 = vmatprep.subr.bf16.mxu0 0
        %927 = vmatpush1.bf16.msra.mxu0 %v759
        %928 = vmatprep.subr.bf16.mxu0 0
        %929 = vmatpush1.bf16.msra.mxu0 %v760
        %930 = vmatprep.subr.bf16.mxu0 0
        %931 = vmatpush1.bf16.msra.mxu0 %v761
        %932 = vmatprep.subr.bf16.mxu0 0
        %933 = vmatpush1.bf16.msra.mxu0 %v762
        %934 = vmatprep.subr.bf16.mxu0 0
        %935 = vmatpush1.bf16.msra.mxu0 %v763
        %936 = vmatprep.subr.bf16.mxu0 0
        %937 = vmatpush1.bf16.msra.mxu0 %v764
        %938 = vmatprep.subr.bf16.mxu0 0
        %939 = vmatpush1.bf16.msra.mxu0 %v765
        %940 = vmatprep.subr.bf16.mxu0 0
        %941 = vmatpush1.bf16.msra.mxu0 %v766
        %942 = vmatprep.subr.bf16.mxu0 0
        %943 = vmatpush1.bf16.msra.mxu0 %v767
        %944 = vmatprep.subr.bf16.mxu0 0
        %945 = vmatpush1.bf16.msra.mxu0 %v768
        %946 = vmatprep.subr.bf16.mxu0 0
        %947 = vmatpush1.bf16.msra.mxu0 %v769
        %948 = vmatprep.mubr.bf16.mxu0 %v489
        %949 = vmatmul.mubr.bf16.gmra.mrb[0].mxu0 %v488
        %v950 = vpop.f32.mrb[0].mxu0
        %v951 = vadd.f32 %v886, %v950
        %v952 = vpop.f32.mrb[0].mxu0
        %v953 = vpop.f32.mrb[0].mxu0
        %v954 = vadd.f32 %v889, %v953
        %v955 = vpop.f32.mrb[0].mxu0
        %956 = vmatprep.mubr.bf16.mxu0 %v496
        %957 = vmatmul.mubr.bf16.gmra.mrb[0].mxu0 %v495
        %v958 = vpop.f32.mrb[0].mxu0
        %v959 = vadd.f32 %v894, %v958
        %v960 = vpop.f32.mrb[0].mxu0
        %v961 = vpop.f32.mrb[0].mxu0
        %v962 = vadd.f32 %v897, %v961
        %v963 = vpop.f32.mrb[0].mxu0
        %964 = vmatprep.mubr.bf16.mxu0 %v503
        %965 = vmatmul.mubr.bf16.gmra.mrb[0].mxu0 %v502
        %v966 = vpop.f32.mrb[0].mxu0
        %v967 = vadd.f32 %v902, %v966
        %v968 = vpop.f32.mrb[0].mxu0
        %v969 = vpop.f32.mrb[0].mxu0
        %v970 = vadd.f32 %v905, %v969
        %v971 = vpop.f32.mrb[0].mxu0
        %972 = vmatprep.mubr.bf16.mxu0 %v510
        %973 = vmatmul.mubr.bf16.gmra.mrb[0].mxu0 %v509
        %v974 = vpop.f32.mrb[0].mxu0
        %v975 = vadd.f32 %v910, %v974
        %v976 = vpop.f32.mrb[0].mxu0
        %v977 = vpop.f32.mrb[0].mxu0
        %v978 = vadd.f32 %v913, %v977
        %v979 = vpop.f32.mrb[0].mxu0
        %980 = vdwg.mxu0
        %981 = vmatprep.subr.bf16.mxu0 0
        %982 = vmatpush1.bf16.msra.mxu0 %v770
        %983 = vmatprep.subr.bf16.mxu0 0
        %984 = vmatpush1.bf16.msra.mxu0 %v771
        %985 = vmatprep.subr.bf16.mxu0 0
        %986 = vmatpush1.bf16.msra.mxu0 %v772
        %987 = vmatprep.subr.bf16.mxu0 0
        %988 = vmatpush1.bf16.msra.mxu0 %v773
        %989 = vmatprep.subr.bf16.mxu0 0
        %990 = vmatpush1.bf16.msra.mxu0 %v774
        %991 = vmatprep.subr.bf16.mxu0 0
        %992 = vmatpush1.bf16.msra.mxu0 %v775
        %993 = vmatprep.subr.bf16.mxu0 0
        %994 = vmatpush1.bf16.msra.mxu0 %v776
        %995 = vmatprep.subr.bf16.mxu0 0
        %996 = vmatpush1.bf16.msra.mxu0 %v777
        %997 = vmatprep.subr.bf16.mxu0 0
        %998 = vmatpush1.bf16.msra.mxu0 %v778
        %999 = vmatprep.subr.bf16.mxu0 0
        %1000 = vmatpush1.bf16.msra.mxu0 %v779
        %1001 = vmatprep.subr.bf16.mxu0 0
        %1002 = vmatpush1.bf16.msra.mxu0 %v780
        %1003 = vmatprep.subr.bf16.mxu0 0
        %1004 = vmatpush1.bf16.msra.mxu0 %v781
        %1005 = vmatprep.subr.bf16.mxu0 0
        %1006 = vmatpush1.bf16.msra.mxu0 %v782
        %1007 = vmatprep.subr.bf16.mxu0 0
        %1008 = vmatpush1.bf16.msra.mxu0 %v783
        %1009 = vmatprep.subr.bf16.mxu0 0
        %1010 = vmatpush1.bf16.msra.mxu0 %v784
        %1011 = vmatprep.subr.bf16.mxu0 0
        %1012 = vmatpush1.bf16.msra.mxu0 %v785
        %1013 = vmatprep.mubr.bf16.mxu0 %v491
        %1014 = vmatmul.mubr.bf16.gmra.mrb[0].mxu0 %v490
        %v1015 = vpop.f32.mrb[0].mxu0
        %v1016 = vadd.f32 %v951, %v1015
        %v1017 = vpop.f32.mrb[0].mxu0
        %v1018 = vpop.f32.mrb[0].mxu0
        %v1019 = vadd.f32 %v954, %v1018
        %v1020 = vpop.f32.mrb[0].mxu0
        %1021 = vmatprep.mubr.bf16.mxu0 %v498
        %1022 = vmatmul.mubr.bf16.gmra.mrb[0].mxu0 %v497
        %v1023 = vpop.f32.mrb[0].mxu0
        %v1024 = vadd.f32 %v959, %v1023
        %v1025 = vpop.f32.mrb[0].mxu0
        %v1026 = vpop.f32.mrb[0].mxu0
        %v1027 = vadd.f32 %v962, %v1026
        %v1028 = vpop.f32.mrb[0].mxu0
        %1029 = vmatprep.mubr.bf16.mxu0 %v505
        %1030 = vmatmul.mubr.bf16.gmra.mrb[0].mxu0 %v504
        %v1031 = vpop.f32.mrb[0].mxu0
        %v1032 = vadd.f32 %v967, %v1031
        %v1033 = vpop.f32.mrb[0].mxu0
        %v1034 = vpop.f32.mrb[0].mxu0
        %v1035 = vadd.f32 %v970, %v1034
        %v1036 = vpop.f32.mrb[0].mxu0
        %1037 = vmatprep.mubr.bf16.mxu0 %v512
        %1038 = vmatmul.mubr.bf16.gmra.mrb[0].mxu0 %v511
        %v1039 = vpop.f32.mrb[0].mxu0
        %v1040 = vadd.f32 %v975, %v1039
        %v1041 = vpop.f32.mrb[0].mxu0
        %v1042 = vpop.f32.mrb[0].mxu0
        %v1043 = vadd.f32 %v978, %v1042
        %v1044 = vpop.f32.mrb[0].mxu0
        %1045 = vdwg.mxu0
        %1046 = vmatprep.subr.bf16.mxu0 0
        %1047 = vmatpush1.bf16.msra.mxu0 %v786
        %1048 = vmatprep.subr.bf16.mxu0 0
        %1049 = vmatpush1.bf16.msra.mxu0 %v787
        %1050 = vmatprep.subr.bf16.mxu0 0
        %1051 = vmatpush1.bf16.msra.mxu0 0
        %1052 = vmatprep.subr.bf16.mxu0 0
        %1053 = vmatpush1.bf16.msra.mxu0 0
        %1054 = vmatprep.subr.bf16.mxu0 0
        %1055 = vmatpush1.bf16.msra.mxu0 0
        %1056 = vmatprep.subr.bf16.mxu0 0
        %1057 = vmatpush1.bf16.msra.mxu0 0
        %1058 = vmatprep.subr.bf16.mxu0 0
        %1059 = vmatpush1.bf16.msra.mxu0 0
        %1060 = vmatprep.subr.bf16.mxu0 0
        %1061 = vmatpush1.bf16.msra.mxu0 0
        %1062 = vmatprep.subr.bf16.mxu0 0
        %1063 = vmatpush1.bf16.msra.mxu0 0
        %1064 = vmatprep.subr.bf16.mxu0 0
        %1065 = vmatpush1.bf16.msra.mxu0 0
        %1066 = vmatprep.subr.bf16.mxu0 0
        %1067 = vmatpush1.bf16.msra.mxu0 0
        %1068 = vmatprep.subr.bf16.mxu0 0
        %1069 = vmatpush1.bf16.msra.mxu0 0
        %1070 = vmatprep.subr.bf16.mxu0 0
        %1071 = vmatpush1.bf16.msra.mxu0 0
        %1072 = vmatprep.subr.bf16.mxu0 0
        %1073 = vmatpush1.bf16.msra.mxu0 0
        %1074 = vmatprep.subr.bf16.mxu0 0
        %1075 = vmatpush1.bf16.msra.mxu0 0
        %1076 = vmatprep.subr.bf16.mxu0 0
        %1077 = vmatpush1.bf16.msra.mxu0 0
        %1078 = vmatprep.mubr.bf16.mxu0 0
        %1079 = vmatmul.mubr.bf16.gmra.mrb[0].mxu0 %v840
        %v1080 = vpop.f32.mrb[0].mxu0
        %v1081 = vadd.f32 %v1016, %v1080
        %v1082 = vpop.f32.mrb[0].mxu0
        %v1083 = vpop.f32.mrb[0].mxu0
        %v1084 = vadd.f32 %v1019, %v1083
        %v1085 = vpop.f32.mrb[0].mxu0
        %1086 = vmatprep.mubr.bf16.mxu0 0
        %1087 = vmatmul.mubr.bf16.gmra.mrb[0].mxu0 %v843
        %v1088 = vpop.f32.mrb[0].mxu0
        %v1089 = vadd.f32 %v1024, %v1088
        %v1090 = vpop.f32.mrb[0].mxu0
        %v1091 = vpop.f32.mrb[0].mxu0
        %v1092 = vadd.f32 %v1027, %v1091
        %v1093 = vpop.f32.mrb[0].mxu0
        %1094 = vmatprep.mubr.bf16.mxu0 0
        %1095 = vmatmul.mubr.bf16.gmra.mrb[0].mxu0 %v846
        %v1096 = vpop.f32.mrb[0].mxu0
        %v1097 = vadd.f32 %v1032, %v1096
        %v1098 = vpop.f32.mrb[0].mxu0
        %v1099 = vpop.f32.mrb[0].mxu0
        %v1100 = vadd.f32 %v1035, %v1099
        %v1101 = vpop.f32.mrb[0].mxu0
        %1102 = vmatprep.mubr.bf16.mxu0 0
        %1103 = vmatmul.mubr.bf16.gmra.mrb[0].mxu0 %v849
        %v1104 = vpop.f32.mrb[0].mxu0
        %v1105 = vadd.f32 %v1040, %v1104
        %v1106 = vpop.f32.mrb[0].mxu0
        %v1107 = vpop.f32.mrb[0].mxu0
        %v1108 = vadd.f32 %v1043, %v1107
        %v1109 = vpop.f32.mrb[0].mxu0
        %1110 = vdwg.mxu0
        %v1111 = vmax.f32 %v1081, %v1089
        %v1112 = vmax.f32 %v1084, %v1092
        %v1113 = vmax.f32 %v1097, %v1105
        %v1114 = vmax.f32 %v1100, %v1108
        %v1115 = vmax.f32 %v1111, %v1113
        %v1116 = vmax.f32 %v1112, %v1114
        %v1117 = vld [vmem:[%s2] sm:$0x1]
        %v1119 = vlaneseq
        %v1120 = vshrl.u32 %v1119, 7
        %v1121 = vsub.s32 0, %v1120
        %v1122 = vrot.slane %v1117, %v1121
        %v1124 = vadd.f32 %v1115, %v1122
        %v1125 = vadd.f32 %v1116, %v1122
        %v1126 = vpack.c.bf16 %v1125, %v1124
        %v1128 = vunpack.c.l.b16 %v1126
        %v1129 = vunpack.c.h.b16 %v1126
        %v1130 = vpack.c.b16 %v1128, %v1128
        %v1131 = vpack.c.b16 %v1129, %v1129
        %vm1134 = vcmask 519168
        %1135 = vst.msk [vmem:[%s263] sm:$0xf] %vm1134, %v1130
        %1136 = vst.msk [vmem:[%s263 + $0x4] sm:$0xf] %vm1134, %v1131
        %s1137 = smul.u32 2, %s14
        %p1138 = scmp.lt.s32.totalorder %s1137, 3
        %s1139 = scalar_select %p1138, %s1137, 3
        %s1140 = smul.addr %s1139, 4
        %s1141 = scalar_lea.vmem %s3, %s1140
        // Predicated region
        $region59: #{model_forward.6} parent=53 // pred_check
          %p1142 = pneg %p100
        $region60: #{model_forward.6} parent=53 // pred_check_branch
          %1144 = sbr.rel (%p1142) target = $region62
        $region61: #{model_forward.6} parent=53 // pred_region
          %s1145 = smul.u32 2, %s14
        $region62: #{model_forward.6} parent=53 // pred_fallthru
          _
      $region54: #{model_forward.6} parent=5 // pred_fallthru
        _
      %p1146 = scmp.le.s32.totalorder 2, %s9
      // Predicated region
      $region63: #{model_forward.6} parent=5 // pred_check
        %p1147 = pneg %p1146
      $region64: #{model_forward.6} parent=5 // pred_check_branch
        %1149 = sbr.rel (%p1147) target = $region66
      $region65: #{model_forward.6} parent=5 // pred_region
        %s1150 = ssub.s32 %s9, 2
        // Predicated region
        $region67: #{model_forward.6} parent=65 // pred_check
          %p1151 = pneg %p106
        $region68: #{model_forward.6} parent=65 // pred_check_branch
          %1153 = sbr.rel (%p1151) target = $region70
        $region69: #{model_forward.6} parent=65 // pred_region
          %s1154 = smul.u32 2, %s15
          %p1155 = scmp.lt.s32.totalorder %s1154, 3
          %s1156 = scalar_select %p1155, %s1154, 3
          %s1157 = smul.addr %s1156, 4
          %s1158 = scalar_lea.vmem %s3, %s1157
        $region70: #{model_forward.6} parent=65 // pred_fallthru
          _
      $region66: #{model_forward.6} parent=5 // pred_fallthru
        _
    $region6: #{model_forward.6} parent=1 // loop_footer
      %s13 = sadd.s32 1, %s9
    $region7: #{model_forward.6} parent=1 // loop_footer_branch
      %8 = sbr.rel target = $region3
    $region8: #{model_forward.6} parent=1 // loop_exit
      _

// kernel: model_forward.7
$region0: #{model_forward.7}
  #allocation0 [shape = 'u32[]', space=smem, size = 0x4, offset = 0x4, fixed_abs, tag = 'smem constant byte address 0x4 - core index']
  #allocation1 [shape = 'u32[144,128]{1,0:T(1,128)}', space=vmem, size = 0x12000, scoped, tag = 'internal scratch']
  %s0 = inlined_call_operand.vmem [shape: bf16[16,1024], index: 0, kind: input, shape index: {}]
  %s1 = inlined_call_operand.vmem [shape: bf16[1024,64], index: 1, kind: input, shape index: {}]
  %s2 = inlined_call_operand.vmem [shape: f32[1,64], index: 2, kind: input, shape index: {}]
  %s3 = inlined_call_operand.vmem [shape: bf16[64,10], index: 3, kind: input, shape index: {}]
  %s4 = inlined_call_operand.vmem [shape: f32[1,10], index: 4, kind: input, shape index: {}]
  %s5 = inlined_call_operand.vmem [shape: f32[16,10], index: 5, kind: output, shape index: {}]
  %s6 = sld [smem:[#allocation0]]
  $region30: #{model_forward.7} parent=0
    _
  %s8 = ssub.s32 1, %s6
  %s9 = scalar_select 0, %s8, %s6
  // Predicated region
  $region2: #{model_forward.7} parent=0 // pred_check
    _
  $region3: #{model_forward.7} parent=0 // pred_check_branch
    %11 = sbr.rel (0) target = $region5
  $region4: #{model_forward.7} parent=0 // pred_region
    _
  $region5: #{model_forward.7} parent=0 // pred_fallthru
    _
  // Predicated region
  $region6: #{model_forward.7} parent=0 // pred_check
    _
  $region7: #{model_forward.7} parent=0 // pred_check_branch
    %13 = sbr.rel (0) target = $region9
  $region8: #{model_forward.7} parent=0 // pred_region
    _
  $region9: #{model_forward.7} parent=0 // pred_fallthru
    _
  // Predicated region
  $region10: #{model_forward.7} parent=0 // pred_check
    _
  $region11: #{model_forward.7} parent=0 // pred_check_branch
    %15 = sbr.rel (0) target = $region13
  $region12: #{model_forward.7} parent=0 // pred_region
    _
  $region13: #{model_forward.7} parent=0 // pred_fallthru
    _
  // Predicated region
  $region14: #{model_forward.7} parent=0 // pred_check
    _
  $region15: #{model_forward.7} parent=0 // pred_check_branch
    %17 = sbr.rel (0) target = $region17
  $region16: #{model_forward.7} parent=0 // pred_region
    _
  $region17: #{model_forward.7} parent=0 // pred_fallthru
    _
  // Predicated region
  $region18: #{model_forward.7} parent=0 // pred_check
    _
  $region19: #{model_forward.7} parent=0 // pred_check_branch
    %19 = sbr.rel (0) target = $region21
  $region20: #{model_forward.7} parent=0 // pred_region
    _
  $region21: #{model_forward.7} parent=0 // pred_fallthru
    _
  %v21 = vld [vmem:[%s0] sm:$0xff]
  %v22 = vld [vmem:[%s0 + $0x8] sm:$0xff]
  %v23 = vld [vmem:[%s0 + $0x10] sm:$0xff]
  %v24 = vld [vmem:[%s0 + $0x18] sm:$0xff]
  %v25 = vld [vmem:[%s0 + $0x20] sm:$0xff]
  %v26 = vld [vmem:[%s0 + $0x28] sm:$0xff]
  %v27 = vld [vmem:[%s0 + $0x30] sm:$0xff]
  %v28 = vld [vmem:[%s0 + $0x38] sm:$0xff]
  %v29 = vld [vmem:[%s1] sm:$0xf]
  %v30 = vld [vmem:[%s1 + $0x4] sm:$0xf]
  %v31 = vld [vmem:[%s1 + $0x8] sm:$0xf]
  %v32 = vld [vmem:[%s1 + $0xc] sm:$0xf]
  %v33 = vld [vmem:[%s1 + $0x10] sm:$0xf]
  %v34 = vld [vmem:[%s1 + $0x14] sm:$0xf]
  %v35 = vld [vmem:[%s1 + $0x18] sm:$0xf]
  %v36 = vld [vmem:[%s1 + $0x1c] sm:$0xf]
  %v37 = vld [vmem:[%s1 + $0x20] sm:$0xf]
  %v38 = vld [vmem:[%s1 + $0x24] sm:$0xf]
  %v39 = vld [vmem:[%s1 + $0x28] sm:$0xf]
  %v40 = vld [vmem:[%s1 + $0x2c] sm:$0xf]
  %v41 = vld [vmem:[%s1 + $0x30] sm:$0xf]
  %v42 = vld [vmem:[%s1 + $0x34] sm:$0xf]
  %v43 = vld [vmem:[%s1 + $0x38] sm:$0xf]
  %v44 = vld [vmem:[%s1 + $0x3c] sm:$0xf]
  %v45 = vld [vmem:[%s1 + $0x40] sm:$0xf]
  %v46 = vld [vmem:[%s1 + $0x44] sm:$0xf]
  %v47 = vld [vmem:[%s1 + $0x48] sm:$0xf]
  %v48 = vld [vmem:[%s1 + $0x4c] sm:$0xf]
  %v49 = vld [vmem:[%s1 + $0x50] sm:$0xf]
  %v50 = vld [vmem:[%s1 + $0x54] sm:$0xf]
  %v51 = vld [vmem:[%s1 + $0x58] sm:$0xf]
  %v52 = vld [vmem:[%s1 + $0x5c] sm:$0xf]
  %v53 = vld [vmem:[%s1 + $0x60] sm:$0xf]
  %v54 = vld [vmem:[%s1 + $0x64] sm:$0xf]
  %v55 = vld [vmem:[%s1 + $0x68] sm:$0xf]
  %v56 = vld [vmem:[%s1 + $0x6c] sm:$0xf]
  %v57 = vld [vmem:[%s1 + $0x70] sm:$0xf]
  %v58 = vld [vmem:[%s1 + $0x74] sm:$0xf]
  %v59 = vld [vmem:[%s1 + $0x78] sm:$0xf]
  %v60 = vld [vmem:[%s1 + $0x7c] sm:$0xf]
  %v61 = vld [vmem:[%s1 + $0x80] sm:$0xf]
  %v62 = vld [vmem:[%s1 + $0x84] sm:$0xf]
  %v63 = vld [vmem:[%s1 + $0x88] sm:$0xf]
  %v64 = vld [vmem:[%s1 + $0x8c] sm:$0xf]
  %v65 = vld [vmem:[%s1 + $0x90] sm:$0xf]
  %v66 = vld [vmem:[%s1 + $0x94] sm:$0xf]
  %v67 = vld [vmem:[%s1 + $0x98] sm:$0xf]
  %v68 = vld [vmem:[%s1 + $0x9c] sm:$0xf]
  %v69 = vld [vmem:[%s1 + $0xa0] sm:$0xf]
  %v70 = vld [vmem:[%s1 + $0xa4] sm:$0xf]
  %v71 = vld [vmem:[%s1 + $0xa8] sm:$0xf]
  %v72 = vld [vmem:[%s1 + $0xac] sm:$0xf]
  %v73 = vld [vmem:[%s1 + $0xb0] sm:$0xf]
  %v74 = vld [vmem:[%s1 + $0xb4] sm:$0xf]
  %v75 = vld [vmem:[%s1 + $0xb8] sm:$0xf]
  %v76 = vld [vmem:[%s1 + $0xbc] sm:$0xf]
  %v77 = vld [vmem:[%s1 + $0xc0] sm:$0xf]
  %v78 = vld [vmem:[%s1 + $0xc4] sm:$0xf]
  %v79 = vld [vmem:[%s1 + $0xc8] sm:$0xf]
  %v80 = vld [vmem:[%s1 + $0xcc] sm:$0xf]
  %v81 = vld [vmem:[%s1 + $0xd0] sm:$0xf]
  %v82 = vld [vmem:[%s1 + $0xd4] sm:$0xf]
  %v83 = vld [vmem:[%s1 + $0xd8] sm:$0xf]
  %v84 = vld [vmem:[%s1 + $0xdc] sm:$0xf]
  %v85 = vld [vmem:[%s1 + $0xe0] sm:$0xf]
  %v86 = vld [vmem:[%s1 + $0xe4] sm:$0xf]
  %v87 = vld [vmem:[%s1 + $0xe8] sm:$0xf]
  %v88 = vld [vmem:[%s1 + $0xec] sm:$0xf]
  %v89 = vld [vmem:[%s1 + $0xf0] sm:$0xf]
  %v90 = vld [vmem:[%s1 + $0xf4] sm:$0xf]
  %v91 = vld [vmem:[%s1 + $0xf8] sm:$0xf]
  %v92 = vld [vmem:[%s1 + $0xfc] sm:$0xf]
  %v93 = vld [vmem:[%s1 + $0x100] sm:$0xf]
  %v94 = vld [vmem:[%s1 + $0x104] sm:$0xf]
  %v95 = vld [vmem:[%s1 + $0x108] sm:$0xf]
  %v96 = vld [vmem:[%s1 + $0x10c] sm:$0xf]
  %v97 = vld [vmem:[%s1 + $0x110] sm:$0xf]
  %v98 = vld [vmem:[%s1 + $0x114] sm:$0xf]
  %v99 = vld [vmem:[%s1 + $0x118] sm:$0xf]
  %v100 = vld [vmem:[%s1 + $0x11c] sm:$0xf]
  %v101 = vld [vmem:[%s1 + $0x120] sm:$0xf]
  %v102 = vld [vmem:[%s1 + $0x124] sm:$0xf]
  %v103 = vld [vmem:[%s1 + $0x128] sm:$0xf]
  %v104 = vld [vmem:[%s1 + $0x12c] sm:$0xf]
  %v105 = vld [vmem:[%s1 + $0x130] sm:$0xf]
  %v106 = vld [vmem:[%s1 + $0x134] sm:$0xf]
  %v107 = vld [vmem:[%s1 + $0x138] sm:$0xf]
  %v108 = vld [vmem:[%s1 + $0x13c] sm:$0xf]
  %v109 = vld [vmem:[%s1 + $0x140] sm:$0xf]
  %v110 = vld [vmem:[%s1 + $0x144] sm:$0xf]
  %v111 = vld [vmem:[%s1 + $0x148] sm:$0xf]
  %v112 = vld [vmem:[%s1 + $0x14c] sm:$0xf]
  %v113 = vld [vmem:[%s1 + $0x150] sm:$0xf]
  %v114 = vld [vmem:[%s1 + $0x154] sm:$0xf]
  %v115 = vld [vmem:[%s1 + $0x158] sm:$0xf]
  %v116 = vld [vmem:[%s1 + $0x15c] sm:$0xf]
  %v117 = vld [vmem:[%s1 + $0x160] sm:$0xf]
  %v118 = vld [vmem:[%s1 + $0x164] sm:$0xf]
  %v119 = vld [vmem:[%s1 + $0x168] sm:$0xf]
  %v120 = vld [vmem:[%s1 + $0x16c] sm:$0xf]
  %v121 = vld [vmem:[%s1 + $0x170] sm:$0xf]
  %v122 = vld [vmem:[%s1 + $0x174] sm:$0xf]
  %v123 = vld [vmem:[%s1 + $0x178] sm:$0xf]
  %v124 = vld [vmem:[%s1 + $0x17c] sm:$0xf]
  %v125 = vld [vmem:[%s1 + $0x180] sm:$0xf]
  %v126 = vld [vmem:[%s1 + $0x184] sm:$0xf]
  %v127 = vld [vmem:[%s1 + $0x188] sm:$0xf]
  %v128 = vld [vmem:[%s1 + $0x18c] sm:$0xf]
  %v129 = vld [vmem:[%s1 + $0x190] sm:$0xf]
  %v130 = vld [vmem:[%s1 + $0x194] sm:$0xf]
  %v131 = vld [vmem:[%s1 + $0x198] sm:$0xf]
  %v132 = vld [vmem:[%s1 + $0x19c] sm:$0xf]
  %v133 = vld [vmem:[%s1 + $0x1a0] sm:$0xf]
  %v134 = vld [vmem:[%s1 + $0x1a4] sm:$0xf]
  %v135 = vld [vmem:[%s1 + $0x1a8] sm:$0xf]
  %v136 = vld [vmem:[%s1 + $0x1ac] sm:$0xf]
  %v137 = vld [vmem:[%s1 + $0x1b0] sm:$0xf]
  %v138 = vld [vmem:[%s1 + $0x1b4] sm:$0xf]
  %v139 = vld [vmem:[%s1 + $0x1b8] sm:$0xf]
  %v140 = vld [vmem:[%s1 + $0x1bc] sm:$0xf]
  %v141 = vld [vmem:[%s1 + $0x1c0] sm:$0xf]
  %v142 = vld [vmem:[%s1 + $0x1c4] sm:$0xf]
  %v143 = vld [vmem:[%s1 + $0x1c8] sm:$0xf]
  %v144 = vld [vmem:[%s1 + $0x1cc] sm:$0xf]
  %v145 = vld [vmem:[%s1 + $0x1d0] sm:$0xf]
  %v146 = vld [vmem:[%s1 + $0x1d4] sm:$0xf]
  %v147 = vld [vmem:[%s1 + $0x1d8] sm:$0xf]
  %v148 = vld [vmem:[%s1 + $0x1dc] sm:$0xf]
  %v149 = vld [vmem:[%s1 + $0x1e0] sm:$0xf]
  %v150 = vld [vmem:[%s1 + $0x1e4] sm:$0xf]
  %v151 = vld [vmem:[%s1 + $0x1e8] sm:$0xf]
  %v152 = vld [vmem:[%s1 + $0x1ec] sm:$0xf]
  %v153 = vld [vmem:[%s1 + $0x1f0] sm:$0xf]
  %v154 = vld [vmem:[%s1 + $0x1f4] sm:$0xf]
  %v155 = vld [vmem:[%s1 + $0x1f8] sm:$0xf]
  %v156 = vld [vmem:[%s1 + $0x1fc] sm:$0xf]
  %v157 = vld [vmem:[%s2] sm:$0x1]
  %v159 = vlaneseq
  %v160 = vshrl.u32 %v159, 7
  %v161 = vsub.s32 0, %v160
  %v162 = vrot.slane %v157, %v161
  %v172 = vunpack.c.l.b16 %v21
  %v173 = vunpack.c.h.b16 %v21
  %v174 = vunpack.c.l.b16 %v22
  %v175 = vunpack.c.h.b16 %v22
  %v176 = vunpack.c.l.b16 %v23
  %v177 = vunpack.c.h.b16 %v23
  %v178 = vunpack.c.l.b16 %v24
  %v179 = vunpack.c.h.b16 %v24
  %v180 = vunpack.c.l.b16 %v25
  %v181 = vunpack.c.h.b16 %v25
  %v182 = vunpack.c.l.b16 %v26
  %v183 = vunpack.c.h.b16 %v26
  %v184 = vunpack.c.l.b16 %v27
  %v185 = vunpack.c.h.b16 %v27
  %v186 = vunpack.c.l.b16 %v28
  %v187 = vunpack.c.h.b16 %v28
  %v188 = vpack.c.b16 %v180, %v172
  %v189 = vpack.c.b16 %v181, %v173
  %v190 = vpack.c.b16 %v182, %v174
  %v191 = vpack.c.b16 %v183, %v175
  %v192 = vpack.c.b16 %v184, %v176
  %v193 = vpack.c.b16 %v185, %v177
  %v194 = vpack.c.b16 %v186, %v178
  %v195 = vpack.c.b16 %v187, %v179
  %v332 = vunpack.c.l.b16 %v29
  %v333 = vunpack.c.l.b16 %v30
  %v334 = vunpack.c.l.b16 %v31
  %v335 = vunpack.c.l.b16 %v32
  %v336 = vunpack.c.l.b16 %v33
  %v337 = vunpack.c.l.b16 %v34
  %v338 = vunpack.c.l.b16 %v35
  %v339 = vunpack.c.l.b16 %v36
  %v340 = vunpack.c.l.b16 %v37
  %v341 = vunpack.c.l.b16 %v38
  %v342 = vunpack.c.l.b16 %v39
  %v343 = vunpack.c.l.b16 %v40
  %v344 = vunpack.c.l.b16 %v41
  %v345 = vunpack.c.l.b16 %v42
  %v346 = vunpack.c.l.b16 %v43
  %v347 = vunpack.c.l.b16 %v44
  %v348 = vunpack.c.l.b16 %v45
  %v349 = vunpack.c.l.b16 %v46
  %v350 = vunpack.c.l.b16 %v47
  %v351 = vunpack.c.l.b16 %v48
  %v352 = vunpack.c.l.b16 %v49
  %v353 = vunpack.c.l.b16 %v50
  %v354 = vunpack.c.l.b16 %v51
  %v355 = vunpack.c.l.b16 %v52
  %v356 = vunpack.c.l.b16 %v53
  %v357 = vunpack.c.l.b16 %v54
  %v358 = vunpack.c.l.b16 %v55
  %v359 = vunpack.c.l.b16 %v56
  %v360 = vunpack.c.l.b16 %v57
  %v361 = vunpack.c.l.b16 %v58
  %v362 = vunpack.c.l.b16 %v59
  %v363 = vunpack.c.l.b16 %v60
  %v364 = vunpack.c.l.b16 %v61
  %v365 = vunpack.c.l.b16 %v62
  %v366 = vunpack.c.l.b16 %v63
  %v367 = vunpack.c.l.b16 %v64
  %v368 = vunpack.c.l.b16 %v65
  %v369 = vunpack.c.l.b16 %v66
  %v370 = vunpack.c.l.b16 %v67
  %v371 = vunpack.c.l.b16 %v68
  %v372 = vunpack.c.l.b16 %v69
  %v373 = vunpack.c.l.b16 %v70
  %v374 = vunpack.c.l.b16 %v71
  %v375 = vunpack.c.l.b16 %v72
  %v376 = vunpack.c.l.b16 %v73
  %v377 = vunpack.c.l.b16 %v74
  %v378 = vunpack.c.l.b16 %v75
  %v379 = vunpack.c.l.b16 %v76
  %v380 = vunpack.c.l.b16 %v77
  %v381 = vunpack.c.l.b16 %v78
  %v382 = vunpack.c.l.b16 %v79
  %v383 = vunpack.c.l.b16 %v80
  %v384 = vunpack.c.l.b16 %v81
  %v385 = vunpack.c.l.b16 %v82
  %v386 = vunpack.c.l.b16 %v83
  %v387 = vunpack.c.l.b16 %v84
  %v388 = vunpack.c.l.b16 %v85
  %v389 = vunpack.c.l.b16 %v86
  %v390 = vunpack.c.l.b16 %v87
  %v391 = vunpack.c.l.b16 %v88
  %v392 = vunpack.c.l.b16 %v89
  %v393 = vunpack.c.l.b16 %v90
  %v394 = vunpack.c.l.b16 %v91
  %v395 = vunpack.c.l.b16 %v92
  %v396 = vunpack.c.l.b16 %v93
  %v397 = vunpack.c.l.b16 %v94
  %v398 = vunpack.c.l.b16 %v95
  %v399 = vunpack.c.l.b16 %v96
  %v400 = vunpack.c.l.b16 %v97
  %v401 = vunpack.c.l.b16 %v98
  %v402 = vunpack.c.l.b16 %v99
  %v403 = vunpack.c.l.b16 %v100
  %v404 = vunpack.c.l.b16 %v101
  %v405 = vunpack.c.l.b16 %v102
  %v406 = vunpack.c.l.b16 %v103
  %v407 = vunpack.c.l.b16 %v104
  %v408 = vunpack.c.l.b16 %v105
  %v409 = vunpack.c.l.b16 %v106
  %v410 = vunpack.c.l.b16 %v107
  %v411 = vunpack.c.l.b16 %v108
  %v412 = vunpack.c.l.b16 %v109
  %v413 = vunpack.c.l.b16 %v110
  %v414 = vunpack.c.l.b16 %v111
  %v415 = vunpack.c.l.b16 %v112
  %v416 = vunpack.c.l.b16 %v113
  %v417 = vunpack.c.l.b16 %v114
  %v418 = vunpack.c.l.b16 %v115
  %v419 = vunpack.c.l.b16 %v116
  %v420 = vunpack.c.l.b16 %v117
  %v421 = vunpack.c.l.b16 %v118
  %v422 = vunpack.c.l.b16 %v119
  %v423 = vunpack.c.l.b16 %v120
  %v424 = vunpack.c.l.b16 %v121
  %v425 = vunpack.c.l.b16 %v122
  %v426 = vunpack.c.l.b16 %v123
  %v427 = vunpack.c.l.b16 %v124
  %v428 = vunpack.c.l.b16 %v125
  %v429 = vunpack.c.l.b16 %v126
  %v430 = vunpack.c.l.b16 %v127
  %v431 = vunpack.c.l.b16 %v128
  %v432 = vunpack.c.l.b16 %v129
  %v433 = vunpack.c.l.b16 %v130
  %v434 = vunpack.c.l.b16 %v131
  %v435 = vunpack.c.l.b16 %v132
  %v436 = vunpack.c.l.b16 %v133
  %v437 = vunpack.c.l.b16 %v134
  %v438 = vunpack.c.l.b16 %v135
  %v439 = vunpack.c.l.b16 %v136
  %v440 = vunpack.c.l.b16 %v137
  %v441 = vunpack.c.l.b16 %v138
  %v442 = vunpack.c.l.b16 %v139
  %v443 = vunpack.c.l.b16 %v140
  %v444 = vunpack.c.l.b16 %v141
  %v445 = vunpack.c.l.b16 %v142
  %v446 = vunpack.c.l.b16 %v143
  %v447 = vunpack.c.l.b16 %v144
  %v448 = vunpack.c.l.b16 %v145
  %v449 = vunpack.c.l.b16 %v146
  %v450 = vunpack.c.l.b16 %v147
  %v451 = vunpack.c.l.b16 %v148
  %v452 = vunpack.c.l.b16 %v149
  %v453 = vunpack.c.l.b16 %v150
  %v454 = vunpack.c.l.b16 %v151
  %v455 = vunpack.c.l.b16 %v152
  %v456 = vunpack.c.l.b16 %v153
  %v457 = vunpack.c.l.b16 %v154
  %v458 = vunpack.c.l.b16 %v155
  %v459 = vunpack.c.l.b16 %v156
  %v460 = vpack.c.b16 %v333, %v332
  %v461 = vpack.c.b16 %v335, %v334
  %v462 = vpack.c.b16 %v337, %v336
  %v463 = vpack.c.b16 %v339, %v338
  %v464 = vpack.c.b16 %v341, %v340
  %v465 = vpack.c.b16 %v343, %v342
  %v466 = vpack.c.b16 %v345, %v344
  %v467 = vpack.c.b16 %v347, %v346
  %v468 = vpack.c.b16 %v349, %v348
  %v469 = vpack.c.b16 %v351, %v350
  %v470 = vpack.c.b16 %v353, %v352
  %v471 = vpack.c.b16 %v355, %v354
  %v472 = vpack.c.b16 %v357, %v356
  %v473 = vpack.c.b16 %v359, %v358
  %v474 = vpack.c.b16 %v361, %v360
  %v475 = vpack.c.b16 %v363, %v362
  %v476 = vpack.c.b16 %v365, %v364
  %v477 = vpack.c.b16 %v367, %v366
  %v478 = vpack.c.b16 %v369, %v368
  %v479 = vpack.c.b16 %v371, %v370
  %v480 = vpack.c.b16 %v373, %v372
  %v481 = vpack.c.b16 %v375, %v374
  %v482 = vpack.c.b16 %v377, %v376
  %v483 = vpack.c.b16 %v379, %v378
  %v484 = vpack.c.b16 %v381, %v380
  %v485 = vpack.c.b16 %v383, %v382
  %v486 = vpack.c.b16 %v385, %v384
  %v487 = vpack.c.b16 %v387, %v386
  %v488 = vpack.c.b16 %v389, %v388
  %v489 = vpack.c.b16 %v391, %v390
  %v490 = vpack.c.b16 %v393, %v392
  %v491 = vpack.c.b16 %v395, %v394
  %v492 = vpack.c.b16 %v397, %v396
  %v493 = vpack.c.b16 %v399, %v398
  %v494 = vpack.c.b16 %v401, %v400
  %v495 = vpack.c.b16 %v403, %v402
  %v496 = vpack.c.b16 %v405, %v404
  %v497 = vpack.c.b16 %v407, %v406
  %v498 = vpack.c.b16 %v409, %v408
  %v499 = vpack.c.b16 %v411, %v410
  %v500 = vpack.c.b16 %v413, %v412
  %v501 = vpack.c.b16 %v415, %v414
  %v502 = vpack.c.b16 %v417, %v416
  %v503 = vpack.c.b16 %v419, %v418
  %v504 = vpack.c.b16 %v421, %v420
  %v505 = vpack.c.b16 %v423, %v422
  %v506 = vpack.c.b16 %v425, %v424
  %v507 = vpack.c.b16 %v427, %v426
  %v508 = vpack.c.b16 %v429, %v428
  %v509 = vpack.c.b16 %v431, %v430
  %v510 = vpack.c.b16 %v433, %v432
  %v511 = vpack.c.b16 %v435, %v434
  %v512 = vpack.c.b16 %v437, %v436
  %v513 = vpack.c.b16 %v439, %v438
  %v514 = vpack.c.b16 %v441, %v440
  %v515 = vpack.c.b16 %v443, %v442
  %v516 = vpack.c.b16 %v445, %v444
  %v517 = vpack.c.b16 %v447, %v446
  %v518 = vpack.c.b16 %v449, %v448
  %v519 = vpack.c.b16 %v451, %v450
  %v520 = vpack.c.b16 %v453, %v452
  %v521 = vpack.c.b16 %v455, %v454
  %v522 = vpack.c.b16 %v457, %v456
  %v523 = vpack.c.b16 %v459, %v458
  %588 = vmatprep.subr.bf16.mxu0 0
  %589 = vmatpush1.bf16.msra.mxu0 %v460
  %590 = vmatprep.subr.bf16.mxu0 0
  %591 = vmatpush1.bf16.msra.mxu0 %v461
  %592 = vmatprep.subr.bf16.mxu0 0
  %593 = vmatpush1.bf16.msra.mxu0 %v462
  %594 = vmatprep.subr.bf16.mxu0 0
  %595 = vmatpush1.bf16.msra.mxu0 %v463
  %596 = vmatprep.subr.bf16.mxu0 0
  %597 = vmatpush1.bf16.msra.mxu0 %v464
  %598 = vmatprep.subr.bf16.mxu0 0
  %599 = vmatpush1.bf16.msra.mxu0 %v465
  %600 = vmatprep.subr.bf16.mxu0 0
  %601 = vmatpush1.bf16.msra.mxu0 %v466
  %602 = vmatprep.subr.bf16.mxu0 0
  %603 = vmatpush1.bf16.msra.mxu0 %v467
  %604 = vmatprep.subr.bf16.mxu0 0
  %605 = vmatpush1.bf16.msra.mxu0 %v468
  %606 = vmatprep.subr.bf16.mxu0 0
  %607 = vmatpush1.bf16.msra.mxu0 %v469
  %608 = vmatprep.subr.bf16.mxu0 0
  %609 = vmatpush1.bf16.msra.mxu0 %v470
  %610 = vmatprep.subr.bf16.mxu0 0
  %611 = vmatpush1.bf16.msra.mxu0 %v471
  %612 = vmatprep.subr.bf16.mxu0 0
  %613 = vmatpush1.bf16.msra.mxu0 %v472
  %614 = vmatprep.subr.bf16.mxu0 0
  %615 = vmatpush1.bf16.msra.mxu0 %v473
  %616 = vmatprep.subr.bf16.mxu0 0
  %617 = vmatpush1.bf16.msra.mxu0 %v474
  %618 = vmatprep.subr.bf16.mxu0 0
  %619 = vmatpush1.bf16.msra.mxu0 %v475
  %620 = vmatprep.mubr.bf16.mxu0 %v189
  %621 = vmatmul.mubr.bf16.gmra.mrb[0].mxu0 %v188
  %v622 = vpop.f32.mrb[0].mxu0
  %v623 = vadd.f32 %v162, %v622
  %v624 = vpop.f32.mrb[0].mxu0
  %v625 = vpop.f32.mrb[0].mxu0
  %v626 = vadd.f32 %v162, %v625
  %v627 = vpop.f32.mrb[0].mxu0
  %628 = vdwg.mxu0
  %629 = vmatprep.subr.bf16.mxu0 0
  %630 = vmatpush1.bf16.msra.mxu0 %v476
  %631 = vmatprep.subr.bf16.mxu0 0
  %632 = vmatpush1.bf16.msra.mxu0 %v477
  %633 = vmatprep.subr.bf16.mxu0 0
  %634 = vmatpush1.bf16.msra.mxu0 %v478
  %635 = vmatprep.subr.bf16.mxu0 0
  %636 = vmatpush1.bf16.msra.mxu0 %v479
  %637 = vmatprep.subr.bf16.mxu0 0
  %638 = vmatpush1.bf16.msra.mxu0 %v480
  %639 = vmatprep.subr.bf16.mxu0 0
  %640 = vmatpush1.bf16.msra.mxu0 %v481
  %641 = vmatprep.subr.bf16.mxu0 0
  %642 = vmatpush1.bf16.msra.mxu0 %v482
  %643 = vmatprep.subr.bf16.mxu0 0
  %644 = vmatpush1.bf16.msra.mxu0 %v483
  %645 = vmatprep.subr.bf16.mxu0 0
  %646 = vmatpush1.bf16.msra.mxu0 %v484
  %647 = vmatprep.subr.bf16.mxu0 0
  %648 = vmatpush1.bf16.msra.mxu0 %v485
  %649 = vmatprep.subr.bf16.mxu0 0
  %650 = vmatpush1.bf16.msra.mxu0 %v486
  %651 = vmatprep.subr.bf16.mxu0 0
  %652 = vmatpush1.bf16.msra.mxu0 %v487
  %653 = vmatprep.subr.bf16.mxu0 0
  %654 = vmatpush1.bf16.msra.mxu0 %v488
  %655 = vmatprep.subr.bf16.mxu0 0
  %656 = vmatpush1.bf16.msra.mxu0 %v489
  %657 = vmatprep.subr.bf16.mxu0 0
  %658 = vmatpush1.bf16.msra.mxu0 %v490
  %659 = vmatprep.subr.bf16.mxu0 0
  %660 = vmatpush1.bf16.msra.mxu0 %v491
  %661 = vmatprep.mubr.bf16.mxu0 %v191
  %662 = vmatmul.mubr.bf16.gmra.mrb[0].mxu0 %v190
  %v663 = vpop.f32.mrb[0].mxu0
  %v664 = vadd.f32 %v623, %v663
  %v665 = vpop.f32.mrb[0].mxu0
  %v666 = vpop.f32.mrb[0].mxu0
  %v667 = vadd.f32 %v626, %v666
  %v668 = vpop.f32.mrb[0].mxu0
  %669 = vdwg.mxu0
  %670 = vmatprep.subr.bf16.mxu0 0
  %671 = vmatpush1.bf16.msra.mxu0 %v492
  %672 = vmatprep.subr.bf16.mxu0 0
  %673 = vmatpush1.bf16.msra.mxu0 %v493
  %674 = vmatprep.subr.bf16.mxu0 0
  %675 = vmatpush1.bf16.msra.mxu0 %v494
  %676 = vmatprep.subr.bf16.mxu0 0
  %677 = vmatpush1.bf16.msra.mxu0 %v495
  %678 = vmatprep.subr.bf16.mxu0 0
  %679 = vmatpush1.bf16.msra.mxu0 %v496
  %680 = vmatprep.subr.bf16.mxu0 0
  %681 = vmatpush1.bf16.msra.mxu0 %v497
  %682 = vmatprep.subr.bf16.mxu0 0
  %683 = vmatpush1.bf16.msra.mxu0 %v498
  %684 = vmatprep.subr.bf16.mxu0 0
  %685 = vmatpush1.bf16.msra.mxu0 %v499
  %686 = vmatprep.subr.bf16.mxu0 0
  %687 = vmatpush1.bf16.msra.mxu0 %v500
  %688 = vmatprep.subr.bf16.mxu0 0
  %689 = vmatpush1.bf16.msra.mxu0 %v501
  %690 = vmatprep.subr.bf16.mxu0 0
  %691 = vmatpush1.bf16.msra.mxu0 %v502
  %692 = vmatprep.subr.bf16.mxu0 0
  %693 = vmatpush1.bf16.msra.mxu0 %v503
  %694 = vmatprep.subr.bf16.mxu0 0
  %695 = vmatpush1.bf16.msra.mxu0 %v504
  %696 = vmatprep.subr.bf16.mxu0 0
  %697 = vmatpush1.bf16.msra.mxu0 %v505
  %698 = vmatprep.subr.bf16.mxu0 0
  %699 = vmatpush1.bf16.msra.mxu0 %v506
  %700 = vmatprep.subr.bf16.mxu0 0
  %701 = vmatpush1.bf16.msra.mxu0 %v507
  %702 = vmatprep.mubr.bf16.mxu0 %v193
  %703 = vmatmul.mubr.bf16.gmra.mrb[0].mxu0 %v192
  %v704 = vpop.f32.mrb[0].mxu0
  %v705 = vadd.f32 %v664, %v704
  %v706 = vpop.f32.mrb[0].mxu0
  %v707 = vpop.f32.mrb[0].mxu0
  %v708 = vadd.f32 %v667, %v707
  %v709 = vpop.f32.mrb[0].mxu0
  %710 = vdwg.mxu0
  %711 = vmatprep.subr.bf16.mxu0 0
  %712 = vmatpush1.bf16.msra.mxu0 %v508
  %713 = vmatprep.subr.bf16.mxu0 0
  %714 = vmatpush1.bf16.msra.mxu0 %v509
  %715 = vmatprep.subr.bf16.mxu0 0
  %716 = vmatpush1.bf16.msra.mxu0 %v510
  %717 = vmatprep.subr.bf16.mxu0 0
  %718 = vmatpush1.bf16.msra.mxu0 %v511
  %719 = vmatprep.subr.bf16.mxu0 0
  %720 = vmatpush1.bf16.msra.mxu0 %v512
  %721 = vmatprep.subr.bf16.mxu0 0
  %722 = vmatpush1.bf16.msra.mxu0 %v513
  %723 = vmatprep.subr.bf16.mxu0 0
  %724 = vmatpush1.bf16.msra.mxu0 %v514
  %725 = vmatprep.subr.bf16.mxu0 0
  %726 = vmatpush1.bf16.msra.mxu0 %v515
  %727 = vmatprep.subr.bf16.mxu0 0
  %728 = vmatpush1.bf16.msra.mxu0 %v516
  %729 = vmatprep.subr.bf16.mxu0 0
  %730 = vmatpush1.bf16.msra.mxu0 %v517
  %731 = vmatprep.subr.bf16.mxu0 0
  %732 = vmatpush1.bf16.msra.mxu0 %v518
  %733 = vmatprep.subr.bf16.mxu0 0
  %734 = vmatpush1.bf16.msra.mxu0 %v519
  %735 = vmatprep.subr.bf16.mxu0 0
  %736 = vmatpush1.bf16.msra.mxu0 %v520
  %737 = vmatprep.subr.bf16.mxu0 0
  %738 = vmatpush1.bf16.msra.mxu0 %v521
  %739 = vmatprep.subr.bf16.mxu0 0
  %740 = vmatpush1.bf16.msra.mxu0 %v522
  %741 = vmatprep.subr.bf16.mxu0 0
  %742 = vmatpush1.bf16.msra.mxu0 %v523
  %743 = vmatprep.mubr.bf16.mxu0 %v195
  %744 = vmatmul.mubr.bf16.gmra.mrb[0].mxu0 %v194
  %v745 = vpop.f32.mrb[0].mxu0
  %v746 = vadd.f32 %v705, %v745
  %v747 = vpop.f32.mrb[0].mxu0
  %v748 = vpop.f32.mrb[0].mxu0
  %v749 = vadd.f32 %v708, %v748
  %v750 = vpop.f32.mrb[0].mxu0
  %751 = vdwg.mxu0
  %v752 = vpack.c.bf16 %v749, %v746
  %v753 = vld [vmem:[%s3] sm:$0xf]
  %v754 = vld [vmem:[%s3 + $0x4] sm:$0xf]
  %v755 = vld [vmem:[%s3 + $0x8] sm:$0xf]
  %v756 = vld [vmem:[%s3 + $0xc] sm:$0xf]
  %v757 = vld [vmem:[%s3 + $0x10] sm:$0xf]
  %v758 = vld [vmem:[%s3 + $0x14] sm:$0xf]
  %v759 = vld [vmem:[%s3 + $0x18] sm:$0xf]
  %v760 = vld [vmem:[%s3 + $0x1c] sm:$0xf]
  %v761 = vld [vmem:[%s4] sm:$0x1]
  %v763 = vlaneseq
  %v764 = vshrl.u32 %v763, 7
  %v765 = vsub.s32 0, %v764
  %v766 = vrot.slane %v761, %v765
  %v776 = vunpack.c.l.b16 %v753
  %v777 = vunpack.c.l.b16 %v754
  %v778 = vunpack.c.l.b16 %v755
  %v779 = vunpack.c.l.b16 %v756
  %v780 = vunpack.c.l.b16 %v757
  %v781 = vunpack.c.l.b16 %v758
  %v782 = vunpack.c.l.b16 %v759
  %v783 = vunpack.c.l.b16 %v760
  %v784 = vpack.c.b16 %v777, %v776
  %v785 = vpack.c.b16 %v779, %v778
  %v786 = vpack.c.b16 %v781, %v780
  %v787 = vpack.c.b16 %v783, %v782
  %vm792 = vcmask 523264
  %v794 = vsel %vm792, %v752, 0
  %796 = vmatprep.subr.bf16.mxu0 0
  %797 = vmatpush1.bf16.msra.mxu0 %v784
  %798 = vmatprep.subr.bf16.mxu0 0
  %799 = vmatpush1.bf16.msra.mxu0 %v785
  %800 = vmatprep.subr.bf16.mxu0 0
  %801 = vmatpush1.bf16.msra.mxu0 %v786
  %802 = vmatprep.subr.bf16.mxu0 0
  %803 = vmatpush1.bf16.msra.mxu0 %v787
  %804 = vmatprep.subr.bf16.mxu0 0
  %805 = vmatpush1.bf16.msra.mxu0 0
  %806 = vmatprep.subr.bf16.mxu0 0
  %807 = vmatpush1.bf16.msra.mxu0 0
  %808 = vmatprep.subr.bf16.mxu0 0
  %809 = vmatpush1.bf16.msra.mxu0 0
  %810 = vmatprep.subr.bf16.mxu0 0
  %811 = vmatpush1.bf16.msra.mxu0 0
  %812 = vmatprep.subr.bf16.mxu0 0
  %813 = vmatpush1.bf16.msra.mxu0 0
  %814 = vmatprep.subr.bf16.mxu0 0
  %815 = vmatpush1.bf16.msra.mxu0 0
  %816 = vmatprep.subr.bf16.mxu0 0
  %817 = vmatpush1.bf16.msra.mxu0 0
  %818 = vmatprep.subr.bf16.mxu0 0
  %819 = vmatpush1.bf16.msra.mxu0 0
  %820 = vmatprep.subr.bf16.mxu0 0
  %821 = vmatpush1.bf16.msra.mxu0 0
  %822 = vmatprep.subr.bf16.mxu0 0
  %823 = vmatpush1.bf16.msra.mxu0 0
  %824 = vmatprep.subr.bf16.mxu0 0
  %825 = vmatpush1.bf16.msra.mxu0 0
  %826 = vmatprep.subr.bf16.mxu0 0
  %827 = vmatpush1.bf16.msra.mxu0 0
  %828 = vmatprep.mubr.bf16.mxu0 0
  %829 = vmatmul.mubr.bf16.gmra.mrb[0].mxu0 %v794
  %v830 = vpop.f32.mrb[0].mxu0
  %v831 = vadd.f32 %v766, %v830
  %v832 = vpop.f32.mrb[0].mxu0
  %v833 = vpop.f32.mrb[0].mxu0
  %v834 = vadd.f32 %v766, %v833
  %v835 = vpop.f32.mrb[0].mxu0
  %836 = vdwg.mxu0
  %vm837 = vcmask 80896
  %838 = vst.msk [vmem:[%s5] sm:$0xff] %vm837, %v831
  %839 = vst.msk [vmem:[%s5 + $0x8] sm:$0xff] %vm837, %v834
  // Predicated region
  $region22: #{model_forward.7} parent=0 // pred_check
    _
  $region23: #{model_forward.7} parent=0 // pred_check_branch
    %841 = sbr.rel (0) target = $region25
  $region24: #{model_forward.7} parent=0 // pred_region
    _
  $region25: #{model_forward.7} parent=0 // pred_fallthru
    _
  // Predicated region
  $region26: #{model_forward.7} parent=0 // pred_check
    _
  $region27: #{model_forward.7} parent=0 // pred_check_branch
    %843 = sbr.rel (0) target = $region29
  $region28: #{model_forward.7} parent=0 // pred_region
    _
  $region29: #{model_forward.7} parent=0 // pred_fallthru
    _

</llo_original>
